<compile_context>
chip_gen: v5e
topology: v5e:2x2
jax: 0.10.0
libtpu: 0.0.40
codegen_flags: <defaults>
</compile_context>

<pallas_src>
import math

import jax
import jax.numpy as jnp
from jax.experimental import pallas as pl
from jax.experimental.pallas import tpu as pltpu

B, S = 2, 128          # batch, sequence length
DIM = 128              # model dim
NH = 8                 # num_heads (module default)
DH = DIM // NH         # head_dim = 16
SCALE = 1.0 / math.sqrt(DH)


def mha_kernel(x_ref, wqkv_ref, bqkv_ref, wo_ref, bo_ref, out_ref,
               qkv_ref, ctx_ref):
    # Block is one batch element: (S, DIM) thanks to the squeezed batch dim.
    xb = x_ref[...].astype(jnp.bfloat16)

    # Fused QKV projection: one (128,128)@(128,384) bf16 MXU matmul, f32 acc.
    # SCALE is already folded into the q columns of wqkv/bqkv host-side.
    qkv = jnp.dot(xb, wqkv_ref[...],
                  preferred_element_type=jnp.float32) + bqkv_ref[...]

    # One full k transpose (f32 XLU transpose) outside the head loop.
    kT = qkv[:, DIM:2 * DIM].T.astype(jnp.bfloat16)          # (DIM, S)

    # Park qkv in VMEM (bf16) so per-head slices are loads, not long-lived vregs.
    qkv_ref[...] = qkv.astype(jnp.bfloat16)

    for h in range(NH):                                       # NH=8, static unroll
        lo = h * DH
        qh = qkv_ref[:, lo:lo + DH]                           # (S, DH) bf16 (pre-scaled)
        vh = qkv_ref[:, 2 * DIM + lo:2 * DIM + lo + DH]       # (S, DH) bf16
        khT = kT[lo:lo + DH, :]                               # (DH, S) bf16

        s = jnp.dot(qh, khT, preferred_element_type=jnp.float32)   # (S, S)
        m = jnp.max(s, axis=-1, keepdims=True)
        p = jnp.exp(s - m)
        l = jnp.sum(p, axis=-1, keepdims=True)
        # TODO(synk): attention dropout (p=0.1) is identity here (eval mode);
        # train-mode would need pltpu.prng_seed / prng_random_bits masking.

        # Deferred softmax normalization: PV first, then one cheap scale.
        ctx_h = jnp.dot(p.astype(jnp.bfloat16), vh,
                        preferred_element_type=jnp.float32)   # (S, DH)
        ctx_h = ctx_h * pl.reciprocal(l, approx=True)
        ctx_ref[:, lo:lo + DH] = ctx_h.astype(jnp.bfloat16)

    # Single full (128,128)@(128,128) output projection + bias.
    out_ref[...] = jnp.dot(ctx_ref[...], wo_ref[...],
                           preferred_element_type=jnp.float32) + bo_ref[...]


def mha_pallas(x, params):
    # Host-side fusion: [Wq*SCALE | Wk | Wv] -> (DIM, 3*DIM), bf16 MXU operands.
    wqkv = jnp.concatenate(
        [params["wq"] * SCALE, params["wk"], params["wv"]], axis=1
    ).astype(jnp.bfloat16)
    bqkv = jnp.concatenate(
        [params["bq"] * SCALE, params["bk"], params["bv"]], axis=1)  # f32
    wo = params["wo"].astype(jnp.bfloat16)
    bo = params["bo"]                                                 # f32

    x_spec = pl.BlockSpec((None, S, DIM), lambda b: (b, 0, 0))        # squeezed batch
    return pl.pallas_call(
        mha_kernel,
        out_shape=jax.ShapeDtypeStruct((B, S, DIM), jnp.float32),
        grid=(B,),
        in_specs=[x_spec,
                  pl.BlockSpec((DIM, 3 * DIM), lambda b: (0, 0)),
                  pl.BlockSpec((1, 3 * DIM), lambda b: (0, 0)),
                  pl.BlockSpec((DIM, DIM), lambda b: (0, 0)),
                  pl.BlockSpec((1, DIM), lambda b: (0, 0))],
        out_specs=pl.BlockSpec((None, S, DIM), lambda b: (b, 0, 0)),
        scratch_shapes=[pltpu.VMEM((S, 3 * DIM), jnp.bfloat16),   # fused qkv
                        pltpu.VMEM((S, DIM), jnp.bfloat16)],      # ctx buffer
        compiler_params=pltpu.CompilerParams(
            dimension_semantics=("parallel",)),                  # v7x megacore
    )(x, wqkv, bqkv, wo, bo)


def mha_reference(x, params):
    """Plain-JAX f32 reference (independent of the kernel), PyTorch semantics."""
    q = x @ params["wq"] + params["bq"]
    k = x @ params["wk"] + params["bk"]
    v = x @ params["wv"] + params["bv"]

    def split_heads(t):
        return t.reshape(B, S, NH, DH).transpose(0, 2, 1, 3)   # (B, NH, S, DH)

    qh, kh, vh = split_heads(q), split_heads(k), split_heads(v)
    scores = jnp.einsum('bhqd,bhkd->bhqk', qh, kh) * SCALE
    attn = jax.nn.softmax(scores, axis=-1)          # dropout = identity (eval)
    ctx = jnp.einsum('bhqk,bhkd->bhqd', attn, vh)
    ctx = ctx.transpose(0, 2, 1, 3).reshape(B, S, DIM)
    return ctx @ params["wo"] + params["bo"]


if __name__ == "__main__":
    key = jax.random.PRNGKey(0)
    ks = jax.random.split(key, 9)

    x = jax.random.normal(ks[0], (B, S, DIM), jnp.float32)

    w_scale = 0.05
    params = dict(
        wq=jax.random.normal(ks[1], (DIM, DIM), jnp.float32) * w_scale,
        bq=jax.random.normal(ks[2], (1, DIM), jnp.float32) * w_scale,
        wk=jax.random.normal(ks[3], (DIM, DIM), jnp.float32) * w_scale,
        bk=jax.random.normal(ks[4], (1, DIM), jnp.float32) * w_scale,
        wv=jax.random.normal(ks[5], (DIM, DIM), jnp.float32) * w_scale,
        bv=jax.random.normal(ks[6], (1, DIM), jnp.float32) * w_scale,
        wo=jax.random.normal(ks[7], (DIM, DIM), jnp.float32) * w_scale,
        bo=jax.random.normal(ks[8], (1, DIM), jnp.float32) * w_scale,
    )

    out = jax.block_until_ready(mha_pallas(x, params))
    ref = jax.block_until_ready(mha_reference(x, params))

    assert out.shape == (B, S, DIM), out.shape
    max_err = float(jnp.max(jnp.abs(out - ref)))
    # Tolerance loosened vs. pure-f32: bf16 MXU operands + approx reciprocal.
    assert jnp.allclose(out, ref, atol=2e-2, rtol=2e-2), max_err

    print("KERNEL_OK")
</pallas_src>

<mosaic_0001>
module attributes {stable_mosaic.version = 11 : i64} {
  func.func @mha_kernel(%arg0: i32, %arg1: memref<1x128x128xf32, #tpu.memory_space<vmem>>, %arg2: memref<128x384xbf16, #tpu.memory_space<vmem>>, %arg3: memref<1x384xf32, #tpu.memory_space<vmem>>, %arg4: memref<128x128xbf16, #tpu.memory_space<vmem>>, %arg5: memref<1x128xf32, #tpu.memory_space<vmem>>, %arg6: memref<1x128x128xf32, #tpu.memory_space<vmem>>, %arg7: memref<128x384xbf16, #tpu.memory_space<vmem>>, %arg8: memref<128x128xbf16, #tpu.memory_space<vmem>>) attributes {dimension_semantics = [#tpu.dimension_semantics<parallel>], iteration_bounds = array<i64: 2>, scalar_prefetch = 0 : i64, scratch_operands = 2 : i64, tpu.core_type = #tpu.core_type<tc>, window_params = [{transform_indices = @transform_0, window_bounds = array<i64: 1, 128, 128>}, {pipeline_mode = #tpu.pipeline_mode<synchronous>, transform_indices = @transform_1, window_bounds = array<i64: 128, 384>}, {pipeline_mode = #tpu.pipeline_mode<synchronous>, transform_indices = @transform_2, window_bounds = array<i64: 1, 384>}, {pipeline_mode = #tpu.pipeline_mode<synchronous>, transform_indices = @transform_3, window_bounds = array<i64: 128, 128>}, {pipeline_mode = #tpu.pipeline_mode<synchronous>, transform_indices = @transform_4, window_bounds = array<i64: 1, 128>}, {transform_indices = @transform_5, window_bounds = array<i64: 1, 128, 128>}]} {
    %c0 = arith.constant 0 : index
    %c0_0 = arith.constant 0 : index
    %c0_1 = arith.constant 0 : index
    %0 = vector.load %arg1[%c0, %c0_0, %c0_1] : memref<1x128x128xf32, #tpu.memory_space<vmem>>, vector<1x128x128xf32>
    %1 = vector.shape_cast %0 : vector<1x128x128xf32> to vector<128x128xf32>
    %2 = arith.truncf %1 : vector<128x128xf32> to vector<128x128xbf16>
    %c0_2 = arith.constant 0 : index
    %c0_3 = arith.constant 0 : index
    %3 = vector.load %arg2[%c0_2, %c0_3] : memref<128x384xbf16, #tpu.memory_space<vmem>>, vector<128x384xbf16>
    %cst = arith.constant dense<0.000000e+00> : vector<128x384xf32>
    %4 = tpu.matmul %2, %3, %cst {dimension_numbers = #tpu.dot_dimension_numbers<[1], [0], [0], [1], [0, 0, 1, 1], [], []>} : vector<128x128xbf16>, vector<128x384xbf16>, vector<128x384xf32> -> vector<128x384xf32>
    %c0_4 = arith.constant 0 : index
    %c0_5 = arith.constant 0 : index
    %5 = vector.load %arg3[%c0_4, %c0_5] : memref<1x384xf32, #tpu.memory_space<vmem>>, vector<1x384xf32>
    %6 = vector.broadcast %5 : vector<1x384xf32> to vector<128x384xf32>
    %7 = arith.addf %4, %6 : vector<128x384xf32>
    %8 = vector.extract_strided_slice %7 {offsets = [0, 128], sizes = [128, 128], strides = [1, 1]} : vector<128x384xf32> to vector<128x128xf32>
    %9 = tpu.transpose %8, [1, 0] : vector<128x128xf32> -> vector<128x128xf32>
    %10 = arith.truncf %9 : vector<128x128xf32> to vector<128x128xbf16>
    %11 = arith.truncf %7 : vector<128x384xf32> to vector<128x384xbf16>
    %c0_6 = arith.constant 0 : index
    %c0_7 = arith.constant 0 : index
    %12 = vector.load %arg7[%c0_6, %c0_7] : memref<128x384xbf16, #tpu.memory_space<vmem>>, vector<128x384xbf16>
    tpu.vector_store %arg7[%c0_6, %c0_7], %11 {strides = array<i32>} : memref<128x384xbf16, #tpu.memory_space<vmem>>, vector<128x384xbf16>,
    %c0_8 = arith.constant 0 : index
    %c0_9 = arith.constant 0 : index
    %13 = vector.load %arg7[%c0_8, %c0_9] : memref<128x384xbf16, #tpu.memory_space<vmem>>, vector<128x16xbf16>
    %c0_10 = arith.constant 0 : index
    %c256 = arith.constant 256 : index
    %14 = vector.load %arg7[%c0_10, %c256] : memref<128x384xbf16, #tpu.memory_space<vmem>>, vector<128x16xbf16>
    %15 = vector.extract_strided_slice %10 {offsets = [0, 0], sizes = [16, 128], strides = [1, 1]} : vector<128x128xbf16> to vector<16x128xbf16>
    %cst_11 = arith.constant dense<0.000000e+00> : vector<128x128xf32>
    %16 = tpu.matmul %13, %15, %cst_11 {dimension_numbers = #tpu.dot_dimension_numbers<[1], [0], [0], [1], [0, 0, 1, 1], [], []>} : vector<128x16xbf16>, vector<16x128xbf16>, vector<128x128xf32> -> vector<128x128xf32>
    %cst_12 = arith.constant dense<0xFF800000> : vector<128xf32>
    %17 = vector.multi_reduction <maximumf>, %16, %cst_12 [1] : vector<128x128xf32> to vector<128xf32>
    %18 = vector.shape_cast %17 : vector<128xf32> to vector<128x1xf32>
    %19 = vector.broadcast %18 : vector<128x1xf32> to vector<128x128xf32>
    %20 = arith.subf %16, %19 : vector<128x128xf32>
    %21 = math.exp %20 : vector<128x128xf32>
    %cst_13 = arith.constant dense<0.000000e+00> : vector<128xf32>
    %22 = vector.multi_reduction <add>, %21, %cst_13 [1] : vector<128x128xf32> to vector<128xf32>
    %23 = vector.shape_cast %22 : vector<128xf32> to vector<128x1xf32>
    %24 = arith.truncf %21 : vector<128x128xf32> to vector<128x128xbf16>
    %cst_14 = arith.constant dense<0.000000e+00> : vector<128x16xf32>
    %25 = tpu.matmul %24, %14, %cst_14 {dimension_numbers = #tpu.dot_dimension_numbers<[1], [0], [0], [1], [0, 0, 1, 1], [], []>} : vector<128x128xbf16>, vector<128x16xbf16>, vector<128x16xf32> -> vector<128x16xf32>
    %26 = tpu.reciprocal %23 {approx = true} : vector<128x1xf32> -> vector<128x1xf32>
    %27 = vector.broadcast %26 : vector<128x1xf32> to vector<128x16xf32>
    %28 = arith.mulf %25, %27 : vector<128x16xf32>
    %29 = arith.truncf %28 : vector<128x16xf32> to vector<128x16xbf16>
    %c0_15 = arith.constant 0 : index
    %c0_16 = arith.constant 0 : index
    %30 = vector.load %arg8[%c0_15, %c0_16] : memref<128x128xbf16, #tpu.memory_space<vmem>>, vector<128x16xbf16>
    tpu.vector_store %arg8[%c0_15, %c0_16], %29 {strides = array<i32>} : memref<128x128xbf16, #tpu.memory_space<vmem>>, vector<128x16xbf16>,
    %c0_17 = arith.constant 0 : index
    %c16 = arith.constant 16 : index
    %31 = vector.load %arg7[%c0_17, %c16] : memref<128x384xbf16, #tpu.memory_space<vmem>>, vector<128x16xbf16>
    %c0_18 = arith.constant 0 : index
    %c272 = arith.constant 272 : index
    %32 = vector.load %arg7[%c0_18, %c272] : memref<128x384xbf16, #tpu.memory_space<vmem>>, vector<128x16xbf16>
    %33 = vector.extract_strided_slice %10 {offsets = [16, 0], sizes = [16, 128], strides = [1, 1]} : vector<128x128xbf16> to vector<16x128xbf16>
    %cst_19 = arith.constant dense<0.000000e+00> : vector<128x128xf32>
    %34 = tpu.matmul %31, %33, %cst_19 {dimension_numbers = #tpu.dot_dimension_numbers<[1], [0], [0], [1], [0, 0, 1, 1], [], []>} : vector<128x16xbf16>, vector<16x128xbf16>, vector<128x128xf32> -> vector<128x128xf32>
    %cst_20 = arith.constant dense<0xFF800000> : vector<128xf32>
    %35 = vector.multi_reduction <maximumf>, %34, %cst_20 [1] : vector<128x128xf32> to vector<128xf32>
    %36 = vector.shape_cast %35 : vector<128xf32> to vector<128x1xf32>
    %37 = vector.broadcast %36 : vector<128x1xf32> to vector<128x128xf32>
    %38 = arith.subf %34, %37 : vector<128x128xf32>
    %39 = math.exp %38 : vector<128x128xf32>
    %cst_21 = arith.constant dense<0.000000e+00> : vector<128xf32>
    %40 = vector.multi_reduction <add>, %39, %cst_21 [1] : vector<128x128xf32> to vector<128xf32>
    %41 = vector.shape_cast %40 : vector<128xf32> to vector<128x1xf32>
    %42 = arith.truncf %39 : vector<128x128xf32> to vector<128x128xbf16>
    %cst_22 = arith.constant dense<0.000000e+00> : vector<128x16xf32>
    %43 = tpu.matmul %42, %32, %cst_22 {dimension_numbers = #tpu.dot_dimension_numbers<[1], [0], [0], [1], [0, 0, 1, 1], [], []>} : vector<128x128xbf16>, vector<128x16xbf16>, vector<128x16xf32> -> vector<128x16xf32>
    %44 = tpu.reciprocal %41 {approx = true} : vector<128x1xf32> -> vector<128x1xf32>
    %45 = vector.broadcast %44 : vector<128x1xf32> to vector<128x16xf32>
    %46 = arith.mulf %43, %45 : vector<128x16xf32>
    %47 = arith.truncf %46 : vector<128x16xf32> to vector<128x16xbf16>
    %c0_23 = arith.constant 0 : index
    %c16_24 = arith.constant 16 : index
    %48 = vector.load %arg8[%c0_23, %c16_24] : memref<128x128xbf16, #tpu.memory_space<vmem>>, vector<128x16xbf16>
    tpu.vector_store %arg8[%c0_23, %c16_24], %47 {strides = array<i32>} : memref<128x128xbf16, #tpu.memory_space<vmem>>, vector<128x16xbf16>,
    %c0_25 = arith.constant 0 : index
    %c32 = arith.constant 32 : index
    %49 = vector.load %arg7[%c0_25, %c32] : memref<128x384xbf16, #tpu.memory_space<vmem>>, vector<128x16xbf16>
    %c0_26 = arith.constant 0 : index
    %c288 = arith.constant 288 : index
    %50 = vector.load %arg7[%c0_26, %c288] : memref<128x384xbf16, #tpu.memory_space<vmem>>, vector<128x16xbf16>
    %51 = vector.extract_strided_slice %10 {offsets = [32, 0], sizes = [16, 128], strides = [1, 1]} : vector<128x128xbf16> to vector<16x128xbf16>
    %cst_27 = arith.constant dense<0.000000e+00> : vector<128x128xf32>
    %52 = tpu.matmul %49, %51, %cst_27 {dimension_numbers = #tpu.dot_dimension_numbers<[1], [0], [0], [1], [0, 0, 1, 1], [], []>} : vector<128x16xbf16>, vector<16x128xbf16>, vector<128x128xf32> -> vector<128x128xf32>
    %cst_28 = arith.constant dense<0xFF800000> : vector<128xf32>
    %53 = vector.multi_reduction <maximumf>, %52, %cst_28 [1] : vector<128x128xf32> to vector<128xf32>
    %54 = vector.shape_cast %53 : vector<128xf32> to vector<128x1xf32>
    %55 = vector.broadcast %54 : vector<128x1xf32> to vector<128x128xf32>
    %56 = arith.subf %52, %55 : vector<128x128xf32>
    %57 = math.exp %56 : vector<128x128xf32>
    %cst_29 = arith.constant dense<0.000000e+00> : vector<128xf32>
    %58 = vector.multi_reduction <add>, %57, %cst_29 [1] : vector<128x128xf32> to vector<128xf32>
    %59 = vector.shape_cast %58 : vector<128xf32> to vector<128x1xf32>
    %60 = arith.truncf %57 : vector<128x128xf32> to vector<128x128xbf16>
    %cst_30 = arith.constant dense<0.000000e+00> : vector<128x16xf32>
    %61 = tpu.matmul %60, %50, %cst_30 {dimension_numbers = #tpu.dot_dimension_numbers<[1], [0], [0], [1], [0, 0, 1, 1], [], []>} : vector<128x128xbf16>, vector<128x16xbf16>, vector<128x16xf32> -> vector<128x16xf32>
    %62 = tpu.reciprocal %59 {approx = true} : vector<128x1xf32> -> vector<128x1xf32>
    %63 = vector.broadcast %62 : vector<128x1xf32> to vector<128x16xf32>
    %64 = arith.mulf %61, %63 : vector<128x16xf32>
    %65 = arith.truncf %64 : vector<128x16xf32> to vector<128x16xbf16>
    %c0_31 = arith.constant 0 : index
    %c32_32 = arith.constant 32 : index
    %66 = vector.load %arg8[%c0_31, %c32_32] : memref<128x128xbf16, #tpu.memory_space<vmem>>, vector<128x16xbf16>
    tpu.vector_store %arg8[%c0_31, %c32_32], %65 {strides = array<i32>} : memref<128x128xbf16, #tpu.memory_space<vmem>>, vector<128x16xbf16>,
    %c0_33 = arith.constant 0 : index
    %c48 = arith.constant 48 : index
    %67 = vector.load %arg7[%c0_33, %c48] : memref<128x384xbf16, #tpu.memory_space<vmem>>, vector<128x16xbf16>
    %c0_34 = arith.constant 0 : index
    %c304 = arith.constant 304 : index
    %68 = vector.load %arg7[%c0_34, %c304] : memref<128x384xbf16, #tpu.memory_space<vmem>>, vector<128x16xbf16>
    %69 = vector.extract_strided_slice %10 {offsets = [48, 0], sizes = [16, 128], strides = [1, 1]} : vector<128x128xbf16> to vector<16x128xbf16>
    %cst_35 = arith.constant dense<0.000000e+00> : vector<128x128xf32>
    %70 = tpu.matmul %67, %69, %cst_35 {dimension_numbers = #tpu.dot_dimension_numbers<[1], [0], [0], [1], [0, 0, 1, 1], [], []>} : vector<128x16xbf16>, vector<16x128xbf16>, vector<128x128xf32> -> vector<128x128xf32>
    %cst_36 = arith.constant dense<0xFF800000> : vector<128xf32>
    %71 = vector.multi_reduction <maximumf>, %70, %cst_36 [1] : vector<128x128xf32> to vector<128xf32>
    %72 = vector.shape_cast %71 : vector<128xf32> to vector<128x1xf32>
    %73 = vector.broadcast %72 : vector<128x1xf32> to vector<128x128xf32>
    %74 = arith.subf %70, %73 : vector<128x128xf32>
    %75 = math.exp %74 : vector<128x128xf32>
    %cst_37 = arith.constant dense<0.000000e+00> : vector<128xf32>
    %76 = vector.multi_reduction <add>, %75, %cst_37 [1] : vector<128x128xf32> to vector<128xf32>
    %77 = vector.shape_cast %76 : vector<128xf32> to vector<128x1xf32>
    %78 = arith.truncf %75 : vector<128x128xf32> to vector<128x128xbf16>
    %cst_38 = arith.constant dense<0.000000e+00> : vector<128x16xf32>
    %79 = tpu.matmul %78, %68, %cst_38 {dimension_numbers = #tpu.dot_dimension_numbers<[1], [0], [0], [1], [0, 0, 1, 1], [], []>} : vector<128x128xbf16>, vector<128x16xbf16>, vector<128x16xf32> -> vector<128x16xf32>
    %80 = tpu.reciprocal %77 {approx = true} : vector<128x1xf32> -> vector<128x1xf32>
    %81 = vector.broadcast %80 : vector<128x1xf32> to vector<128x16xf32>
    %82 = arith.mulf %79, %81 : vector<128x16xf32>
    %83 = arith.truncf %82 : vector<128x16xf32> to vector<128x16xbf16>
    %c0_39 = arith.constant 0 : index
    %c48_40 = arith.constant 48 : index
    %84 = vector.load %arg8[%c0_39, %c48_40] : memref<128x128xbf16, #tpu.memory_space<vmem>>, vector<128x16xbf16>
    tpu.vector_store %arg8[%c0_39, %c48_40], %83 {strides = array<i32>} : memref<128x128xbf16, #tpu.memory_space<vmem>>, vector<128x16xbf16>,
    %c0_41 = arith.constant 0 : index
    %c64 = arith.constant 64 : index
    %85 = vector.load %arg7[%c0_41, %c64] : memref<128x384xbf16, #tpu.memory_space<vmem>>, vector<128x16xbf16>
    %c0_42 = arith.constant 0 : index
    %c320 = arith.constant 320 : index
    %86 = vector.load %arg7[%c0_42, %c320] : memref<128x384xbf16, #tpu.memory_space<vmem>>, vector<128x16xbf16>
    %87 = vector.extract_strided_slice %10 {offsets = [64, 0], sizes = [16, 128], strides = [1, 1]} : vector<128x128xbf16> to vector<16x128xbf16>
    %cst_43 = arith.constant dense<0.000000e+00> : vector<128x128xf32>
    %88 = tpu.matmul %85, %87, %cst_43 {dimension_numbers = #tpu.dot_dimension_numbers<[1], [0], [0], [1], [0, 0, 1, 1], [], []>} : vector<128x16xbf16>, vector<16x128xbf16>, vector<128x128xf32> -> vector<128x128xf32>
    %cst_44 = arith.constant dense<0xFF800000> : vector<128xf32>
    %89 = vector.multi_reduction <maximumf>, %88, %cst_44 [1] : vector<128x128xf32> to vector<128xf32>
    %90 = vector.shape_cast %89 : vector<128xf32> to vector<128x1xf32>
    %91 = vector.broadcast %90 : vector<128x1xf32> to vector<128x128xf32>
    %92 = arith.subf %88, %91 : vector<128x128xf32>
    %93 = math.exp %92 : vector<128x128xf32>
    %cst_45 = arith.constant dense<0.000000e+00> : vector<128xf32>
    %94 = vector.multi_reduction <add>, %93, %cst_45 [1] : vector<128x128xf32> to vector<128xf32>
    %95 = vector.shape_cast %94 : vector<128xf32> to vector<128x1xf32>
    %96 = arith.truncf %93 : vector<128x128xf32> to vector<128x128xbf16>
    %cst_46 = arith.constant dense<0.000000e+00> : vector<128x16xf32>
    %97 = tpu.matmul %96, %86, %cst_46 {dimension_numbers = #tpu.dot_dimension_numbers<[1], [0], [0], [1], [0, 0, 1, 1], [], []>} : vector<128x128xbf16>, vector<128x16xbf16>, vector<128x16xf32> -> vector<128x16xf32>
    %98 = tpu.reciprocal %95 {approx = true} : vector<128x1xf32> -> vector<128x1xf32>
    %99 = vector.broadcast %98 : vector<128x1xf32> to vector<128x16xf32>
    %100 = arith.mulf %97, %99 : vector<128x16xf32>
    %101 = arith.truncf %100 : vector<128x16xf32> to vector<128x16xbf16>
    %c0_47 = arith.constant 0 : index
    %c64_48 = arith.constant 64 : index
    %102 = vector.load %arg8[%c0_47, %c64_48] : memref<128x128xbf16, #tpu.memory_space<vmem>>, vector<128x16xbf16>
    tpu.vector_store %arg8[%c0_47, %c64_48], %101 {strides = array<i32>} : memref<128x128xbf16, #tpu.memory_space<vmem>>, vector<128x16xbf16>,
    %c0_49 = arith.constant 0 : index
    %c80 = arith.constant 80 : index
    %103 = vector.load %arg7[%c0_49, %c80] : memref<128x384xbf16, #tpu.memory_space<vmem>>, vector<128x16xbf16>
    %c0_50 = arith.constant 0 : index
    %c336 = arith.constant 336 : index
    %104 = vector.load %arg7[%c0_50, %c336] : memref<128x384xbf16, #tpu.memory_space<vmem>>, vector<128x16xbf16>
    %105 = vector.extract_strided_slice %10 {offsets = [80, 0], sizes = [16, 128], strides = [1, 1]} : vector<128x128xbf16> to vector<16x128xbf16>
    %cst_51 = arith.constant dense<0.000000e+00> : vector<128x128xf32>
    %106 = tpu.matmul %103, %105, %cst_51 {dimension_numbers = #tpu.dot_dimension_numbers<[1], [0], [0], [1], [0, 0, 1, 1], [], []>} : vector<128x16xbf16>, vector<16x128xbf16>, vector<128x128xf32> -> vector<128x128xf32>
    %cst_52 = arith.constant dense<0xFF800000> : vector<128xf32>
    %107 = vector.multi_reduction <maximumf>, %106, %cst_52 [1] : vector<128x128xf32> to vector<128xf32>
    %108 = vector.shape_cast %107 : vector<128xf32> to vector<128x1xf32>
    %109 = vector.broadcast %108 : vector<128x1xf32> to vector<128x128xf32>
    %110 = arith.subf %106, %109 : vector<128x128xf32>
    %111 = math.exp %110 : vector<128x128xf32>
    %cst_53 = arith.constant dense<0.000000e+00> : vector<128xf32>
    %112 = vector.multi_reduction <add>, %111, %cst_53 [1] : vector<128x128xf32> to vector<128xf32>
    %113 = vector.shape_cast %112 : vector<128xf32> to vector<128x1xf32>
    %114 = arith.truncf %111 : vector<128x128xf32> to vector<128x128xbf16>
    %cst_54 = arith.constant dense<0.000000e+00> : vector<128x16xf32>
    %115 = tpu.matmul %114, %104, %cst_54 {dimension_numbers = #tpu.dot_dimension_numbers<[1], [0], [0], [1], [0, 0, 1, 1], [], []>} : vector<128x128xbf16>, vector<128x16xbf16>, vector<128x16xf32> -> vector<128x16xf32>
    %116 = tpu.reciprocal %113 {approx = true} : vector<128x1xf32> -> vector<128x1xf32>
    %117 = vector.broadcast %116 : vector<128x1xf32> to vector<128x16xf32>
    %118 = arith.mulf %115, %117 : vector<128x16xf32>
    %119 = arith.truncf %118 : vector<128x16xf32> to vector<128x16xbf16>
    %c0_55 = arith.constant 0 : index
    %c80_56 = arith.constant 80 : index
    %120 = vector.load %arg8[%c0_55, %c80_56] : memref<128x128xbf16, #tpu.memory_space<vmem>>, vector<128x16xbf16>
    tpu.vector_store %arg8[%c0_55, %c80_56], %119 {strides = array<i32>} : memref<128x128xbf16, #tpu.memory_space<vmem>>, vector<128x16xbf16>,
    %c0_57 = arith.constant 0 : index
    %c96 = arith.constant 96 : index
    %121 = vector.load %arg7[%c0_57, %c96] : memref<128x384xbf16, #tpu.memory_space<vmem>>, vector<128x16xbf16>
    %c0_58 = arith.constant 0 : index
    %c352 = arith.constant 352 : index
    %122 = vector.load %arg7[%c0_58, %c352] : memref<128x384xbf16, #tpu.memory_space<vmem>>, vector<128x16xbf16>
    %123 = vector.extract_strided_slice %10 {offsets = [96, 0], sizes = [16, 128], strides = [1, 1]} : vector<128x128xbf16> to vector<16x128xbf16>
    %cst_59 = arith.constant dense<0.000000e+00> : vector<128x128xf32>
    %124 = tpu.matmul %121, %123, %cst_59 {dimension_numbers = #tpu.dot_dimension_numbers<[1], [0], [0], [1], [0, 0, 1, 1], [], []>} : vector<128x16xbf16>, vector<16x128xbf16>, vector<128x128xf32> -> vector<128x128xf32>
    %cst_60 = arith.constant dense<0xFF800000> : vector<128xf32>
    %125 = vector.multi_reduction <maximumf>, %124, %cst_60 [1] : vector<128x128xf32> to vector<128xf32>
    %126 = vector.shape_cast %125 : vector<128xf32> to vector<128x1xf32>
    %127 = vector.broadcast %126 : vector<128x1xf32> to vector<128x128xf32>
    %128 = arith.subf %124, %127 : vector<128x128xf32>
    %129 = math.exp %128 : vector<128x128xf32>
    %cst_61 = arith.constant dense<0.000000e+00> : vector<128xf32>
    %130 = vector.multi_reduction <add>, %129, %cst_61 [1] : vector<128x128xf32> to vector<128xf32>
    %131 = vector.shape_cast %130 : vector<128xf32> to vector<128x1xf32>
    %132 = arith.truncf %129 : vector<128x128xf32> to vector<128x128xbf16>
    %cst_62 = arith.constant dense<0.000000e+00> : vector<128x16xf32>
    %133 = tpu.matmul %132, %122, %cst_62 {dimension_numbers = #tpu.dot_dimension_numbers<[1], [0], [0], [1], [0, 0, 1, 1], [], []>} : vector<128x128xbf16>, vector<128x16xbf16>, vector<128x16xf32> -> vector<128x16xf32>
    %134 = tpu.reciprocal %131 {approx = true} : vector<128x1xf32> -> vector<128x1xf32>
    %135 = vector.broadcast %134 : vector<128x1xf32> to vector<128x16xf32>
    %136 = arith.mulf %133, %135 : vector<128x16xf32>
    %137 = arith.truncf %136 : vector<128x16xf32> to vector<128x16xbf16>
    %c0_63 = arith.constant 0 : index
    %c96_64 = arith.constant 96 : index
    %138 = vector.load %arg8[%c0_63, %c96_64] : memref<128x128xbf16, #tpu.memory_space<vmem>>, vector<128x16xbf16>
    tpu.vector_store %arg8[%c0_63, %c96_64], %137 {strides = array<i32>} : memref<128x128xbf16, #tpu.memory_space<vmem>>, vector<128x16xbf16>,
    %c0_65 = arith.constant 0 : index
    %c112 = arith.constant 112 : index
    %139 = vector.load %arg7[%c0_65, %c112] : memref<128x384xbf16, #tpu.memory_space<vmem>>, vector<128x16xbf16>
    %c0_66 = arith.constant 0 : index
    %c368 = arith.constant 368 : index
    %140 = vector.load %arg7[%c0_66, %c368] : memref<128x384xbf16, #tpu.memory_space<vmem>>, vector<128x16xbf16>
    %141 = vector.extract_strided_slice %10 {offsets = [112, 0], sizes = [16, 128], strides = [1, 1]} : vector<128x128xbf16> to vector<16x128xbf16>
    %cst_67 = arith.constant dense<0.000000e+00> : vector<128x128xf32>
    %142 = tpu.matmul %139, %141, %cst_67 {dimension_numbers = #tpu.dot_dimension_numbers<[1], [0], [0], [1], [0, 0, 1, 1], [], []>} : vector<128x16xbf16>, vector<16x128xbf16>, vector<128x128xf32> -> vector<128x128xf32>
    %cst_68 = arith.constant dense<0xFF800000> : vector<128xf32>
    %143 = vector.multi_reduction <maximumf>, %142, %cst_68 [1] : vector<128x128xf32> to vector<128xf32>
    %144 = vector.shape_cast %143 : vector<128xf32> to vector<128x1xf32>
    %145 = vector.broadcast %144 : vector<128x1xf32> to vector<128x128xf32>
    %146 = arith.subf %142, %145 : vector<128x128xf32>
    %147 = math.exp %146 : vector<128x128xf32>
    %cst_69 = arith.constant dense<0.000000e+00> : vector<128xf32>
    %148 = vector.multi_reduction <add>, %147, %cst_69 [1] : vector<128x128xf32> to vector<128xf32>
    %149 = vector.shape_cast %148 : vector<128xf32> to vector<128x1xf32>
    %150 = arith.truncf %147 : vector<128x128xf32> to vector<128x128xbf16>
    %cst_70 = arith.constant dense<0.000000e+00> : vector<128x16xf32>
    %151 = tpu.matmul %150, %140, %cst_70 {dimension_numbers = #tpu.dot_dimension_numbers<[1], [0], [0], [1], [0, 0, 1, 1], [], []>} : vector<128x128xbf16>, vector<128x16xbf16>, vector<128x16xf32> -> vector<128x16xf32>
    %152 = tpu.reciprocal %149 {approx = true} : vector<128x1xf32> -> vector<128x1xf32>
    %153 = vector.broadcast %152 : vector<128x1xf32> to vector<128x16xf32>
    %154 = arith.mulf %151, %153 : vector<128x16xf32>
    %155 = arith.truncf %154 : vector<128x16xf32> to vector<128x16xbf16>
    %c0_71 = arith.constant 0 : index
    %c112_72 = arith.constant 112 : index
    %156 = vector.load %arg8[%c0_71, %c112_72] : memref<128x128xbf16, #tpu.memory_space<vmem>>, vector<128x16xbf16>
    tpu.vector_store %arg8[%c0_71, %c112_72], %155 {strides = array<i32>} : memref<128x128xbf16, #tpu.memory_space<vmem>>, vector<128x16xbf16>,
    %c0_73 = arith.constant 0 : index
    %c0_74 = arith.constant 0 : index
    %157 = vector.load %arg8[%c0_73, %c0_74] : memref<128x128xbf16, #tpu.memory_space<vmem>>, vector<128x128xbf16>
    %c0_75 = arith.constant 0 : index
    %c0_76 = arith.constant 0 : index
    %158 = vector.load %arg4[%c0_75, %c0_76] : memref<128x128xbf16, #tpu.memory_space<vmem>>, vector<128x128xbf16>
    %cst_77 = arith.constant dense<0.000000e+00> : vector<128x128xf32>
    %159 = tpu.matmul %157, %158, %cst_77 {dimension_numbers = #tpu.dot_dimension_numbers<[1], [0], [0], [1], [0, 0, 1, 1], [], []>} : vector<128x128xbf16>, vector<128x128xbf16>, vector<128x128xf32> -> vector<128x128xf32>
    %c0_78 = arith.constant 0 : index
    %c0_79 = arith.constant 0 : index
    %160 = vector.load %arg5[%c0_78, %c0_79] : memref<1x128xf32, #tpu.memory_space<vmem>>, vector<1x128xf32>
    %161 = vector.broadcast %160 : vector<1x128xf32> to vector<128x128xf32>
    %162 = arith.addf %159, %161 : vector<128x128xf32>
    %c0_80 = arith.constant 0 : index
    %c0_81 = arith.constant 0 : index
    %c0_82 = arith.constant 0 : index
    %163 = vector.load %arg6[%c0_80, %c0_81, %c0_82] : memref<1x128x128xf32, #tpu.memory_space<vmem>>, vector<1x128x128xf32>
    %164 = vector.shape_cast %163 : vector<1x128x128xf32> to vector<128x128xf32>
    %165 = vector.shape_cast %162 : vector<128x128xf32> to vector<1x128x128xf32>
    tpu.vector_store %arg6[%c0_80, %c0_81, %c0_82], %165 {strides = array<i32>} : memref<1x128x128xf32, #tpu.memory_space<vmem>>, vector<1x128x128xf32>,
    return
  }
  func.func @transform_0(%arg0: i32) -> (i32, i32, i32) {
    %c0_i32 = arith.constant 0 : i32
    %c0_i32_0 = arith.constant 0 : i32
    %c0_i32_1 = arith.constant 0 : i32
    return %arg0, %c0_i32, %c0_i32_0 : i32, i32, i32
  }
  func.func @transform_1(%arg0: i32) -> (i32, i32) {
    %c0_i32 = arith.constant 0 : i32
    %c0_i32_0 = arith.constant 0 : i32
    %c0_i32_1 = arith.constant 0 : i32
    return %c0_i32, %c0_i32_0 : i32, i32
  }
  func.func @transform_2(%arg0: i32) -> (i32, i32) {
    %c0_i32 = arith.constant 0 : i32
    %c0_i32_0 = arith.constant 0 : i32
    %c0_i32_1 = arith.constant 0 : i32
    return %c0_i32, %c0_i32_0 : i32, i32
  }
  func.func @transform_3(%arg0: i32) -> (i32, i32) {
    %c0_i32 = arith.constant 0 : i32
    %c0_i32_0 = arith.constant 0 : i32
    %c0_i32_1 = arith.constant 0 : i32
    return %c0_i32, %c0_i32_0 : i32, i32
  }
  func.func @transform_4(%arg0: i32) -> (i32, i32) {
    %c0_i32 = arith.constant 0 : i32
    %c0_i32_0 = arith.constant 0 : i32
    %c0_i32_1 = arith.constant 0 : i32
    return %c0_i32, %c0_i32_0 : i32, i32
  }
  func.func @transform_5(%arg0: i32) -> (i32, i32, i32) {
    %c0_i32 = arith.constant 0 : i32
    %c0_i32_0 = arith.constant 0 : i32
    %c0_i32_1 = arith.constant 0 : i32
    return %arg0, %c0_i32, %c0_i32_0 : i32, i32, i32
  }
}

</mosaic_0001>

<llo_original>
// kernel: tpu_custom_call.1
$region0: #{tpu_custom_call.1}
  #allocation0 [shape = 'u32[]', space=smem, size = 0x4, offset = 0x4, fixed_abs, tag = 'smem constant byte address 0x4 - core index']
  #allocation1 [shape = 'u32[72,128]{1,0:T(1,128)}', space=vmem, size = 0x9000, scoped, tag = 'internal scratch']
  #allocation2 [shape = 'bf16[128,384]{1,0:T(8,128)(2,1)}', space=vmem, size = 0x18000, scoped, tag = 'scratch operand']
  #allocation3 [shape = 'bf16[128,128]{1,0:T(8,128)(2,1)}', space=vmem, size = 0x8000, scoped, tag = 'scratch operand']
  %s0 = inlined_call_operand.hbm [shape: f32[2,128,128], index: 0, kind: input, shape index: {}]
  %s1 = inlined_call_operand.hbm [shape: bf16[128,384], index: 1, kind: input, shape index: {}]
  %s2 = inlined_call_operand.hbm [shape: f32[1,384], index: 2, kind: input, shape index: {}]
  %s3 = inlined_call_operand.hbm [shape: bf16[128,128], index: 3, kind: input, shape index: {}]
  %s4 = inlined_call_operand.vmem [shape: f32[1,128], index: 4, kind: input, shape index: {}]
  %s5 = inlined_call_operand.hbm [shape: f32[2,128,128], index: 5, kind: output, shape index: {}]
  %s6 = sld [smem:[#allocation0]]
  $region69: #{tpu_custom_call.1} parent=0
    _
  %s8 = ssub.s32 1, %s6
  %s9 = scalar_select 0, %s8, %s6
  $region1: #{tpu_custom_call.1} parent=0
    #allocation4 [shape = 'u8[131072]{0}', space=vmem, size = 0x20000, scoped, tag = 'input window, operand 0']
    #allocation5 [shape = 's32[2]{0}', space=sflag, size = 0x8, scoped, tag = 'scoped memory for tpu_custom_call.1']
    #allocation6 [shape = 's32[2]{0}', space=sflag, size = 0x8, scoped, tag = 'scoped memory for tpu_custom_call.1']
    #allocation7 [shape = 'u8[98304]{0}', space=vmem, size = 0x18000, scoped, tag = 'input window, operand 1, single buffered']
    #allocation8 [shape = 's32[1]{0}', space=sflag, size = 0x4, scoped, tag = 'scoped memory for tpu_custom_call.1']
    #allocation9 [shape = 'u8[1536]{0}', space=vmem, size = 0x800, scoped, tag = 'input window, operand 2, single buffered']
    #allocation10 [shape = 'u8[32768]{0}', space=vmem, size = 0x8000, scoped, tag = 'input window, operand 3, single buffered']
    #allocation11 [shape = 's32[1]{0}', space=sflag, size = 0x4, scoped, tag = 'scoped memory for tpu_custom_call.1']
    #allocation12 [shape = 'u8[131072]{0}', space=vmem, size = 0x20000, scoped, tag = 'output window, operand 0']
    %10 = vsyncpa [#allocation5], 0
    %s11 = scalar_lea.sflag [#allocation5], 1
    %12 = vsyncpa %s11, 0
    %13 = vsyncpa [#allocation8], 0
    %14 = vsyncpa [#allocation11], 0
    %15 = vsyncpa [#allocation6], 0
    %s16 = scalar_lea.sflag [#allocation6], 1
    %17 = vsyncpa %s16, 0
    loop: start=0, step=1, limit=4
    $region2: #{tpu_custom_call.1} parent=1 // loop_pre_header
      _
    $region3: #{tpu_custom_call.1} parent=1 // loop_header
      %s19 = sphi 0, %s23
      %p20 = scmp.ge.s32.totalorder %s19, 4
      %s29 = sphi 0, %s31
      %s32 = sphi 0, %s29
      %s33 = sphi 0, %s32
      %s49 = sphi 0, %s33
      %s53 = sphi 0, %s53
      %s55 = sphi 0, %s53
      %s56 = sphi 0, %s55
      %s70 = sphi 0, %s56
      %s74 = sphi 0, %s74
      %s76 = sphi 0, %s74
      %s77 = sphi 0, %s76
      %s91 = sphi 0, %s77
      %s95 = sphi 0, %s95
      %s97 = sphi 0, %s95
      %s98 = sphi 0, %s97
      %s112 = sphi 0, %s98
      %s116 = sphi 0, %s116
      %s118 = sphi 0, %s116
      %s119 = sphi 0, %s118
      %s133 = sphi 0, %s119
      %s139 = sphi 0, %s141
      %s142 = sphi 0, %s139
      %s143 = sphi 0, %s142
      %s159 = sphi 0, %s143
    $region4: #{tpu_custom_call.1} parent=1 // loop_header_branch
      %22 = sbr.rel (%p20) target = $region8
    $region5: #{tpu_custom_call.1} parent=1 // loop_body
      %s24 = ssub.s32 %s19, 1
      %s25 = ssub.s32 %s19, 2
      %s26 = sadd.s32 %s19, 1
      %s27 = ssub.s32 %s19, %s26
      %p28 = scmp.eq.s32.totalorder %s27, 0
      %s30 = sadd.s32 %s29, 1
      %s31 = scalar_select %p28, %s29, %s30
      %p34 = pneg %p28
      %p35 = scmp.eq.s32.totalorder %s19, 1
      %p36 = por %p34, %p35
      %p37 = scmp.ne.s32.totalorder %s29, %s32
      %p38 = scmp.eq.s32.totalorder %s19, 0
      %p39 = por %p37, %p38
      %p40 = scmp.ne.s32.totalorder %s29, %s32
      %p41 = scmp.eq.s32.totalorder %s24, 1
      %p42 = por %p40, %p41
      %p43 = scmp.ne.s32.totalorder %s32, %s33
      %p44 = scmp.eq.s32.totalorder %s24, 0
      %p45 = por %p43, %p44
      %p46 = scmp.ne.s32.totalorder %s32, %s33
      %p47 = scmp.eq.s32.totalorder %s25, 1
      %p48 = por %p46, %p47
      %p50 = scmp.ne.s32.totalorder %s33, %s49
      %p51 = scmp.eq.s32.totalorder %s25, 0
      %p52 = por %p50, %p51
      %s54 = sadd.s32 %s53, 1
      %p57 = scmp.eq.s32.totalorder %s19, 1
      %p58 = scmp.ne.s32.totalorder %s53, %s55
      %p59 = scmp.eq.s32.totalorder %s19, 0
      %p60 = por %p58, %p59
      %p61 = scmp.ne.s32.totalorder %s53, %s55
      %p62 = scmp.eq.s32.totalorder %s24, 1
      %p63 = por %p61, %p62
      %p64 = scmp.ne.s32.totalorder %s55, %s56
      %p65 = scmp.eq.s32.totalorder %s24, 0
      %p66 = por %p64, %p65
      %p67 = scmp.ne.s32.totalorder %s55, %s56
      %p68 = scmp.eq.s32.totalorder %s25, 1
      %p69 = por %p67, %p68
      %p71 = scmp.ne.s32.totalorder %s56, %s70
      %p72 = scmp.eq.s32.totalorder %s25, 0
      %p73 = por %p71, %p72
      %s75 = sadd.s32 %s74, 1
      %p78 = scmp.eq.s32.totalorder %s19, 1
      %p79 = scmp.ne.s32.totalorder %s74, %s76
      %p80 = scmp.eq.s32.totalorder %s19, 0
      %p81 = por %p79, %p80
      %p82 = scmp.ne.s32.totalorder %s74, %s76
      %p83 = scmp.eq.s32.totalorder %s24, 1
      %p84 = por %p82, %p83
      %p85 = scmp.ne.s32.totalorder %s76, %s77
      %p86 = scmp.eq.s32.totalorder %s24, 0
      %p87 = por %p85, %p86
      %p88 = scmp.ne.s32.totalorder %s76, %s77
      %p89 = scmp.eq.s32.totalorder %s25, 1
      %p90 = por %p88, %p89
      %p92 = scmp.ne.s32.totalorder %s77, %s91
      %p93 = scmp.eq.s32.totalorder %s25, 0
      %p94 = por %p92, %p93
      %s96 = sadd.s32 %s95, 1
      %p99 = scmp.eq.s32.totalorder %s19, 1
      %p100 = scmp.ne.s32.totalorder %s95, %s97
      %p101 = scmp.eq.s32.totalorder %s19, 0
      %p102 = por %p100, %p101
      %p103 = scmp.ne.s32.totalorder %s95, %s97
      %p104 = scmp.eq.s32.totalorder %s24, 1
      %p105 = por %p103, %p104
      %p106 = scmp.ne.s32.totalorder %s97, %s98
      %p107 = scmp.eq.s32.totalorder %s24, 0
      %p108 = por %p106, %p107
      %p109 = scmp.ne.s32.totalorder %s97, %s98
      %p110 = scmp.eq.s32.totalorder %s25, 1
      %p111 = por %p109, %p110
      %p113 = scmp.ne.s32.totalorder %s98, %s112
      %p114 = scmp.eq.s32.totalorder %s25, 0
      %p115 = por %p113, %p114
      %s117 = sadd.s32 %s116, 1
      %p120 = scmp.eq.s32.totalorder %s19, 1
      %p121 = scmp.ne.s32.totalorder %s116, %s118
      %p122 = scmp.eq.s32.totalorder %s19, 0
      %p123 = por %p121, %p122
      %p124 = scmp.ne.s32.totalorder %s116, %s118
      %p125 = scmp.eq.s32.totalorder %s24, 1
      %p126 = por %p124, %p125
      %p127 = scmp.ne.s32.totalorder %s118, %s119
      %p128 = scmp.eq.s32.totalorder %s24, 0
      %p129 = por %p127, %p128
      %p130 = scmp.ne.s32.totalorder %s118, %s119
      %p131 = scmp.eq.s32.totalorder %s25, 1
      %p132 = por %p130, %p131
      %p134 = scmp.ne.s32.totalorder %s119, %s133
      %p135 = scmp.eq.s32.totalorder %s25, 0
      %p136 = por %p134, %p135
      %s137 = ssub.s32 %s19, %s26
      %p138 = scmp.eq.s32.totalorder %s137, 0
      %s140 = sadd.s32 %s139, 1
      %s141 = scalar_select %p138, %s139, %s140
      %p144 = pneg %p138
      %p145 = scmp.eq.s32.totalorder %s19, 1
      %p146 = por %p144, %p145
      %p147 = scmp.ne.s32.totalorder %s139, %s142
      %p148 = scmp.eq.s32.totalorder %s19, 0
      %p149 = por %p147, %p148
      %p150 = scmp.ne.s32.totalorder %s139, %s142
      %p151 = scmp.eq.s32.totalorder %s24, 1
      %p152 = por %p150, %p151
      %p153 = scmp.ne.s32.totalorder %s142, %s143
      %p154 = scmp.eq.s32.totalorder %s24, 0
      %p155 = por %p153, %p154
      %p156 = scmp.ne.s32.totalorder %s142, %s143
      %p157 = scmp.eq.s32.totalorder %s25, 1
      %p158 = por %p156, %p157
      %p160 = scmp.ne.s32.totalorder %s143, %s159
      %p161 = scmp.eq.s32.totalorder %s25, 0
      %p162 = por %p160, %p161
      %p163 = scmp.le.s32.totalorder 1, %s19
      %p164 = scmp.lt.s32.totalorder %s19, 3
      %p165 = pnand %p163, %p164
      %p166 = pneg %p165
      // Predicated region
      $region9: #{tpu_custom_call.1} parent=5 // pred_check
        _
      $region10: #{tpu_custom_call.1} parent=5 // pred_check_branch
        %168 = sbr.rel (%p165) target = $region12
      $region11: #{tpu_custom_call.1} parent=5 // pred_region
        %s169 = ssub.s32 %s19, 1
        // Predicated region
        $region13: #{tpu_custom_call.1} parent=11 // pred_check
          %p170 = pneg %p66
        $region14: #{tpu_custom_call.1} parent=11 // pred_check_branch
          %172 = sbr.rel (%p170) target = $region16
        $region15: #{tpu_custom_call.1} parent=11 // pred_region
          %174 = vsyncadd [#allocation8], 0
          %s175 = sshll.u32 %s1, 4
          %s176 = int_to_ptr.hbm [resolvable:$true] %s175
          %s177 = sshll.u32 [#allocation7], 4
          %s178 = int_to_ptr.vmem [resolvable:$true] %s177
          %183 = dma.hbm_to_vmem [thread:$0]  %s176, 3072, %s178, [#allocation8], 192, 192, 12
        $region16: #{tpu_custom_call.1} parent=11 // pred_fallthru
          _
        // Predicated region
        $region17: #{tpu_custom_call.1} parent=11 // pred_check
          %p184 = pneg %p87
        $region18: #{tpu_custom_call.1} parent=11 // pred_check_branch
          %186 = sbr.rel (%p184) target = $region20
        $region19: #{tpu_custom_call.1} parent=11 // pred_region
          %188 = vsyncadd [#allocation8], 0
          %s190 = sshll.u32 %s2, 4
          %s191 = int_to_ptr.hbm [resolvable:$true] %s190
          %s192 = sshll.u32 [#allocation9], 4
          %s193 = int_to_ptr.vmem [resolvable:$true] %s192
          %195 = dma.hbm_to_vmem [thread:$0]  %s191, 48, %s193, [#allocation8]
        $region20: #{tpu_custom_call.1} parent=11 // pred_fallthru
          _
        // Predicated region
        $region21: #{tpu_custom_call.1} parent=11 // pred_check
          %p196 = pneg %p108
        $region22: #{tpu_custom_call.1} parent=11 // pred_check_branch
          %198 = sbr.rel (%p196) target = $region24
        $region23: #{tpu_custom_call.1} parent=11 // pred_region
          %200 = vsyncadd [#allocation11], 0
          %s201 = sshll.u32 %s3, 4
          %s202 = int_to_ptr.hbm [resolvable:$true] %s201
          %s203 = sshll.u32 [#allocation10], 4
          %s204 = int_to_ptr.vmem [resolvable:$true] %s203
          %209 = dma.hbm_to_vmem [thread:$0]  %s202, 1024, %s204, [#allocation11], 64, 64, 4
        $region24: #{tpu_custom_call.1} parent=11 // pred_fallthru
          _
        // Predicated region
        $region25: #{tpu_custom_call.1} parent=11 // pred_check
          %p210 = pneg %p129
        $region26: #{tpu_custom_call.1} parent=11 // pred_check_branch
          %212 = sbr.rel (%p210) target = $region28
        $region27: #{tpu_custom_call.1} parent=11 // pred_region
          _
        $region28: #{tpu_custom_call.1} parent=11 // pred_fallthru
          _
      $region12: #{tpu_custom_call.1} parent=5 // pred_fallthru
        _
      %p213 = scmp.lt.s32.totalorder %s19, 2
      // Predicated region
      $region29: #{tpu_custom_call.1} parent=5 // pred_check
        %p214 = pneg %p213
      $region30: #{tpu_custom_call.1} parent=5 // pred_check_branch
        %216 = sbr.rel (%p214) target = $region32
      $region31: #{tpu_custom_call.1} parent=5 // pred_region
        // Predicated region
        $region33: #{tpu_custom_call.1} parent=31 // pred_check
          %p217 = pneg %p39
        $region34: #{tpu_custom_call.1} parent=31 // pred_check_branch
          %219 = sbr.rel (%p217) target = $region36
        $region35: #{tpu_custom_call.1} parent=31 // pred_region
          %s220 = sand.u32 %s29, 1
          %s221 = scalar_lea.sflag [#allocation5], %s220
          %s222 = sand.u32 %s29, 1
          %s223 = smul.addr %s222, 128
          %s224 = scalar_lea.vmem [#allocation4], %s223
          %226 = vsyncadd %s221, 0
          %s227 = smul.addr %s19, 16
          %s228 = smul.addr %s227, 8
          %s229 = scalar_lea.hbm %s0, %s228
          %s230 = sshll.u32 %s229, 4
          %s231 = int_to_ptr.hbm [resolvable:$true] %s230
          %s232 = sshll.u32 %s224, 4
          %s233 = int_to_ptr.vmem [resolvable:$true] %s232
          %238 = dma.hbm_to_vmem [thread:$0]  %s231, 2048, %s233, %s221, 128, 128, 8
        $region36: #{tpu_custom_call.1} parent=31 // pred_fallthru
          _
      $region32: #{tpu_custom_call.1} parent=5 // pred_fallthru
        _
      %p239 = scmp.le.s32.totalorder 1, %s19
      %p240 = scmp.lt.s32.totalorder %s19, 3
      %p241 = pnand %p239, %p240
      %p242 = pneg %p241
      // Predicated region
      $region37: #{tpu_custom_call.1} parent=5 // pred_check
        _
      $region38: #{tpu_custom_call.1} parent=5 // pred_check_branch
        %244 = sbr.rel (%p241) target = $region40
      $region39: #{tpu_custom_call.1} parent=5 // pred_region
        %s245 = ssub.s32 %s19, 1
        %s246 = sand.u32 %s32, 1
        %s247 = scalar_lea.sflag [#allocation5], %s246
        %s248 = sand.u32 %s32, 1
        %s249 = smul.addr %s248, 128
        %s250 = scalar_lea.vmem [#allocation4], %s249
        // Predicated region
        $region41: #{tpu_custom_call.1} parent=39 // pred_check
          %p251 = pneg %p45
        $region42: #{tpu_custom_call.1} parent=39 // pred_check_branch
          %253 = sbr.rel (%p251) target = $region44
        $region43: #{tpu_custom_call.1} parent=39 // pred_region
          %255 = dma.done %s247, 2048
        $region44: #{tpu_custom_call.1} parent=39 // pred_fallthru
          _
        // Predicated region
        $region45: #{tpu_custom_call.1} parent=39 // pred_check
          %p256 = pneg %p66
        $region46: #{tpu_custom_call.1} parent=39 // pred_check_branch
          %258 = sbr.rel (%p256) target = $region48
        $region47: #{tpu_custom_call.1} parent=39 // pred_region
          %260 = dma.done [#allocation8], 3072
        $region48: #{tpu_custom_call.1} parent=39 // pred_fallthru
          _
        // Predicated region
        $region49: #{tpu_custom_call.1} parent=39 // pred_check
          %p261 = pneg %p87
        $region50: #{tpu_custom_call.1} parent=39 // pred_check_branch
          %263 = sbr.rel (%p261) target = $region52
        $region51: #{tpu_custom_call.1} parent=39 // pred_region
          %265 = dma.done [#allocation8], 48
        $region52: #{tpu_custom_call.1} parent=39 // pred_fallthru
          _
        // Predicated region
        $region53: #{tpu_custom_call.1} parent=39 // pred_check
          %p266 = pneg %p108
        $region54: #{tpu_custom_call.1} parent=39 // pred_check_branch
          %268 = sbr.rel (%p266) target = $region56
        $region55: #{tpu_custom_call.1} parent=39 // pred_region
          %270 = dma.done [#allocation11], 1024
        $region56: #{tpu_custom_call.1} parent=39 // pred_fallthru
          _
        %s271 = sand.u32 %s32, 1
        %s272 = scalar_lea.sflag [#allocation5], %s271
        %s273 = sand.u32 %s32, 1
        %s274 = smul.addr %s273, 128
        %s275 = scalar_lea.vmem [#allocation4], %s274
        %p276 = pneg %p45
        %p277 = pneg %p42
        %p278 = pneg %p66
        %p279 = pneg %p63
        %p280 = pneg %p87
        %p281 = pneg %p84
        %p282 = pneg %p108
        %p283 = pneg %p105
        %p284 = pneg %p129
        %p285 = pneg %p126
        %p286 = pneg %p155
        %p287 = pneg %p152
        %s288 = sand.u32 %s142, 1
        %s289 = scalar_lea.sflag [#allocation6], %s288
        %s290 = sand.u32 %s142, 1
        %s291 = smul.addr %s290, 128
        %s292 = scalar_lea.vmem [#allocation12], %s291
        %v294 = vld [vmem:[%s250] sm:$0xff]
        %v295 = vld [vmem:[%s250 + $0x8] sm:$0xff]
        %v296 = vld [vmem:[%s250 + $0x10] sm:$0xff]
        %v297 = vld [vmem:[%s250 + $0x18] sm:$0xff]
        %v298 = vld [vmem:[%s250 + $0x20] sm:$0xff]
        %v299 = vld [vmem:[%s250 + $0x28] sm:$0xff]
        %v300 = vld [vmem:[%s250 + $0x30] sm:$0xff]
        %v301 = vld [vmem:[%s250 + $0x38] sm:$0xff]
        %v302 = vld [vmem:[%s250 + $0x40] sm:$0xff]
        %v303 = vld [vmem:[%s250 + $0x48] sm:$0xff]
        %v304 = vld [vmem:[%s250 + $0x50] sm:$0xff]
        %v305 = vld [vmem:[%s250 + $0x58] sm:$0xff]
        %v306 = vld [vmem:[%s250 + $0x60] sm:$0xff]
        %v307 = vld [vmem:[%s250 + $0x68] sm:$0xff]
        %v308 = vld [vmem:[%s250 + $0x70] sm:$0xff]
        %v309 = vld [vmem:[%s250 + $0x78] sm:$0xff]
        %v310 = vpack.c.bf16 %v295, %v294
        %v311 = vpack.c.bf16 %v297, %v296
        %v312 = vpack.c.bf16 %v299, %v298
        %v313 = vpack.c.bf16 %v301, %v300
        %v314 = vpack.c.bf16 %v303, %v302
        %v315 = vpack.c.bf16 %v305, %v304
        %v316 = vpack.c.bf16 %v307, %v306
        %v317 = vpack.c.bf16 %v309, %v308
        %v318 = vld [vmem:[#allocation7] sm:$0xff]
        %v319 = vld [vmem:[#allocation7 + $0x8] sm:$0xf]
        %v320 = vld [vmem:[#allocation7 + $0xc] sm:$0xff]
        %v321 = vld [vmem:[#allocation7 + $0x14] sm:$0xf]
        %v322 = vld [vmem:[#allocation7 + $0x18] sm:$0xff]
        %v323 = vld [vmem:[#allocation7 + $0x20] sm:$0xf]
        %v324 = vld [vmem:[#allocation7 + $0x24] sm:$0xff]
        %v325 = vld [vmem:[#allocation7 + $0x2c] sm:$0xf]
        %v326 = vld [vmem:[#allocation7 + $0x30] sm:$0xff]
        %v327 = vld [vmem:[#allocation7 + $0x38] sm:$0xf]
        %v328 = vld [vmem:[#allocation7 + $0x3c] sm:$0xff]
        %v329 = vld [vmem:[#allocation7 + $0x44] sm:$0xf]
        %v330 = vld [vmem:[#allocation7 + $0x48] sm:$0xff]
        %v331 = vld [vmem:[#allocation7 + $0x50] sm:$0xf]
        %v332 = vld [vmem:[#allocation7 + $0x54] sm:$0xff]
        %v333 = vld [vmem:[#allocation7 + $0x5c] sm:$0xf]
        %v334 = vld [vmem:[#allocation7 + $0x60] sm:$0xff]
        %v335 = vld [vmem:[#allocation7 + $0x68] sm:$0xf]
        %v336 = vld [vmem:[#allocation7 + $0x6c] sm:$0xff]
        %v337 = vld [vmem:[#allocation7 + $0x74] sm:$0xf]
        %v338 = vld [vmem:[#allocation7 + $0x78] sm:$0xff]
        %v339 = vld [vmem:[#allocation7 + $0x80] sm:$0xf]
        %v340 = vld [vmem:[#allocation7 + $0x84] sm:$0xff]
        %v341 = vld [vmem:[#allocation7 + $0x8c] sm:$0xf]
        %v342 = vld [vmem:[#allocation7 + $0x90] sm:$0xff]
        %v343 = vld [vmem:[#allocation7 + $0x98] sm:$0xf]
        %v344 = vld [vmem:[#allocation7 + $0x9c] sm:$0xff]
        %v345 = vld [vmem:[#allocation7 + $0xa4] sm:$0xf]
        %v346 = vld [vmem:[#allocation7 + $0xa8] sm:$0xff]
        %v347 = vld [vmem:[#allocation7 + $0xb0] sm:$0xf]
        %v348 = vld [vmem:[#allocation7 + $0xb4] sm:$0xff]
        %v349 = vld [vmem:[#allocation7 + $0xbc] sm:$0xf]
        %v350 = vld [vmem:[#allocation9] sm:$0x7]
        %v352 = vperm.slane %v350, 0
        %v353 = vperm.slane %v350, 1
        %v354 = vperm.slane %v350, 2
        %v390 = vunpack.c.l.b16 %v318
        %v391 = vunpack.c.h.b16 %v318
        %v392 = vunpack.c.l.b16 %v319
        %v393 = vunpack.c.l.b16 %v320
        %v394 = vunpack.c.h.b16 %v320
        %v395 = vunpack.c.l.b16 %v321
        %v396 = vunpack.c.l.b16 %v322
        %v397 = vunpack.c.h.b16 %v322
        %v398 = vunpack.c.l.b16 %v323
        %v399 = vunpack.c.l.b16 %v324
        %v400 = vunpack.c.h.b16 %v324
        %v401 = vunpack.c.l.b16 %v325
        %v402 = vunpack.c.l.b16 %v326
        %v403 = vunpack.c.h.b16 %v326
        %v404 = vunpack.c.l.b16 %v327
        %v405 = vunpack.c.l.b16 %v328
        %v406 = vunpack.c.h.b16 %v328
        %v407 = vunpack.c.l.b16 %v329
        %v408 = vunpack.c.l.b16 %v330
        %v409 = vunpack.c.h.b16 %v330
        %v410 = vunpack.c.l.b16 %v331
        %v411 = vunpack.c.l.b16 %v332
        %v412 = vunpack.c.h.b16 %v332
        %v413 = vunpack.c.l.b16 %v333
        %v414 = vunpack.c.l.b16 %v334
        %v415 = vunpack.c.h.b16 %v334
        %v416 = vunpack.c.l.b16 %v335
        %v417 = vunpack.c.l.b16 %v336
        %v418 = vunpack.c.h.b16 %v336
        %v419 = vunpack.c.l.b16 %v337
        %v420 = vunpack.c.l.b16 %v338
        %v421 = vunpack.c.h.b16 %v338
        %v422 = vunpack.c.l.b16 %v339
        %v423 = vunpack.c.l.b16 %v340
        %v424 = vunpack.c.h.b16 %v340
        %v425 = vunpack.c.l.b16 %v341
        %v426 = vunpack.c.l.b16 %v342
        %v427 = vunpack.c.h.b16 %v342
        %v428 = vunpack.c.l.b16 %v343
        %v429 = vunpack.c.l.b16 %v344
        %v430 = vunpack.c.h.b16 %v344
        %v431 = vunpack.c.l.b16 %v345
        %v432 = vunpack.c.l.b16 %v346
        %v433 = vunpack.c.h.b16 %v346
        %v434 = vunpack.c.l.b16 %v347
        %v435 = vunpack.c.l.b16 %v348
        %v436 = vunpack.c.h.b16 %v348
        %v437 = vunpack.c.l.b16 %v349
        %v438 = vpack.c.b16 %v393, %v390
        %v439 = vpack.c.b16 %v394, %v391
        %v440 = vpack.c.b16 %v395, %v392
        %v441 = vpack.c.b16 %v399, %v396
        %v442 = vpack.c.b16 %v400, %v397
        %v443 = vpack.c.b16 %v401, %v398
        %v444 = vpack.c.b16 %v405, %v402
        %v445 = vpack.c.b16 %v406, %v403
        %v446 = vpack.c.b16 %v407, %v404
        %v447 = vpack.c.b16 %v411, %v408
        %v448 = vpack.c.b16 %v412, %v409
        %v449 = vpack.c.b16 %v413, %v410
        %v450 = vpack.c.b16 %v417, %v414
        %v451 = vpack.c.b16 %v418, %v415
        %v452 = vpack.c.b16 %v419, %v416
        %v453 = vpack.c.b16 %v423, %v420
        %v454 = vpack.c.b16 %v424, %v421
        %v455 = vpack.c.b16 %v425, %v422
        %v456 = vpack.c.b16 %v429, %v426
        %v457 = vpack.c.b16 %v430, %v427
        %v458 = vpack.c.b16 %v431, %v428
        %v459 = vpack.c.b16 %v435, %v432
        %v460 = vpack.c.b16 %v436, %v433
        %v461 = vpack.c.b16 %v437, %v434
        %486 = vmatpush.bf16.msra.mxu0 %v459
        %487 = vmatpush.bf16.msra.mxu0 %v456
        %488 = vmatpush.bf16.msra.mxu0 %v453
        %489 = vmatpush.bf16.msra.mxu0 %v450
        %490 = vmatpush.bf16.msra.mxu0 %v447
        %491 = vmatpush.bf16.msra.mxu0 %v444
        %492 = vmatpush.bf16.msra.mxu0 %v441
        %493 = vmatpush.bf16.msra.mxu0 %v438
        %494 = vmatmul.bf16.gmra.mxu0 %v310
        %v495 = vpop.f32.mrf.mxu0
        %v496 = vadd.f32 %v352, %v495
        %v497 = vpop.f32.mrf.mxu0
        %v498 = vadd.f32 %v352, %v497
        %499 = vmatmul.bf16.gmra.mxu0 %v311
        %v500 = vpop.f32.mrf.mxu0
        %v501 = vadd.f32 %v352, %v500
        %v502 = vpop.f32.mrf.mxu0
        %v503 = vadd.f32 %v352, %v502
        %504 = vmatmul.bf16.gmra.mxu0 %v312
        %v505 = vpop.f32.mrf.mxu0
        %v506 = vadd.f32 %v352, %v505
        %v507 = vpop.f32.mrf.mxu0
        %v508 = vadd.f32 %v352, %v507
        %509 = vmatmul.bf16.gmra.mxu0 %v313
        %v510 = vpop.f32.mrf.mxu0
        %v511 = vadd.f32 %v352, %v510
        %v512 = vpop.f32.mrf.mxu0
        %v513 = vadd.f32 %v352, %v512
        %514 = vmatmul.bf16.gmra.mxu0 %v314
        %v515 = vpop.f32.mrf.mxu0
        %v516 = vadd.f32 %v352, %v515
        %v517 = vpop.f32.mrf.mxu0
        %v518 = vadd.f32 %v352, %v517
        %519 = vmatmul.bf16.gmra.mxu0 %v315
        %v520 = vpop.f32.mrf.mxu0
        %v521 = vadd.f32 %v352, %v520
        %v522 = vpop.f32.mrf.mxu0
        %v523 = vadd.f32 %v352, %v522
        %524 = vmatmul.bf16.gmra.mxu0 %v316
        %v525 = vpop.f32.mrf.mxu0
        %v526 = vadd.f32 %v352, %v525
        %v527 = vpop.f32.mrf.mxu0
        %v528 = vadd.f32 %v352, %v527
        %529 = vmatmul.bf16.gmra.mxu0 %v317
        %v530 = vpop.f32.mrf.mxu0
        %v531 = vadd.f32 %v352, %v530
        %v532 = vpop.f32.mrf.mxu0
        %v533 = vadd.f32 %v352, %v532
        %534 = vdwg.mxu0
        %535 = vmatpush.bf16.msra.mxu0 %v460
        %536 = vmatpush.bf16.msra.mxu0 %v457
        %537 = vmatpush.bf16.msra.mxu0 %v454
        %538 = vmatpush.bf16.msra.mxu0 %v451
        %539 = vmatpush.bf16.msra.mxu0 %v448
        %540 = vmatpush.bf16.msra.mxu0 %v445
        %541 = vmatpush.bf16.msra.mxu0 %v442
        %542 = vmatpush.bf16.msra.mxu0 %v439
        %543 = vmatmul.bf16.gmra.mxu0 %v310
        %v544 = vpop.f32.mrf.mxu0
        %v545 = vadd.f32 %v353, %v544
        %v546 = vpop.f32.mrf.mxu0
        %v547 = vadd.f32 %v353, %v546
        %548 = vmatmul.bf16.gmra.mxu0 %v311
        %v549 = vpop.f32.mrf.mxu0
        %v550 = vadd.f32 %v353, %v549
        %v551 = vpop.f32.mrf.mxu0
        %v552 = vadd.f32 %v353, %v551
        %553 = vmatmul.bf16.gmra.mxu0 %v312
        %v554 = vpop.f32.mrf.mxu0
        %v555 = vadd.f32 %v353, %v554
        %v556 = vpop.f32.mrf.mxu0
        %v557 = vadd.f32 %v353, %v556
        %558 = vmatmul.bf16.gmra.mxu0 %v313
        %v559 = vpop.f32.mrf.mxu0
        %v560 = vadd.f32 %v353, %v559
        %v561 = vpop.f32.mrf.mxu0
        %v562 = vadd.f32 %v353, %v561
        %563 = vmatmul.bf16.gmra.mxu0 %v314
        %v564 = vpop.f32.mrf.mxu0
        %v565 = vadd.f32 %v353, %v564
        %v566 = vpop.f32.mrf.mxu0
        %v567 = vadd.f32 %v353, %v566
        %568 = vmatmul.bf16.gmra.mxu0 %v315
        %v569 = vpop.f32.mrf.mxu0
        %v570 = vadd.f32 %v353, %v569
        %v571 = vpop.f32.mrf.mxu0
        %v572 = vadd.f32 %v353, %v571
        %573 = vmatmul.bf16.gmra.mxu0 %v316
        %v574 = vpop.f32.mrf.mxu0
        %v575 = vadd.f32 %v353, %v574
        %v576 = vpop.f32.mrf.mxu0
        %v577 = vadd.f32 %v353, %v576
        %578 = vmatmul.bf16.gmra.mxu0 %v317
        %v579 = vpop.f32.mrf.mxu0
        %v580 = vadd.f32 %v353, %v579
        %v581 = vpop.f32.mrf.mxu0
        %v582 = vadd.f32 %v353, %v581
        %583 = vdwg.mxu0
        %584 = vmatpush.bf16.msra.mxu0 %v461
        %585 = vmatpush.bf16.msra.mxu0 %v458
        %586 = vmatpush.bf16.msra.mxu0 %v455
        %587 = vmatpush.bf16.msra.mxu0 %v452
        %588 = vmatpush.bf16.msra.mxu0 %v449
        %589 = vmatpush.bf16.msra.mxu0 %v446
        %590 = vmatpush.bf16.msra.mxu0 %v443
        %591 = vmatpush.bf16.msra.mxu0 %v440
        %592 = vmatmul.bf16.gmra.mxu0 %v310
        %v593 = vpop.f32.mrf.mxu0
        %v594 = vadd.f32 %v354, %v593
        %v595 = vpop.f32.mrf.mxu0
        %v596 = vadd.f32 %v354, %v595
        %597 = vmatmul.bf16.gmra.mxu0 %v311
        %v598 = vpop.f32.mrf.mxu0
        %v599 = vadd.f32 %v354, %v598
        %v600 = vpop.f32.mrf.mxu0
        %v601 = vadd.f32 %v354, %v600
        %602 = vmatmul.bf16.gmra.mxu0 %v312
        %v603 = vpop.f32.mrf.mxu0
        %v604 = vadd.f32 %v354, %v603
        %v605 = vpop.f32.mrf.mxu0
        %v606 = vadd.f32 %v354, %v605
        %607 = vmatmul.bf16.gmra.mxu0 %v313
        %v608 = vpop.f32.mrf.mxu0
        %v609 = vadd.f32 %v354, %v608
        %v610 = vpop.f32.mrf.mxu0
        %v611 = vadd.f32 %v354, %v610
        %612 = vmatmul.bf16.gmra.mxu0 %v314
        %v613 = vpop.f32.mrf.mxu0
        %v614 = vadd.f32 %v354, %v613
        %v615 = vpop.f32.mrf.mxu0
        %v616 = vadd.f32 %v354, %v615
        %617 = vmatmul.bf16.gmra.mxu0 %v315
        %v618 = vpop.f32.mrf.mxu0
        %v619 = vadd.f32 %v354, %v618
        %v620 = vpop.f32.mrf.mxu0
        %v621 = vadd.f32 %v354, %v620
        %622 = vmatmul.bf16.gmra.mxu0 %v316
        %v623 = vpop.f32.mrf.mxu0
        %v624 = vadd.f32 %v354, %v623
        %v625 = vpop.f32.mrf.mxu0
        %v626 = vadd.f32 %v354, %v625
        %627 = vmatmul.bf16.gmra.mxu0 %v317
        %v628 = vpop.f32.mrf.mxu0
        %v629 = vadd.f32 %v354, %v628
        %v630 = vpop.f32.mrf.mxu0
        %v631 = vadd.f32 %v354, %v630
        %632 = vdwg.mxu0
        %633 = vxpose.xlu0.b32.start [1/16] %v545, 128
        %634 = vxpose.xlu0.b32.cont [2/16] %v547, 128
        %635 = vxpose.xlu0.b32.cont [3/16] %v550, 128
        %636 = vxpose.xlu0.b32.cont [4/16] %v552, 128
        %637 = vxpose.xlu0.b32.cont [5/16] %v555, 128
        %638 = vxpose.xlu0.b32.cont [6/16] %v557, 128
        %639 = vxpose.xlu0.b32.cont [7/16] %v560, 128
        %640 = vxpose.xlu0.b32.cont [8/16] %v562, 128
        %641 = vxpose.xlu0.b32.cont [9/16] %v565, 128
        %642 = vxpose.xlu0.b32.cont [10/16] %v567, 128
        %643 = vxpose.xlu0.b32.cont [11/16] %v570, 128
        %644 = vxpose.xlu0.b32.cont [12/16] %v572, 128
        %645 = vxpose.xlu0.b32.cont [13/16] %v575, 128
        %646 = vxpose.xlu0.b32.cont [14/16] %v577, 128
        %647 = vxpose.xlu0.b32.cont [15/16] %v580, 128
        %648 = vxpose.xlu0.b32.end [16/16] %v582, 128
        %v649 = vpop.trf.xlu0
        %v650 = vpop.trf.xlu0
        %v651 = vpop.trf.xlu0
        %v652 = vpop.trf.xlu0
        %v653 = vpop.trf.xlu0
        %v654 = vpop.trf.xlu0
        %v655 = vpop.trf.xlu0
        %v656 = vpop.trf.xlu0
        %v657 = vpop.trf.xlu0
        %v658 = vpop.trf.xlu0
        %v659 = vpop.trf.xlu0
        %v660 = vpop.trf.xlu0
        %v661 = vpop.trf.xlu0
        %v662 = vpop.trf.xlu0
        %v663 = vpop.trf.xlu0
        %v664 = vpop.trf.xlu0
        %v665 = vpack.c.bf16 %v649, %v649
        %v666 = vpack.c.bf16 %v650, %v650
        %v667 = vpack.c.bf16 %v651, %v651
        %v668 = vpack.c.bf16 %v652, %v652
        %v669 = vpack.c.bf16 %v653, %v653
        %v670 = vpack.c.bf16 %v654, %v654
        %v671 = vpack.c.bf16 %v655, %v655
        %v672 = vpack.c.bf16 %v656, %v656
        %v673 = vpack.c.bf16 %v657, %v657
        %v674 = vpack.c.bf16 %v658, %v658
        %v675 = vpack.c.bf16 %v659, %v659
        %v676 = vpack.c.bf16 %v660, %v660
        %v677 = vpack.c.bf16 %v661, %v661
        %v678 = vpack.c.bf16 %v662, %v662
        %v679 = vpack.c.bf16 %v663, %v663
        %v680 = vpack.c.bf16 %v664, %v664
        %v681 = vpack.c.bf16 %v545, %v496
        %v682 = vpack.c.bf16 %v594, %v594
        %v683 = vpack.c.bf16 %v547, %v498
        %v684 = vpack.c.bf16 %v596, %v596
        %v685 = vpack.c.bf16 %v550, %v501
        %v686 = vpack.c.bf16 %v599, %v599
        %v687 = vpack.c.bf16 %v552, %v503
        %v688 = vpack.c.bf16 %v601, %v601
        %v689 = vpack.c.bf16 %v555, %v506
        %v690 = vpack.c.bf16 %v604, %v604
        %v691 = vpack.c.bf16 %v557, %v508
        %v692 = vpack.c.bf16 %v606, %v606
        %v693 = vpack.c.bf16 %v560, %v511
        %v694 = vpack.c.bf16 %v609, %v609
        %v695 = vpack.c.bf16 %v562, %v513
        %v696 = vpack.c.bf16 %v611, %v611
        %v697 = vpack.c.bf16 %v565, %v516
        %v698 = vpack.c.bf16 %v614, %v614
        %v699 = vpack.c.bf16 %v567, %v518
        %v700 = vpack.c.bf16 %v616, %v616
        %v701 = vpack.c.bf16 %v570, %v521
        %v702 = vpack.c.bf16 %v619, %v619
        %v703 = vpack.c.bf16 %v572, %v523
        %v704 = vpack.c.bf16 %v621, %v621
        %v705 = vpack.c.bf16 %v575, %v526
        %v706 = vpack.c.bf16 %v624, %v624
        %v707 = vpack.c.bf16 %v577, %v528
        %v708 = vpack.c.bf16 %v626, %v626
        %v709 = vpack.c.bf16 %v580, %v531
        %v710 = vpack.c.bf16 %v629, %v629
        %v711 = vpack.c.bf16 %v582, %v533
        %v712 = vpack.c.bf16 %v631, %v631
        %713 = vst [vmem:[#allocation2] sm:$0xff] %v681
        %714 = vst [vmem:[#allocation2 + $0x8] sm:$0xf] %v682
        %715 = vst [vmem:[#allocation2 + $0xc] sm:$0xff] %v683
        %716 = vst [vmem:[#allocation2 + $0x14] sm:$0xf] %v684
        %717 = vst [vmem:[#allocation2 + $0x18] sm:$0xff] %v685
        %718 = vst [vmem:[#allocation2 + $0x20] sm:$0xf] %v686
        %719 = vst [vmem:[#allocation2 + $0x24] sm:$0xff] %v687
        %720 = vst [vmem:[#allocation2 + $0x2c] sm:$0xf] %v688
        %721 = vst [vmem:[#allocation2 + $0x30] sm:$0xff] %v689
        %722 = vst [vmem:[#allocation2 + $0x38] sm:$0xf] %v690
        %723 = vst [vmem:[#allocation2 + $0x3c] sm:$0xff] %v691
        %724 = vst [vmem:[#allocation2 + $0x44] sm:$0xf] %v692
        %725 = vst [vmem:[#allocation2 + $0x48] sm:$0xff] %v693
        %726 = vst [vmem:[#allocation2 + $0x50] sm:$0xf] %v694
        %727 = vst [vmem:[#allocation2 + $0x54] sm:$0xff] %v695
        %728 = vst [vmem:[#allocation2 + $0x5c] sm:$0xf] %v696
        %729 = vst [vmem:[#allocation2 + $0x60] sm:$0xff] %v697
        %730 = vst [vmem:[#allocation2 + $0x68] sm:$0xf] %v698
        %731 = vst [vmem:[#allocation2 + $0x6c] sm:$0xff] %v699
        %732 = vst [vmem:[#allocation2 + $0x74] sm:$0xf] %v700
        %733 = vst [vmem:[#allocation2 + $0x78] sm:$0xff] %v701
        %734 = vst [vmem:[#allocation2 + $0x80] sm:$0xf] %v702
        %735 = vst [vmem:[#allocation2 + $0x84] sm:$0xff] %v703
        %736 = vst [vmem:[#allocation2 + $0x8c] sm:$0xf] %v704
        %737 = vst [vmem:[#allocation2 + $0x90] sm:$0xff] %v705
        %738 = vst [vmem:[#allocation2 + $0x98] sm:$0xf] %v706
        %739 = vst [vmem:[#allocation2 + $0x9c] sm:$0xff] %v707
        %740 = vst [vmem:[#allocation2 + $0xa4] sm:$0xf] %v708
        %741 = vst [vmem:[#allocation2 + $0xa8] sm:$0xff] %v709
        %742 = vst [vmem:[#allocation2 + $0xb0] sm:$0xf] %v710
        %743 = vst [vmem:[#allocation2 + $0xb4] sm:$0xff] %v711
        %744 = vst [vmem:[#allocation2 + $0xbc] sm:$0xf] %v712
        %v745 = vld [vmem:[#allocation2] sm:$0xf]
        %v746 = vld [vmem:[#allocation2 + $0xc] sm:$0xf]
        %v747 = vld [vmem:[#allocation2 + $0x18] sm:$0xf]
        %v748 = vld [vmem:[#allocation2 + $0x24] sm:$0xf]
        %v749 = vld [vmem:[#allocation2 + $0x30] sm:$0xf]
        %v750 = vld [vmem:[#allocation2 + $0x3c] sm:$0xf]
        %v751 = vld [vmem:[#allocation2 + $0x48] sm:$0xf]
        %v752 = vld [vmem:[#allocation2 + $0x54] sm:$0xf]
        %v753 = vld [vmem:[#allocation2 + $0x60] sm:$0xf]
        %v754 = vld [vmem:[#allocation2 + $0x6c] sm:$0xf]
        %v755 = vld [vmem:[#allocation2 + $0x78] sm:$0xf]
        %v756 = vld [vmem:[#allocation2 + $0x84] sm:$0xf]
        %v757 = vld [vmem:[#allocation2 + $0x90] sm:$0xf]
        %v758 = vld [vmem:[#allocation2 + $0x9c] sm:$0xf]
        %v759 = vld [vmem:[#allocation2 + $0xa8] sm:$0xf]
        %v760 = vld [vmem:[#allocation2 + $0xb4] sm:$0xf]
        %v761 = vld [vmem:[#allocation2 + $0x8] sm:$0xf]
        %v762 = vld [vmem:[#allocation2 + $0x14] sm:$0xf]
        %v763 = vld [vmem:[#allocation2 + $0x20] sm:$0xf]
        %v764 = vld [vmem:[#allocation2 + $0x2c] sm:$0xf]
        %v765 = vld [vmem:[#allocation2 + $0x38] sm:$0xf]
        %v766 = vld [vmem:[#allocation2 + $0x44] sm:$0xf]
        %v767 = vld [vmem:[#allocation2 + $0x50] sm:$0xf]
        %v768 = vld [vmem:[#allocation2 + $0x5c] sm:$0xf]
        %v769 = vld [vmem:[#allocation2 + $0x68] sm:$0xf]
        %v770 = vld [vmem:[#allocation2 + $0x74] sm:$0xf]
        %v771 = vld [vmem:[#allocation2 + $0x80] sm:$0xf]
        %v772 = vld [vmem:[#allocation2 + $0x8c] sm:$0xf]
        %v773 = vld [vmem:[#allocation2 + $0x98] sm:$0xf]
        %v774 = vld [vmem:[#allocation2 + $0xa4] sm:$0xf]
        %v775 = vld [vmem:[#allocation2 + $0xb0] sm:$0xf]
        %v776 = vld [vmem:[#allocation2 + $0xbc] sm:$0xf]
        %v793 = vunpack.c.l.b16 %v745
        %v794 = vunpack.c.l.b16 %v746
        %v795 = vunpack.c.l.b16 %v747
        %v796 = vunpack.c.l.b16 %v748
        %v797 = vunpack.c.l.b16 %v749
        %v798 = vunpack.c.l.b16 %v750
        %v799 = vunpack.c.l.b16 %v751
        %v800 = vunpack.c.l.b16 %v752
        %v801 = vunpack.c.l.b16 %v753
        %v802 = vunpack.c.l.b16 %v754
        %v803 = vunpack.c.l.b16 %v755
        %v804 = vunpack.c.l.b16 %v756
        %v805 = vunpack.c.l.b16 %v757
        %v806 = vunpack.c.l.b16 %v758
        %v807 = vunpack.c.l.b16 %v759
        %v808 = vunpack.c.l.b16 %v760
        %v809 = vpack.c.b16 %v794, %v793
        %v810 = vpack.c.b16 %v796, %v795
        %v811 = vpack.c.b16 %v798, %v797
        %v812 = vpack.c.b16 %v800, %v799
        %v813 = vpack.c.b16 %v802, %v801
        %v814 = vpack.c.b16 %v804, %v803
        %v815 = vpack.c.b16 %v806, %v805
        %v816 = vpack.c.b16 %v808, %v807
        %v819 = vunpack.c.l.b16 %v665
        %v820 = vunpack.c.l.b16 %v666
        %v821 = vpack.c.b16 %v820, %v819
        %vm823 = vcmask 130048
        %v825 = vsel %vm823, %v809, 0
        %v828 = vsel %vm823, %v810, 0
        %v831 = vsel %vm823, %v811, 0
        %v834 = vsel %vm823, %v812, 0
        %v837 = vsel %vm823, %v813, 0
        %v840 = vsel %vm823, %v814, 0
        %v843 = vsel %vm823, %v815, 0
        %v846 = vsel %vm823, %v816, 0
        %848 = vmatpush.bf16.msra.mxu0 0
        %849 = vmatpush.bf16.msra.mxu0 0
        %850 = vmatpush.bf16.msra.mxu0 0
        %851 = vmatpush.bf16.msra.mxu0 0
        %852 = vmatpush.bf16.msra.mxu0 0
        %853 = vmatpush.bf16.msra.mxu0 0
        %854 = vmatpush.bf16.msra.mxu0 0
        %855 = vmatpush.bf16.msra.mxu0 %v821
        %856 = vmatmul.bf16.gmra.mxu0 %v825
        %v857 = vpop.f32.mrf.mxu0
        %v858 = vadd.f32 0.0, %v857
        %v859 = vpop.f32.mrf.mxu0
        %v860 = vadd.f32 0.0, %v859
        %861 = vmatmul.bf16.gmra.mxu0 %v828
        %v862 = vpop.f32.mrf.mxu0
        %v863 = vadd.f32 0.0, %v862
        %v864 = vpop.f32.mrf.mxu0
        %v865 = vadd.f32 0.0, %v864
        %866 = vmatmul.bf16.gmra.mxu0 %v831
        %v867 = vpop.f32.mrf.mxu0
        %v868 = vadd.f32 0.0, %v867
        %v869 = vpop.f32.mrf.mxu0
        %v870 = vadd.f32 0.0, %v869
        %871 = vmatmul.bf16.gmra.mxu0 %v834
        %v872 = vpop.f32.mrf.mxu0
        %v873 = vadd.f32 0.0, %v872
        %v874 = vpop.f32.mrf.mxu0
        %v875 = vadd.f32 0.0, %v874
        %876 = vmatmul.bf16.gmra.mxu0 %v837
        %v877 = vpop.f32.mrf.mxu0
        %v878 = vadd.f32 0.0, %v877
        %v879 = vpop.f32.mrf.mxu0
        %v880 = vadd.f32 0.0, %v879
        %881 = vmatmul.bf16.gmra.mxu0 %v840
        %v882 = vpop.f32.mrf.mxu0
        %v883 = vadd.f32 0.0, %v882
        %v884 = vpop.f32.mrf.mxu0
        %v885 = vadd.f32 0.0, %v884
        %886 = vmatmul.bf16.gmra.mxu0 %v843
        %v887 = vpop.f32.mrf.mxu0
        %v888 = vadd.f32 0.0, %v887
        %v889 = vpop.f32.mrf.mxu0
        %v890 = vadd.f32 0.0, %v889
        %891 = vmatmul.bf16.gmra.mxu0 %v846
        %v892 = vpop.f32.mrf.mxu0
        %v893 = vadd.f32 0.0, %v892
        %v894 = vpop.f32.mrf.mxu0
        %v895 = vadd.f32 0.0, %v894
        %896 = vdwg.mxu0
        %897 = vmax.xlane.f32.xlu0 %v858
        %v898 = vpop.xlane.xlu0 %897
        %899 = vmax.xlane.f32.xlu0 %v860
        %v900 = vpop.xlane.xlu0 %899
        %901 = vmax.xlane.f32.xlu0 %v863
        %v902 = vpop.xlane.xlu0 %901
        %903 = vmax.xlane.f32.xlu0 %v865
        %v904 = vpop.xlane.xlu0 %903
        %905 = vmax.xlane.f32.xlu0 %v868
        %v906 = vpop.xlane.xlu0 %905
        %907 = vmax.xlane.f32.xlu0 %v870
        %v908 = vpop.xlane.xlu0 %907
        %909 = vmax.xlane.f32.xlu0 %v873
        %v910 = vpop.xlane.xlu0 %909
        %911 = vmax.xlane.f32.xlu0 %v875
        %v912 = vpop.xlane.xlu0 %911
        %913 = vmax.xlane.f32.xlu0 %v878
        %v914 = vpop.xlane.xlu0 %913
        %915 = vmax.xlane.f32.xlu0 %v880
        %v916 = vpop.xlane.xlu0 %915
        %917 = vmax.xlane.f32.xlu0 %v883
        %v918 = vpop.xlane.xlu0 %917
        %919 = vmax.xlane.f32.xlu0 %v885
        %v920 = vpop.xlane.xlu0 %919
        %921 = vmax.xlane.f32.xlu0 %v888
        %v922 = vpop.xlane.xlu0 %921
        %923 = vmax.xlane.f32.xlu0 %v890
        %v924 = vpop.xlane.xlu0 %923
        %925 = vmax.xlane.f32.xlu0 %v893
        %v926 = vpop.xlane.xlu0 %925
        %927 = vmax.xlane.f32.xlu0 %v895
        %v928 = vpop.xlane.xlu0 %927
        %v929 = vsub.f32 %v858, %v898
        %v930 = vsub.f32 %v860, %v900
        %v931 = vsub.f32 %v863, %v902
        %v932 = vsub.f32 %v865, %v904
        %v933 = vsub.f32 %v868, %v906
        %v934 = vsub.f32 %v870, %v908
        %v935 = vsub.f32 %v873, %v910
        %v936 = vsub.f32 %v875, %v912
        %v937 = vsub.f32 %v878, %v914
        %v938 = vsub.f32 %v880, %v916
        %v939 = vsub.f32 %v883, %v918
        %v940 = vsub.f32 %v885, %v920
        %v941 = vsub.f32 %v888, %v922
        %v942 = vsub.f32 %v890, %v924
        %v943 = vsub.f32 %v893, %v926
        %v944 = vsub.f32 %v895, %v928
        %v945 = vmul.f32 %v929, 1.442695
        %v946 = vpow.pop %v945
        %v947 = vmul.f32 %v930, 1.442695
        %v948 = vpow.pop %v947
        %v949 = vmul.f32 %v931, 1.442695
        %v950 = vpow.pop %v949
        %v951 = vmul.f32 %v932, 1.442695
        %v952 = vpow.pop %v951
        %v953 = vmul.f32 %v933, 1.442695
        %v954 = vpow.pop %v953
        %v955 = vmul.f32 %v934, 1.442695
        %v956 = vpow.pop %v955
        %v957 = vmul.f32 %v935, 1.442695
        %v958 = vpow.pop %v957
        %v959 = vmul.f32 %v936, 1.442695
        %v960 = vpow.pop %v959
        %v961 = vmul.f32 %v937, 1.442695
        %v962 = vpow.pop %v961
        %v963 = vmul.f32 %v938, 1.442695
        %v964 = vpow.pop %v963
        %v965 = vmul.f32 %v939, 1.442695
        %v966 = vpow.pop %v965
        %v967 = vmul.f32 %v940, 1.442695
        %v968 = vpow.pop %v967
        %v969 = vmul.f32 %v941, 1.442695
        %v970 = vpow.pop %v969
        %v971 = vmul.f32 %v942, 1.442695
        %v972 = vpow.pop %v971
        %v973 = vmul.f32 %v943, 1.442695
        %v974 = vpow.pop %v973
        %v975 = vmul.f32 %v944, 1.442695
        %v976 = vpow.pop %v975
        %977 = vadd.xlane.f32.xlu0 %v946
        %v978 = vpop.xlane.xlu0 %977
        %979 = vadd.xlane.f32.xlu0 %v948
        %v980 = vpop.xlane.xlu0 %979
        %981 = vadd.xlane.f32.xlu0 %v950
        %v982 = vpop.xlane.xlu0 %981
        %983 = vadd.xlane.f32.xlu0 %v952
        %v984 = vpop.xlane.xlu0 %983
        %985 = vadd.xlane.f32.xlu0 %v954
        %v986 = vpop.xlane.xlu0 %985
        %987 = vadd.xlane.f32.xlu0 %v956
        %v988 = vpop.xlane.xlu0 %987
        %989 = vadd.xlane.f32.xlu0 %v958
        %v990 = vpop.xlane.xlu0 %989
        %991 = vadd.xlane.f32.xlu0 %v960
        %v992 = vpop.xlane.xlu0 %991
        %993 = vadd.xlane.f32.xlu0 %v962
        %v994 = vpop.xlane.xlu0 %993
        %995 = vadd.xlane.f32.xlu0 %v964
        %v996 = vpop.xlane.xlu0 %995
        %997 = vadd.xlane.f32.xlu0 %v966
        %v998 = vpop.xlane.xlu0 %997
        %999 = vadd.xlane.f32.xlu0 %v968
        %v1000 = vpop.xlane.xlu0 %999
        %1001 = vadd.xlane.f32.xlu0 %v970
        %v1002 = vpop.xlane.xlu0 %1001
        %1003 = vadd.xlane.f32.xlu0 %v972
        %v1004 = vpop.xlane.xlu0 %1003
        %1005 = vadd.xlane.f32.xlu0 %v974
        %v1006 = vpop.xlane.xlu0 %1005
        %1007 = vadd.xlane.f32.xlu0 %v976
        %v1008 = vpop.xlane.xlu0 %1007
        %v1009 = vpack.c.bf16 %v948, %v946
        %v1010 = vpack.c.bf16 %v952, %v950
        %v1011 = vpack.c.bf16 %v956, %v954
        %v1012 = vpack.c.bf16 %v960, %v958
        %v1013 = vpack.c.bf16 %v964, %v962
        %v1014 = vpack.c.bf16 %v968, %v966
        %v1015 = vpack.c.bf16 %v972, %v970
        %v1016 = vpack.c.bf16 %v976, %v974
        %v1033 = vunpack.c.l.b16 %v761
        %v1034 = vunpack.c.l.b16 %v762
        %v1035 = vunpack.c.l.b16 %v763
        %v1036 = vunpack.c.l.b16 %v764
        %v1037 = vunpack.c.l.b16 %v765
        %v1038 = vunpack.c.l.b16 %v766
        %v1039 = vunpack.c.l.b16 %v767
        %v1040 = vunpack.c.l.b16 %v768
        %v1041 = vunpack.c.l.b16 %v769
        %v1042 = vunpack.c.l.b16 %v770
        %v1043 = vunpack.c.l.b16 %v771
        %v1044 = vunpack.c.l.b16 %v772
        %v1045 = vunpack.c.l.b16 %v773
        %v1046 = vunpack.c.l.b16 %v774
        %v1047 = vunpack.c.l.b16 %v775
        %v1048 = vunpack.c.l.b16 %v776
        %v1049 = vpack.c.b16 %v1034, %v1033
        %v1050 = vpack.c.b16 %v1036, %v1035
        %v1051 = vpack.c.b16 %v1038, %v1037
        %v1052 = vpack.c.b16 %v1040, %v1039
        %v1053 = vpack.c.b16 %v1042, %v1041
        %v1054 = vpack.c.b16 %v1044, %v1043
        %v1055 = vpack.c.b16 %v1046, %v1045
        %v1056 = vpack.c.b16 %v1048, %v1047
        %1065 = vmatpush.bf16.msra.mxu0 %v1056
        %1066 = vmatpush.bf16.msra.mxu0 %v1055
        %1067 = vmatpush.bf16.msra.mxu0 %v1054
        %1068 = vmatpush.bf16.msra.mxu0 %v1053
        %1069 = vmatpush.bf16.msra.mxu0 %v1052
        %1070 = vmatpush.bf16.msra.mxu0 %v1051
        %1071 = vmatpush.bf16.msra.mxu0 %v1050
        %1072 = vmatpush.bf16.msra.mxu0 %v1049
        %1073 = vmatmul.bf16.gmra.mxu0 %v1009
        %v1074 = vpop.f32.mrf.mxu0
        %v1075 = vadd.f32 0.0, %v1074
        %v1076 = vpop.f32.mrf.mxu0
        %v1077 = vadd.f32 0.0, %v1076
        %1078 = vmatmul.bf16.gmra.mxu0 %v1010
        %v1079 = vpop.f32.mrf.mxu0
        %v1080 = vadd.f32 0.0, %v1079
        %v1081 = vpop.f32.mrf.mxu0
        %v1082 = vadd.f32 0.0, %v1081
        %1083 = vmatmul.bf16.gmra.mxu0 %v1011
        %v1084 = vpop.f32.mrf.mxu0
        %v1085 = vadd.f32 0.0, %v1084
        %v1086 = vpop.f32.mrf.mxu0
        %v1087 = vadd.f32 0.0, %v1086
        %1088 = vmatmul.bf16.gmra.mxu0 %v1012
        %v1089 = vpop.f32.mrf.mxu0
        %v1090 = vadd.f32 0.0, %v1089
        %v1091 = vpop.f32.mrf.mxu0
        %v1092 = vadd.f32 0.0, %v1091
        %1093 = vmatmul.bf16.gmra.mxu0 %v1013
        %v1094 = vpop.f32.mrf.mxu0
        %v1095 = vadd.f32 0.0, %v1094
        %v1096 = vpop.f32.mrf.mxu0
        %v1097 = vadd.f32 0.0, %v1096
        %1098 = vmatmul.bf16.gmra.mxu0 %v1014
        %v1099 = vpop.f32.mrf.mxu0
        %v1100 = vadd.f32 0.0, %v1099
        %v1101 = vpop.f32.mrf.mxu0
        %v1102 = vadd.f32 0.0, %v1101
        %1103 = vmatmul.bf16.gmra.mxu0 %v1015
        %v1104 = vpop.f32.mrf.mxu0
        %v1105 = vadd.f32 0.0, %v1104
        %v1106 = vpop.f32.mrf.mxu0
        %v1107 = vadd.f32 0.0, %v1106
        %1108 = vmatmul.bf16.gmra.mxu0 %v1016
        %v1109 = vpop.f32.mrf.mxu0
        %v1110 = vadd.f32 0.0, %v1109
        %v1111 = vpop.f32.mrf.mxu0
        %v1112 = vadd.f32 0.0, %v1111
        %1113 = vdwg.mxu0
        %v1114 = vrcp.pop %v978
        %v1115 = vrcp.pop %v980
        %v1116 = vrcp.pop %v982
        %v1117 = vrcp.pop %v984
        %v1118 = vrcp.pop %v986
        %v1119 = vrcp.pop %v988
        %v1120 = vrcp.pop %v990
        %v1121 = vrcp.pop %v992
        %v1122 = vrcp.pop %v994
        %v1123 = vrcp.pop %v996
        %v1124 = vrcp.pop %v998
        %v1125 = vrcp.pop %v1000
        %v1126 = vrcp.pop %v1002
        %v1127 = vrcp.pop %v1004
        %v1128 = vrcp.pop %v1006
        %v1129 = vrcp.pop %v1008
        %v1130 = vmul.f32 %v1075, %v1114
        %v1131 = vmul.f32 %v1077, %v1115
        %v1132 = vmul.f32 %v1080, %v1116
        %v1133 = vmul.f32 %v1082, %v1117
        %v1134 = vmul.f32 %v1085, %v1118
        %v1135 = vmul.f32 %v1087, %v1119
        %v1136 = vmul.f32 %v1090, %v1120
        %v1137 = vmul.f32 %v1092, %v1121
        %v1138 = vmul.f32 %v1095, %v1122
        %v1139 = vmul.f32 %v1097, %v1123
        %v1140 = vmul.f32 %v1100, %v1124
        %v1141 = vmul.f32 %v1102, %v1125
        %v1142 = vmul.f32 %v1105, %v1126
        %v1143 = vmul.f32 %v1107, %v1127
        %v1144 = vmul.f32 %v1110, %v1128
        %v1145 = vmul.f32 %v1112, %v1129
        %v1146 = vpack.c.bf16 %v1130, %v1130
        %v1147 = vpack.c.bf16 %v1131, %v1131
        %v1148 = vpack.c.bf16 %v1132, %v1132
        %v1149 = vpack.c.bf16 %v1133, %v1133
        %v1150 = vpack.c.bf16 %v1134, %v1134
        %v1151 = vpack.c.bf16 %v1135, %v1135
        %v1152 = vpack.c.bf16 %v1136, %v1136
        %v1153 = vpack.c.bf16 %v1137, %v1137
        %v1154 = vpack.c.bf16 %v1138, %v1138
        %v1155 = vpack.c.bf16 %v1139, %v1139
        %v1156 = vpack.c.bf16 %v1140, %v1140
        %v1157 = vpack.c.bf16 %v1141, %v1141
        %v1158 = vpack.c.bf16 %v1142, %v1142
        %v1159 = vpack.c.bf16 %v1143, %v1143
        %v1160 = vpack.c.bf16 %v1144, %v1144
        %v1161 = vpack.c.bf16 %v1145, %v1145
        %vm1162 = vcmask 125952
        %1163 = vst.msk [vmem:[#allocation3] sm:$0xf] %vm1162, %v1146
        %1164 = vst.msk [vmem:[#allocation3 + $0x4] sm:$0xf] %vm1162, %v1147
        %1165 = vst.msk [vmem:[#allocation3 + $0x8] sm:$0xf] %vm1162, %v1148
        %1166 = vst.msk [vmem:[#allocation3 + $0xc] sm:$0xf] %vm1162, %v1149
        %1167 = vst.msk [vmem:[#allocation3 + $0x10] sm:$0xf] %vm1162, %v1150
        %1168 = vst.msk [vmem:[#allocation3 + $0x14] sm:$0xf] %vm1162, %v1151
        %1169 = vst.msk [vmem:[#allocation3 + $0x18] sm:$0xf] %vm1162, %v1152
        %1170 = vst.msk [vmem:[#allocation3 + $0x1c] sm:$0xf] %vm1162, %v1153
        %1171 = vst.msk [vmem:[#allocation3 + $0x20] sm:$0xf] %vm1162, %v1154
        %1172 = vst.msk [vmem:[#allocation3 + $0x24] sm:$0xf] %vm1162, %v1155
        %1173 = vst.msk [vmem:[#allocation3 + $0x28] sm:$0xf] %vm1162, %v1156
        %1174 = vst.msk [vmem:[#allocation3 + $0x2c] sm:$0xf] %vm1162, %v1157
        %1175 = vst.msk [vmem:[#allocation3 + $0x30] sm:$0xf] %vm1162, %v1158
        %1176 = vst.msk [vmem:[#allocation3 + $0x34] sm:$0xf] %vm1162, %v1159
        %1177 = vst.msk [vmem:[#allocation3 + $0x38] sm:$0xf] %vm1162, %v1160
        %1178 = vst.msk [vmem:[#allocation3 + $0x3c] sm:$0xf] %vm1162, %v1161
        %v1179 = vld [vmem:[#allocation2] sm:$0xf]
        %v1180 = vld [vmem:[#allocation2 + $0xc] sm:$0xf]
        %v1181 = vld [vmem:[#allocation2 + $0x18] sm:$0xf]
        %v1182 = vld [vmem:[#allocation2 + $0x24] sm:$0xf]
        %v1183 = vld [vmem:[#allocation2 + $0x30] sm:$0xf]
        %v1184 = vld [vmem:[#allocation2 + $0x3c] sm:$0xf]
        %v1185 = vld [vmem:[#allocation2 + $0x48] sm:$0xf]
        %v1186 = vld [vmem:[#allocation2 + $0x54] sm:$0xf]
        %v1187 = vld [vmem:[#allocation2 + $0x60] sm:$0xf]
        %v1188 = vld [vmem:[#allocation2 + $0x6c] sm:$0xf]
        %v1189 = vld [vmem:[#allocation2 + $0x78] sm:$0xf]
        %v1190 = vld [vmem:[#allocation2 + $0x84] sm:$0xf]
        %v1191 = vld [vmem:[#allocation2 + $0x90] sm:$0xf]
        %v1192 = vld [vmem:[#allocation2 + $0x9c] sm:$0xf]
        %v1193 = vld [vmem:[#allocation2 + $0xa8] sm:$0xf]
        %v1194 = vld [vmem:[#allocation2 + $0xb4] sm:$0xf]
        %v1195 = vld [vmem:[#allocation2 + $0x8] sm:$0xf]
        %v1196 = vld [vmem:[#allocation2 + $0x14] sm:$0xf]
        %v1197 = vld [vmem:[#allocation2 + $0x20] sm:$0xf]
        %v1198 = vld [vmem:[#allocation2 + $0x2c] sm:$0xf]
        %v1199 = vld [vmem:[#allocation2 + $0x38] sm:$0xf]
        %v1200 = vld [vmem:[#allocation2 + $0x44] sm:$0xf]
        %v1201 = vld [vmem:[#allocation2 + $0x50] sm:$0xf]
        %v1202 = vld [vmem:[#allocation2 + $0x5c] sm:$0xf]
        %v1203 = vld [vmem:[#allocation2 + $0x68] sm:$0xf]
        %v1204 = vld [vmem:[#allocation2 + $0x74] sm:$0xf]
        %v1205 = vld [vmem:[#allocation2 + $0x80] sm:$0xf]
        %v1206 = vld [vmem:[#allocation2 + $0x8c] sm:$0xf]
        %v1207 = vld [vmem:[#allocation2 + $0x98] sm:$0xf]
        %v1208 = vld [vmem:[#allocation2 + $0xa4] sm:$0xf]
        %v1209 = vld [vmem:[#allocation2 + $0xb0] sm:$0xf]
        %v1210 = vld [vmem:[#allocation2 + $0xbc] sm:$0xf]
        %v1227 = vunpack.c.l.b16 %v1179
        %v1228 = vunpack.c.l.b16 %v1180
        %v1229 = vunpack.c.l.b16 %v1181
        %v1230 = vunpack.c.l.b16 %v1182
        %v1231 = vunpack.c.l.b16 %v1183
        %v1232 = vunpack.c.l.b16 %v1184
        %v1233 = vunpack.c.l.b16 %v1185
        %v1234 = vunpack.c.l.b16 %v1186
        %v1235 = vunpack.c.l.b16 %v1187
        %v1236 = vunpack.c.l.b16 %v1188
        %v1237 = vunpack.c.l.b16 %v1189
        %v1238 = vunpack.c.l.b16 %v1190
        %v1239 = vunpack.c.l.b16 %v1191
        %v1240 = vunpack.c.l.b16 %v1192
        %v1241 = vunpack.c.l.b16 %v1193
        %v1242 = vunpack.c.l.b16 %v1194
        %v1243 = vpack.c.b16 %v1228, %v1227
        %v1244 = vpack.c.b16 %v1230, %v1229
        %v1245 = vpack.c.b16 %v1232, %v1231
        %v1246 = vpack.c.b16 %v1234, %v1233
        %v1247 = vpack.c.b16 %v1236, %v1235
        %v1248 = vpack.c.b16 %v1238, %v1237
        %v1249 = vpack.c.b16 %v1240, %v1239
        %v1250 = vpack.c.b16 %v1242, %v1241
        %1251 = vrot.lane.b32.xlu0 %v1243, 112
        %v1252 = vpop.permute.xlu0 %1251
        %1253 = vrot.lane.b32.xlu0 %v1244, 112
        %v1254 = vpop.permute.xlu0 %1253
        %1255 = vrot.lane.b32.xlu0 %v1245, 112
        %v1256 = vpop.permute.xlu0 %1255
        %1257 = vrot.lane.b32.xlu0 %v1246, 112
        %v1258 = vpop.permute.xlu0 %1257
        %1259 = vrot.lane.b32.xlu0 %v1247, 112
        %v1260 = vpop.permute.xlu0 %1259
        %1261 = vrot.lane.b32.xlu0 %v1248, 112
        %v1262 = vpop.permute.xlu0 %1261
        %1263 = vrot.lane.b32.xlu0 %v1249, 112
        %v1264 = vpop.permute.xlu0 %1263
        %1265 = vrot.lane.b32.xlu0 %v1250, 112
        %v1266 = vpop.permute.xlu0 %1265
        %v1269 = vunpack.c.l.b16 %v667
        %v1270 = vunpack.c.l.b16 %v668
        %v1271 = vpack.c.b16 %v1270, %v1269
        %v1274 = vsel %vm823, %v1252, 0
        %v1277 = vsel %vm823, %v1254, 0
        %v1280 = vsel %vm823, %v1256, 0
        %v1283 = vsel %vm823, %v1258, 0
        %v1286 = vsel %vm823, %v1260, 0
        %v1289 = vsel %vm823, %v1262, 0
        %v1292 = vsel %vm823, %v1264, 0
        %v1295 = vsel %vm823, %v1266, 0
        %1297 = vmatpush.bf16.msra.mxu0 0
        %1298 = vmatpush.bf16.msra.mxu0 0
        %1299 = vmatpush.bf16.msra.mxu0 0
        %1300 = vmatpush.bf16.msra.mxu0 0
        %1301 = vmatpush.bf16.msra.mxu0 0
        %1302 = vmatpush.bf16.msra.mxu0 0
        %1303 = vmatpush.bf16.msra.mxu0 0
        %1304 = vmatpush.bf16.msra.mxu0 %v1271
        %1305 = vmatmul.bf16.gmra.mxu0 %v1274
        %v1306 = vpop.f32.mrf.mxu0
        %v1307 = vadd.f32 0.0, %v1306
        %v1308 = vpop.f32.mrf.mxu0
        %v1309 = vadd.f32 0.0, %v1308
        %1310 = vmatmul.bf16.gmra.mxu0 %v1277
        %v1311 = vpop.f32.mrf.mxu0
        %v1312 = vadd.f32 0.0, %v1311
        %v1313 = vpop.f32.mrf.mxu0
        %v1314 = vadd.f32 0.0, %v1313
        %1315 = vmatmul.bf16.gmra.mxu0 %v1280
        %v1316 = vpop.f32.mrf.mxu0
        %v1317 = vadd.f32 0.0, %v1316
        %v1318 = vpop.f32.mrf.mxu0
        %v1319 = vadd.f32 0.0, %v1318
        %1320 = vmatmul.bf16.gmra.mxu0 %v1283
        %v1321 = vpop.f32.mrf.mxu0
        %v1322 = vadd.f32 0.0, %v1321
        %v1323 = vpop.f32.mrf.mxu0
        %v1324 = vadd.f32 0.0, %v1323
        %1325 = vmatmul.bf16.gmra.mxu0 %v1286
        %v1326 = vpop.f32.mrf.mxu0
        %v1327 = vadd.f32 0.0, %v1326
        %v1328 = vpop.f32.mrf.mxu0
        %v1329 = vadd.f32 0.0, %v1328
        %1330 = vmatmul.bf16.gmra.mxu0 %v1289
        %v1331 = vpop.f32.mrf.mxu0
        %v1332 = vadd.f32 0.0, %v1331
        %v1333 = vpop.f32.mrf.mxu0
        %v1334 = vadd.f32 0.0, %v1333
        %1335 = vmatmul.bf16.gmra.mxu0 %v1292
        %v1336 = vpop.f32.mrf.mxu0
        %v1337 = vadd.f32 0.0, %v1336
        %v1338 = vpop.f32.mrf.mxu0
        %v1339 = vadd.f32 0.0, %v1338
        %1340 = vmatmul.bf16.gmra.mxu0 %v1295
        %v1341 = vpop.f32.mrf.mxu0
        %v1342 = vadd.f32 0.0, %v1341
        %v1343 = vpop.f32.mrf.mxu0
        %v1344 = vadd.f32 0.0, %v1343
        %1345 = vdwg.mxu0
        %1346 = vmax.xlane.f32.xlu0 %v1307
        %v1347 = vpop.xlane.xlu0 %1346
        %1348 = vmax.xlane.f32.xlu0 %v1309
        %v1349 = vpop.xlane.xlu0 %1348
        %1350 = vmax.xlane.f32.xlu0 %v1312
        %v1351 = vpop.xlane.xlu0 %1350
        %1352 = vmax.xlane.f32.xlu0 %v1314
        %v1353 = vpop.xlane.xlu0 %1352
        %1354 = vmax.xlane.f32.xlu0 %v1317
        %v1355 = vpop.xlane.xlu0 %1354
        %1356 = vmax.xlane.f32.xlu0 %v1319
        %v1357 = vpop.xlane.xlu0 %1356
        %1358 = vmax.xlane.f32.xlu0 %v1322
        %v1359 = vpop.xlane.xlu0 %1358
        %1360 = vmax.xlane.f32.xlu0 %v1324
        %v1361 = vpop.xlane.xlu0 %1360
        %1362 = vmax.xlane.f32.xlu0 %v1327
        %v1363 = vpop.xlane.xlu0 %1362
        %1364 = vmax.xlane.f32.xlu0 %v1329
        %v1365 = vpop.xlane.xlu0 %1364
        %1366 = vmax.xlane.f32.xlu0 %v1332
        %v1367 = vpop.xlane.xlu0 %1366
        %1368 = vmax.xlane.f32.xlu0 %v1334
        %v1369 = vpop.xlane.xlu0 %1368
        %1370 = vmax.xlane.f32.xlu0 %v1337
        %v1371 = vpop.xlane.xlu0 %1370
        %1372 = vmax.xlane.f32.xlu0 %v1339
        %v1373 = vpop.xlane.xlu0 %1372
        %1374 = vmax.xlane.f32.xlu0 %v1342
        %v1375 = vpop.xlane.xlu0 %1374
        %1376 = vmax.xlane.f32.xlu0 %v1344
        %v1377 = vpop.xlane.xlu0 %1376
        %v1378 = vsub.f32 %v1307, %v1347
        %v1379 = vsub.f32 %v1309, %v1349
        %v1380 = vsub.f32 %v1312, %v1351
        %v1381 = vsub.f32 %v1314, %v1353
        %v1382 = vsub.f32 %v1317, %v1355
        %v1383 = vsub.f32 %v1319, %v1357
        %v1384 = vsub.f32 %v1322, %v1359
        %v1385 = vsub.f32 %v1324, %v1361
        %v1386 = vsub.f32 %v1327, %v1363
        %v1387 = vsub.f32 %v1329, %v1365
        %v1388 = vsub.f32 %v1332, %v1367
        %v1389 = vsub.f32 %v1334, %v1369
        %v1390 = vsub.f32 %v1337, %v1371
        %v1391 = vsub.f32 %v1339, %v1373
        %v1392 = vsub.f32 %v1342, %v1375
        %v1393 = vsub.f32 %v1344, %v1377
        %v1394 = vmul.f32 %v1378, 1.442695
        %v1395 = vpow.pop %v1394
        %v1396 = vmul.f32 %v1379, 1.442695
        %v1397 = vpow.pop %v1396
        %v1398 = vmul.f32 %v1380, 1.442695
        %v1399 = vpow.pop %v1398
        %v1400 = vmul.f32 %v1381, 1.442695
        %v1401 = vpow.pop %v1400
        %v1402 = vmul.f32 %v1382, 1.442695
        %v1403 = vpow.pop %v1402
        %v1404 = vmul.f32 %v1383, 1.442695
        %v1405 = vpow.pop %v1404
        %v1406 = vmul.f32 %v1384, 1.442695
        %v1407 = vpow.pop %v1406
        %v1408 = vmul.f32 %v1385, 1.442695
        %v1409 = vpow.pop %v1408
        %v1410 = vmul.f32 %v1386, 1.442695
        %v1411 = vpow.pop %v1410
        %v1412 = vmul.f32 %v1387, 1.442695
        %v1413 = vpow.pop %v1412
        %v1414 = vmul.f32 %v1388, 1.442695
        %v1415 = vpow.pop %v1414
        %v1416 = vmul.f32 %v1389, 1.442695
        %v1417 = vpow.pop %v1416
        %v1418 = vmul.f32 %v1390, 1.442695
        %v1419 = vpow.pop %v1418
        %v1420 = vmul.f32 %v1391, 1.442695
        %v1421 = vpow.pop %v1420
        %v1422 = vmul.f32 %v1392, 1.442695
        %v1423 = vpow.pop %v1422
        %v1424 = vmul.f32 %v1393, 1.442695
        %v1425 = vpow.pop %v1424
        %1426 = vadd.xlane.f32.xlu0 %v1395
        %v1427 = vpop.xlane.xlu0 %1426
        %1428 = vadd.xlane.f32.xlu0 %v1397
        %v1429 = vpop.xlane.xlu0 %1428
        %1430 = vadd.xlane.f32.xlu0 %v1399
        %v1431 = vpop.xlane.xlu0 %1430
        %1432 = vadd.xlane.f32.xlu0 %v1401
        %v1433 = vpop.xlane.xlu0 %1432
        %1434 = vadd.xlane.f32.xlu0 %v1403
        %v1435 = vpop.xlane.xlu0 %1434
        %1436 = vadd.xlane.f32.xlu0 %v1405
        %v1437 = vpop.xlane.xlu0 %1436
        %1438 = vadd.xlane.f32.xlu0 %v1407
        %v1439 = vpop.xlane.xlu0 %1438
        %1440 = vadd.xlane.f32.xlu0 %v1409
        %v1441 = vpop.xlane.xlu0 %1440
        %1442 = vadd.xlane.f32.xlu0 %v1411
        %v1443 = vpop.xlane.xlu0 %1442
        %1444 = vadd.xlane.f32.xlu0 %v1413
        %v1445 = vpop.xlane.xlu0 %1444
        %1446 = vadd.xlane.f32.xlu0 %v1415
        %v1447 = vpop.xlane.xlu0 %1446
        %1448 = vadd.xlane.f32.xlu0 %v1417
        %v1449 = vpop.xlane.xlu0 %1448
        %1450 = vadd.xlane.f32.xlu0 %v1419
        %v1451 = vpop.xlane.xlu0 %1450
        %1452 = vadd.xlane.f32.xlu0 %v1421
        %v1453 = vpop.xlane.xlu0 %1452
        %1454 = vadd.xlane.f32.xlu0 %v1423
        %v1455 = vpop.xlane.xlu0 %1454
        %1456 = vadd.xlane.f32.xlu0 %v1425
        %v1457 = vpop.xlane.xlu0 %1456
        %v1458 = vpack.c.bf16 %v1397, %v1395
        %v1459 = vpack.c.bf16 %v1401, %v1399
        %v1460 = vpack.c.bf16 %v1405, %v1403
        %v1461 = vpack.c.bf16 %v1409, %v1407
        %v1462 = vpack.c.bf16 %v1413, %v1411
        %v1463 = vpack.c.bf16 %v1417, %v1415
        %v1464 = vpack.c.bf16 %v1421, %v1419
        %v1465 = vpack.c.bf16 %v1425, %v1423
        %v1482 = vunpack.c.l.b16 %v1195
        %v1483 = vunpack.c.l.b16 %v1196
        %v1484 = vunpack.c.l.b16 %v1197
        %v1485 = vunpack.c.l.b16 %v1198
        %v1486 = vunpack.c.l.b16 %v1199
        %v1487 = vunpack.c.l.b16 %v1200
        %v1488 = vunpack.c.l.b16 %v1201
        %v1489 = vunpack.c.l.b16 %v1202
        %v1490 = vunpack.c.l.b16 %v1203
        %v1491 = vunpack.c.l.b16 %v1204
        %v1492 = vunpack.c.l.b16 %v1205
        %v1493 = vunpack.c.l.b16 %v1206
        %v1494 = vunpack.c.l.b16 %v1207
        %v1495 = vunpack.c.l.b16 %v1208
        %v1496 = vunpack.c.l.b16 %v1209
        %v1497 = vunpack.c.l.b16 %v1210
        %v1498 = vpack.c.b16 %v1483, %v1482
        %v1499 = vpack.c.b16 %v1485, %v1484
        %v1500 = vpack.c.b16 %v1487, %v1486
        %v1501 = vpack.c.b16 %v1489, %v1488
        %v1502 = vpack.c.b16 %v1491, %v1490
        %v1503 = vpack.c.b16 %v1493, %v1492
        %v1504 = vpack.c.b16 %v1495, %v1494
        %v1505 = vpack.c.b16 %v1497, %v1496
        %1506 = vrot.lane.b32.xlu0 %v1498, 112
        %v1507 = vpop.permute.xlu0 %1506
        %1508 = vrot.lane.b32.xlu0 %v1499, 112
        %v1509 = vpop.permute.xlu0 %1508
        %1510 = vrot.lane.b32.xlu0 %v1500, 112
        %v1511 = vpop.permute.xlu0 %1510
        %1512 = vrot.lane.b32.xlu0 %v1501, 112
        %v1513 = vpop.permute.xlu0 %1512
        %1514 = vrot.lane.b32.xlu0 %v1502, 112
        %v1515 = vpop.permute.xlu0 %1514
        %1516 = vrot.lane.b32.xlu0 %v1503, 112
        %v1517 = vpop.permute.xlu0 %1516
        %1518 = vrot.lane.b32.xlu0 %v1504, 112
        %v1519 = vpop.permute.xlu0 %1518
        %1520 = vrot.lane.b32.xlu0 %v1505, 112
        %v1521 = vpop.permute.xlu0 %1520
        %1530 = vmatpush.bf16.msra.mxu0 %v1521
        %1531 = vmatpush.bf16.msra.mxu0 %v1519
        %1532 = vmatpush.bf16.msra.mxu0 %v1517
        %1533 = vmatpush.bf16.msra.mxu0 %v1515
        %1534 = vmatpush.bf16.msra.mxu0 %v1513
        %1535 = vmatpush.bf16.msra.mxu0 %v1511
        %1536 = vmatpush.bf16.msra.mxu0 %v1509
        %1537 = vmatpush.bf16.msra.mxu0 %v1507
        %1538 = vmatmul.bf16.gmra.mxu0 %v1458
        %v1539 = vpop.f32.mrf.mxu0
        %v1540 = vadd.f32 0.0, %v1539
        %v1541 = vpop.f32.mrf.mxu0
        %v1542 = vadd.f32 0.0, %v1541
        %1543 = vmatmul.bf16.gmra.mxu0 %v1459
        %v1544 = vpop.f32.mrf.mxu0
        %v1545 = vadd.f32 0.0, %v1544
        %v1546 = vpop.f32.mrf.mxu0
        %v1547 = vadd.f32 0.0, %v1546
        %1548 = vmatmul.bf16.gmra.mxu0 %v1460
        %v1549 = vpop.f32.mrf.mxu0
        %v1550 = vadd.f32 0.0, %v1549
        %v1551 = vpop.f32.mrf.mxu0
        %v1552 = vadd.f32 0.0, %v1551
        %1553 = vmatmul.bf16.gmra.mxu0 %v1461
        %v1554 = vpop.f32.mrf.mxu0
        %v1555 = vadd.f32 0.0, %v1554
        %v1556 = vpop.f32.mrf.mxu0
        %v1557 = vadd.f32 0.0, %v1556
        %1558 = vmatmul.bf16.gmra.mxu0 %v1462
        %v1559 = vpop.f32.mrf.mxu0
        %v1560 = vadd.f32 0.0, %v1559
        %v1561 = vpop.f32.mrf.mxu0
        %v1562 = vadd.f32 0.0, %v1561
        %1563 = vmatmul.bf16.gmra.mxu0 %v1463
        %v1564 = vpop.f32.mrf.mxu0
        %v1565 = vadd.f32 0.0, %v1564
        %v1566 = vpop.f32.mrf.mxu0
        %v1567 = vadd.f32 0.0, %v1566
        %1568 = vmatmul.bf16.gmra.mxu0 %v1464
        %v1569 = vpop.f32.mrf.mxu0
        %v1570 = vadd.f32 0.0, %v1569
        %v1571 = vpop.f32.mrf.mxu0
        %v1572 = vadd.f32 0.0, %v1571
        %1573 = vmatmul.bf16.gmra.mxu0 %v1465
        %v1574 = vpop.f32.mrf.mxu0
        %v1575 = vadd.f32 0.0, %v1574
        %v1576 = vpop.f32.mrf.mxu0
        %v1577 = vadd.f32 0.0, %v1576
        %1578 = vdwg.mxu0
        %v1579 = vrcp.pop %v1427
        %v1580 = vrcp.pop %v1429
        %v1581 = vrcp.pop %v1431
        %v1582 = vrcp.pop %v1433
        %v1583 = vrcp.pop %v1435
        %v1584 = vrcp.pop %v1437
        %v1585 = vrcp.pop %v1439
        %v1586 = vrcp.pop %v1441
        %v1587 = vrcp.pop %v1443
        %v1588 = vrcp.pop %v1445
        %v1589 = vrcp.pop %v1447
        %v1590 = vrcp.pop %v1449
        %v1591 = vrcp.pop %v1451
        %v1592 = vrcp.pop %v1453
        %v1593 = vrcp.pop %v1455
        %v1594 = vrcp.pop %v1457
        %v1595 = vmul.f32 %v1540, %v1579
        %v1596 = vmul.f32 %v1542, %v1580
        %v1597 = vmul.f32 %v1545, %v1581
        %v1598 = vmul.f32 %v1547, %v1582
        %v1599 = vmul.f32 %v1550, %v1583
        %v1600 = vmul.f32 %v1552, %v1584
        %v1601 = vmul.f32 %v1555, %v1585
        %v1602 = vmul.f32 %v1557, %v1586
        %v1603 = vmul.f32 %v1560, %v1587
        %v1604 = vmul.f32 %v1562, %v1588
        %v1605 = vmul.f32 %v1565, %v1589
        %v1606 = vmul.f32 %v1567, %v1590
        %v1607 = vmul.f32 %v1570, %v1591
        %v1608 = vmul.f32 %v1572, %v1592
        %v1609 = vmul.f32 %v1575, %v1593
        %v1610 = vmul.f32 %v1577, %v1594
        %v1611 = vpack.c.bf16 %v1595, %v1595
        %v1612 = vpack.c.bf16 %v1596, %v1596
        %v1613 = vpack.c.bf16 %v1597, %v1597
        %v1614 = vpack.c.bf16 %v1598, %v1598
        %v1615 = vpack.c.bf16 %v1599, %v1599
        %v1616 = vpack.c.bf16 %v1600, %v1600
        %v1617 = vpack.c.bf16 %v1601, %v1601
        %v1618 = vpack.c.bf16 %v1602, %v1602
        %v1619 = vpack.c.bf16 %v1603, %v1603
        %v1620 = vpack.c.bf16 %v1604, %v1604
        %v1621 = vpack.c.bf16 %v1605, %v1605
        %v1622 = vpack.c.bf16 %v1606, %v1606
        %v1623 = vpack.c.bf16 %v1607, %v1607
        %v1624 = vpack.c.bf16 %v1608, %v1608
        %v1625 = vpack.c.bf16 %v1609, %v1609
        %v1626 = vpack.c.bf16 %v1610, %v1610
        %1643 = vrot.lane.b32.xlu0 %v1611, 16
        %v1644 = vpop.permute.xlu0 %1643
        %1645 = vrot.lane.b32.xlu0 %v1612, 16
        %v1646 = vpop.permute.xlu0 %1645
        %1647 = vrot.lane.b32.xlu0 %v1613, 16
        %v1648 = vpop.permute.xlu0 %1647
        %1649 = vrot.lane.b32.xlu0 %v1614, 16
        %v1650 = vpop.permute.xlu0 %1649
        %1651 = vrot.lane.b32.xlu0 %v1615, 16
        %v1652 = vpop.permute.xlu0 %1651
        %1653 = vrot.lane.b32.xlu0 %v1616, 16
        %v1654 = vpop.permute.xlu0 %1653
        %1655 = vrot.lane.b32.xlu0 %v1617, 16
        %v1656 = vpop.permute.xlu0 %1655
        %1657 = vrot.lane.b32.xlu0 %v1618, 16
        %v1658 = vpop.permute.xlu0 %1657
        %1659 = vrot.lane.b32.xlu0 %v1619, 16
        %v1660 = vpop.permute.xlu0 %1659
        %1661 = vrot.lane.b32.xlu0 %v1620, 16
        %v1662 = vpop.permute.xlu0 %1661
        %1663 = vrot.lane.b32.xlu0 %v1621, 16
        %v1664 = vpop.permute.xlu0 %1663
        %1665 = vrot.lane.b32.xlu0 %v1622, 16
        %v1666 = vpop.permute.xlu0 %1665
        %1667 = vrot.lane.b32.xlu0 %v1623, 16
        %v1668 = vpop.permute.xlu0 %1667
        %1669 = vrot.lane.b32.xlu0 %v1624, 16
        %v1670 = vpop.permute.xlu0 %1669
        %1671 = vrot.lane.b32.xlu0 %v1625, 16
        %v1672 = vpop.permute.xlu0 %1671
        %1673 = vrot.lane.b32.xlu0 %v1626, 16
        %v1674 = vpop.permute.xlu0 %1673
        %vm1691 = vcmask 257152
        %1692 = vst.msk [vmem:[#allocation3] sm:$0xf] %vm1691, %v1644
        %1693 = vst.msk [vmem:[#allocation3 + $0x4] sm:$0xf] %vm1691, %v1646
        %1694 = vst.msk [vmem:[#allocation3 + $0x8] sm:$0xf] %vm1691, %v1648
        %1695 = vst.msk [vmem:[#allocation3 + $0xc] sm:$0xf] %vm1691, %v1650
        %1696 = vst.msk [vmem:[#allocation3 + $0x10] sm:$0xf] %vm1691, %v1652
        %1697 = vst.msk [vmem:[#allocation3 + $0x14] sm:$0xf] %vm1691, %v1654
        %1698 = vst.msk [vmem:[#allocation3 + $0x18] sm:$0xf] %vm1691, %v1656
        %1699 = vst.msk [vmem:[#allocation3 + $0x1c] sm:$0xf] %vm1691, %v1658
        %1700 = vst.msk [vmem:[#allocation3 + $0x20] sm:$0xf] %vm1691, %v1660
        %1701 = vst.msk [vmem:[#allocation3 + $0x24] sm:$0xf] %vm1691, %v1662
        %1702 = vst.msk [vmem:[#allocation3 + $0x28] sm:$0xf] %vm1691, %v1664
        %1703 = vst.msk [vmem:[#allocation3 + $0x2c] sm:$0xf] %vm1691, %v1666
        %1704 = vst.msk [vmem:[#allocation3 + $0x30] sm:$0xf] %vm1691, %v1668
        %1705 = vst.msk [vmem:[#allocation3 + $0x34] sm:$0xf] %vm1691, %v1670
        %1706 = vst.msk [vmem:[#allocation3 + $0x38] sm:$0xf] %vm1691, %v1672
        %1707 = vst.msk [vmem:[#allocation3 + $0x3c] sm:$0xf] %vm1691, %v1674
        %v1708 = vld [vmem:[#allocation2] sm:$0xf]
        %v1709 = vld [vmem:[#allocation2 + $0xc] sm:$0xf]
        %v1710 = vld [vmem:[#allocation2 + $0x18] sm:$0xf]
        %v1711 = vld [vmem:[#allocation2 + $0x24] sm:$0xf]
        %v1712 = vld [vmem:[#allocation2 + $0x30] sm:$0xf]
        %v1713 = vld [vmem:[#allocation2 + $0x3c] sm:$0xf]
        %v1714 = vld [vmem:[#allocation2 + $0x48] sm:$0xf]
        %v1715 = vld [vmem:[#allocation2 + $0x54] sm:$0xf]
        %v1716 = vld [vmem:[#allocation2 + $0x60] sm:$0xf]
        %v1717 = vld [vmem:[#allocation2 + $0x6c] sm:$0xf]
        %v1718 = vld [vmem:[#allocation2 + $0x78] sm:$0xf]
        %v1719 = vld [vmem:[#allocation2 + $0x84] sm:$0xf]
        %v1720 = vld [vmem:[#allocation2 + $0x90] sm:$0xf]
        %v1721 = vld [vmem:[#allocation2 + $0x9c] sm:$0xf]
        %v1722 = vld [vmem:[#allocation2 + $0xa8] sm:$0xf]
        %v1723 = vld [vmem:[#allocation2 + $0xb4] sm:$0xf]
        %v1724 = vld [vmem:[#allocation2 + $0x8] sm:$0xf]
        %v1725 = vld [vmem:[#allocation2 + $0x14] sm:$0xf]
        %v1726 = vld [vmem:[#allocation2 + $0x20] sm:$0xf]
        %v1727 = vld [vmem:[#allocation2 + $0x2c] sm:$0xf]
        %v1728 = vld [vmem:[#allocation2 + $0x38] sm:$0xf]
        %v1729 = vld [vmem:[#allocation2 + $0x44] sm:$0xf]
        %v1730 = vld [vmem:[#allocation2 + $0x50] sm:$0xf]
        %v1731 = vld [vmem:[#allocation2 + $0x5c] sm:$0xf]
        %v1732 = vld [vmem:[#allocation2 + $0x68] sm:$0xf]
        %v1733 = vld [vmem:[#allocation2 + $0x74] sm:$0xf]
        %v1734 = vld [vmem:[#allocation2 + $0x80] sm:$0xf]
        %v1735 = vld [vmem:[#allocation2 + $0x8c] sm:$0xf]
        %v1736 = vld [vmem:[#allocation2 + $0x98] sm:$0xf]
        %v1737 = vld [vmem:[#allocation2 + $0xa4] sm:$0xf]
        %v1738 = vld [vmem:[#allocation2 + $0xb0] sm:$0xf]
        %v1739 = vld [vmem:[#allocation2 + $0xbc] sm:$0xf]
        %v1756 = vunpack.c.l.b16 %v1708
        %v1757 = vunpack.c.l.b16 %v1709
        %v1758 = vunpack.c.l.b16 %v1710
        %v1759 = vunpack.c.l.b16 %v1711
        %v1760 = vunpack.c.l.b16 %v1712
        %v1761 = vunpack.c.l.b16 %v1713
        %v1762 = vunpack.c.l.b16 %v1714
        %v1763 = vunpack.c.l.b16 %v1715
        %v1764 = vunpack.c.l.b16 %v1716
        %v1765 = vunpack.c.l.b16 %v1717
        %v1766 = vunpack.c.l.b16 %v1718
        %v1767 = vunpack.c.l.b16 %v1719
        %v1768 = vunpack.c.l.b16 %v1720
        %v1769 = vunpack.c.l.b16 %v1721
        %v1770 = vunpack.c.l.b16 %v1722
        %v1771 = vunpack.c.l.b16 %v1723
        %v1772 = vpack.c.b16 %v1757, %v1756
        %v1773 = vpack.c.b16 %v1759, %v1758
        %v1774 = vpack.c.b16 %v1761, %v1760
        %v1775 = vpack.c.b16 %v1763, %v1762
        %v1776 = vpack.c.b16 %v1765, %v1764
        %v1777 = vpack.c.b16 %v1767, %v1766
        %v1778 = vpack.c.b16 %v1769, %v1768
        %v1779 = vpack.c.b16 %v1771, %v1770
        %1780 = vrot.lane.b32.xlu0 %v1772, 96
        %v1781 = vpop.permute.xlu0 %1780
        %1782 = vrot.lane.b32.xlu0 %v1773, 96
        %v1783 = vpop.permute.xlu0 %1782
        %1784 = vrot.lane.b32.xlu0 %v1774, 96
        %v1785 = vpop.permute.xlu0 %1784
        %1786 = vrot.lane.b32.xlu0 %v1775, 96
        %v1787 = vpop.permute.xlu0 %1786
        %1788 = vrot.lane.b32.xlu0 %v1776, 96
        %v1789 = vpop.permute.xlu0 %1788
        %1790 = vrot.lane.b32.xlu0 %v1777, 96
        %v1791 = vpop.permute.xlu0 %1790
        %1792 = vrot.lane.b32.xlu0 %v1778, 96
        %v1793 = vpop.permute.xlu0 %1792
        %1794 = vrot.lane.b32.xlu0 %v1779, 96
        %v1795 = vpop.permute.xlu0 %1794
        %v1798 = vunpack.c.l.b16 %v669
        %v1799 = vunpack.c.l.b16 %v670
        %v1800 = vpack.c.b16 %v1799, %v1798
        %v1803 = vsel %vm823, %v1781, 0
        %v1806 = vsel %vm823, %v1783, 0
        %v1809 = vsel %vm823, %v1785, 0
        %v1812 = vsel %vm823, %v1787, 0
        %v1815 = vsel %vm823, %v1789, 0
        %v1818 = vsel %vm823, %v1791, 0
        %v1821 = vsel %vm823, %v1793, 0
        %v1824 = vsel %vm823, %v1795, 0
        %1826 = vmatpush.bf16.msra.mxu0 0
        %1827 = vmatpush.bf16.msra.mxu0 0
        %1828 = vmatpush.bf16.msra.mxu0 0
        %1829 = vmatpush.bf16.msra.mxu0 0
        %1830 = vmatpush.bf16.msra.mxu0 0
        %1831 = vmatpush.bf16.msra.mxu0 0
        %1832 = vmatpush.bf16.msra.mxu0 0
        %1833 = vmatpush.bf16.msra.mxu0 %v1800
        %1834 = vmatmul.bf16.gmra.mxu0 %v1803
        %v1835 = vpop.f32.mrf.mxu0
        %v1836 = vadd.f32 0.0, %v1835
        %v1837 = vpop.f32.mrf.mxu0
        %v1838 = vadd.f32 0.0, %v1837
        %1839 = vmatmul.bf16.gmra.mxu0 %v1806
        %v1840 = vpop.f32.mrf.mxu0
        %v1841 = vadd.f32 0.0, %v1840
        %v1842 = vpop.f32.mrf.mxu0
        %v1843 = vadd.f32 0.0, %v1842
        %1844 = vmatmul.bf16.gmra.mxu0 %v1809
        %v1845 = vpop.f32.mrf.mxu0
        %v1846 = vadd.f32 0.0, %v1845
        %v1847 = vpop.f32.mrf.mxu0
        %v1848 = vadd.f32 0.0, %v1847
        %1849 = vmatmul.bf16.gmra.mxu0 %v1812
        %v1850 = vpop.f32.mrf.mxu0
        %v1851 = vadd.f32 0.0, %v1850
        %v1852 = vpop.f32.mrf.mxu0
        %v1853 = vadd.f32 0.0, %v1852
        %1854 = vmatmul.bf16.gmra.mxu0 %v1815
        %v1855 = vpop.f32.mrf.mxu0
        %v1856 = vadd.f32 0.0, %v1855
        %v1857 = vpop.f32.mrf.mxu0
        %v1858 = vadd.f32 0.0, %v1857
        %1859 = vmatmul.bf16.gmra.mxu0 %v1818
        %v1860 = vpop.f32.mrf.mxu0
        %v1861 = vadd.f32 0.0, %v1860
        %v1862 = vpop.f32.mrf.mxu0
        %v1863 = vadd.f32 0.0, %v1862
        %1864 = vmatmul.bf16.gmra.mxu0 %v1821
        %v1865 = vpop.f32.mrf.mxu0
        %v1866 = vadd.f32 0.0, %v1865
        %v1867 = vpop.f32.mrf.mxu0
        %v1868 = vadd.f32 0.0, %v1867
        %1869 = vmatmul.bf16.gmra.mxu0 %v1824
        %v1870 = vpop.f32.mrf.mxu0
        %v1871 = vadd.f32 0.0, %v1870
        %v1872 = vpop.f32.mrf.mxu0
        %v1873 = vadd.f32 0.0, %v1872
        %1874 = vdwg.mxu0
        %1875 = vmax.xlane.f32.xlu0 %v1836
        %v1876 = vpop.xlane.xlu0 %1875
        %1877 = vmax.xlane.f32.xlu0 %v1838
        %v1878 = vpop.xlane.xlu0 %1877
        %1879 = vmax.xlane.f32.xlu0 %v1841
        %v1880 = vpop.xlane.xlu0 %1879
        %1881 = vmax.xlane.f32.xlu0 %v1843
        %v1882 = vpop.xlane.xlu0 %1881
        %1883 = vmax.xlane.f32.xlu0 %v1846
        %v1884 = vpop.xlane.xlu0 %1883
        %1885 = vmax.xlane.f32.xlu0 %v1848
        %v1886 = vpop.xlane.xlu0 %1885
        %1887 = vmax.xlane.f32.xlu0 %v1851
        %v1888 = vpop.xlane.xlu0 %1887
        %1889 = vmax.xlane.f32.xlu0 %v1853
        %v1890 = vpop.xlane.xlu0 %1889
        %1891 = vmax.xlane.f32.xlu0 %v1856
        %v1892 = vpop.xlane.xlu0 %1891
        %1893 = vmax.xlane.f32.xlu0 %v1858
        %v1894 = vpop.xlane.xlu0 %1893
        %1895 = vmax.xlane.f32.xlu0 %v1861
        %v1896 = vpop.xlane.xlu0 %1895
        %1897 = vmax.xlane.f32.xlu0 %v1863
        %v1898 = vpop.xlane.xlu0 %1897
        %1899 = vmax.xlane.f32.xlu0 %v1866
        %v1900 = vpop.xlane.xlu0 %1899
        %1901 = vmax.xlane.f32.xlu0 %v1868
        %v1902 = vpop.xlane.xlu0 %1901
        %1903 = vmax.xlane.f32.xlu0 %v1871
        %v1904 = vpop.xlane.xlu0 %1903
        %1905 = vmax.xlane.f32.xlu0 %v1873
        %v1906 = vpop.xlane.xlu0 %1905
        %v1907 = vsub.f32 %v1836, %v1876
        %v1908 = vsub.f32 %v1838, %v1878
        %v1909 = vsub.f32 %v1841, %v1880
        %v1910 = vsub.f32 %v1843, %v1882
        %v1911 = vsub.f32 %v1846, %v1884
        %v1912 = vsub.f32 %v1848, %v1886
        %v1913 = vsub.f32 %v1851, %v1888
        %v1914 = vsub.f32 %v1853, %v1890
        %v1915 = vsub.f32 %v1856, %v1892
        %v1916 = vsub.f32 %v1858, %v1894
        %v1917 = vsub.f32 %v1861, %v1896
        %v1918 = vsub.f32 %v1863, %v1898
        %v1919 = vsub.f32 %v1866, %v1900
        %v1920 = vsub.f32 %v1868, %v1902
        %v1921 = vsub.f32 %v1871, %v1904
        %v1922 = vsub.f32 %v1873, %v1906
        %v1923 = vmul.f32 %v1907, 1.442695
        %v1924 = vpow.pop %v1923
        %v1925 = vmul.f32 %v1908, 1.442695
        %v1926 = vpow.pop %v1925
        %v1927 = vmul.f32 %v1909, 1.442695
        %v1928 = vpow.pop %v1927
        %v1929 = vmul.f32 %v1910, 1.442695
        %v1930 = vpow.pop %v1929
        %v1931 = vmul.f32 %v1911, 1.442695
        %v1932 = vpow.pop %v1931
        %v1933 = vmul.f32 %v1912, 1.442695
        %v1934 = vpow.pop %v1933
        %v1935 = vmul.f32 %v1913, 1.442695
        %v1936 = vpow.pop %v1935
        %v1937 = vmul.f32 %v1914, 1.442695
        %v1938 = vpow.pop %v1937
        %v1939 = vmul.f32 %v1915, 1.442695
        %v1940 = vpow.pop %v1939
        %v1941 = vmul.f32 %v1916, 1.442695
        %v1942 = vpow.pop %v1941
        %v1943 = vmul.f32 %v1917, 1.442695
        %v1944 = vpow.pop %v1943
        %v1945 = vmul.f32 %v1918, 1.442695
        %v1946 = vpow.pop %v1945
        %v1947 = vmul.f32 %v1919, 1.442695
        %v1948 = vpow.pop %v1947
        %v1949 = vmul.f32 %v1920, 1.442695
        %v1950 = vpow.pop %v1949
        %v1951 = vmul.f32 %v1921, 1.442695
        %v1952 = vpow.pop %v1951
        %v1953 = vmul.f32 %v1922, 1.442695
        %v1954 = vpow.pop %v1953
        %1955 = vadd.xlane.f32.xlu0 %v1924
        %v1956 = vpop.xlane.xlu0 %1955
        %1957 = vadd.xlane.f32.xlu0 %v1926
        %v1958 = vpop.xlane.xlu0 %1957
        %1959 = vadd.xlane.f32.xlu0 %v1928
        %v1960 = vpop.xlane.xlu0 %1959
        %1961 = vadd.xlane.f32.xlu0 %v1930
        %v1962 = vpop.xlane.xlu0 %1961
        %1963 = vadd.xlane.f32.xlu0 %v1932
        %v1964 = vpop.xlane.xlu0 %1963
        %1965 = vadd.xlane.f32.xlu0 %v1934
        %v1966 = vpop.xlane.xlu0 %1965
        %1967 = vadd.xlane.f32.xlu0 %v1936
        %v1968 = vpop.xlane.xlu0 %1967
        %1969 = vadd.xlane.f32.xlu0 %v1938
        %v1970 = vpop.xlane.xlu0 %1969
        %1971 = vadd.xlane.f32.xlu0 %v1940
        %v1972 = vpop.xlane.xlu0 %1971
        %1973 = vadd.xlane.f32.xlu0 %v1942
        %v1974 = vpop.xlane.xlu0 %1973
        %1975 = vadd.xlane.f32.xlu0 %v1944
        %v1976 = vpop.xlane.xlu0 %1975
        %1977 = vadd.xlane.f32.xlu0 %v1946
        %v1978 = vpop.xlane.xlu0 %1977
        %1979 = vadd.xlane.f32.xlu0 %v1948
        %v1980 = vpop.xlane.xlu0 %1979
        %1981 = vadd.xlane.f32.xlu0 %v1950
        %v1982 = vpop.xlane.xlu0 %1981
        %1983 = vadd.xlane.f32.xlu0 %v1952
        %v1984 = vpop.xlane.xlu0 %1983
        %1985 = vadd.xlane.f32.xlu0 %v1954
        %v1986 = vpop.xlane.xlu0 %1985
        %v1987 = vpack.c.bf16 %v1926, %v1924
        %v1988 = vpack.c.bf16 %v1930, %v1928
        %v1989 = vpack.c.bf16 %v1934, %v1932
        %v1990 = vpack.c.bf16 %v1938, %v1936
        %v1991 = vpack.c.bf16 %v1942, %v1940
        %v1992 = vpack.c.bf16 %v1946, %v1944
        %v1993 = vpack.c.bf16 %v1950, %v1948
        %v1994 = vpack.c.bf16 %v1954, %v1952
        %v2011 = vunpack.c.l.b16 %v1724
        %v2012 = vunpack.c.l.b16 %v1725
        %v2013 = vunpack.c.l.b16 %v1726
        %v2014 = vunpack.c.l.b16 %v1727
        %v2015 = vunpack.c.l.b16 %v1728
        %v2016 = vunpack.c.l.b16 %v1729
        %v2017 = vunpack.c.l.b16 %v1730
        %v2018 = vunpack.c.l.b16 %v1731
        %v2019 = vunpack.c.l.b16 %v1732
        %v2020 = vunpack.c.l.b16 %v1733
        %v2021 = vunpack.c.l.b16 %v1734
        %v2022 = vunpack.c.l.b16 %v1735
        %v2023 = vunpack.c.l.b16 %v1736
        %v2024 = vunpack.c.l.b16 %v1737
        %v2025 = vunpack.c.l.b16 %v1738
        %v2026 = vunpack.c.l.b16 %v1739
        %v2027 = vpack.c.b16 %v2012, %v2011
        %v2028 = vpack.c.b16 %v2014, %v2013
        %v2029 = vpack.c.b16 %v2016, %v2015
        %v2030 = vpack.c.b16 %v2018, %v2017
        %v2031 = vpack.c.b16 %v2020, %v2019
        %v2032 = vpack.c.b16 %v2022, %v2021
        %v2033 = vpack.c.b16 %v2024, %v2023
        %v2034 = vpack.c.b16 %v2026, %v2025
        %2035 = vrot.lane.b32.xlu0 %v2027, 96
        %v2036 = vpop.permute.xlu0 %2035
        %2037 = vrot.lane.b32.xlu0 %v2028, 96
        %v2038 = vpop.permute.xlu0 %2037
        %2039 = vrot.lane.b32.xlu0 %v2029, 96
        %v2040 = vpop.permute.xlu0 %2039
        %2041 = vrot.lane.b32.xlu0 %v2030, 96
        %v2042 = vpop.permute.xlu0 %2041
        %2043 = vrot.lane.b32.xlu0 %v2031, 96
        %v2044 = vpop.permute.xlu0 %2043
        %2045 = vrot.lane.b32.xlu0 %v2032, 96
        %v2046 = vpop.permute.xlu0 %2045
        %2047 = vrot.lane.b32.xlu0 %v2033, 96
        %v2048 = vpop.permute.xlu0 %2047
        %2049 = vrot.lane.b32.xlu0 %v2034, 96
        %v2050 = vpop.permute.xlu0 %2049
        %2059 = vmatpush.bf16.msra.mxu0 %v2050
        %2060 = vmatpush.bf16.msra.mxu0 %v2048
        %2061 = vmatpush.bf16.msra.mxu0 %v2046
        %2062 = vmatpush.bf16.msra.mxu0 %v2044
        %2063 = vmatpush.bf16.msra.mxu0 %v2042
        %2064 = vmatpush.bf16.msra.mxu0 %v2040
        %2065 = vmatpush.bf16.msra.mxu0 %v2038
        %2066 = vmatpush.bf16.msra.mxu0 %v2036
        %2067 = vmatmul.bf16.gmra.mxu0 %v1987
        %v2068 = vpop.f32.mrf.mxu0
        %v2069 = vadd.f32 0.0, %v2068
        %v2070 = vpop.f32.mrf.mxu0
        %v2071 = vadd.f32 0.0, %v2070
        %2072 = vmatmul.bf16.gmra.mxu0 %v1988
        %v2073 = vpop.f32.mrf.mxu0
        %v2074 = vadd.f32 0.0, %v2073
        %v2075 = vpop.f32.mrf.mxu0
        %v2076 = vadd.f32 0.0, %v2075
        %2077 = vmatmul.bf16.gmra.mxu0 %v1989
        %v2078 = vpop.f32.mrf.mxu0
        %v2079 = vadd.f32 0.0, %v2078
        %v2080 = vpop.f32.mrf.mxu0
        %v2081 = vadd.f32 0.0, %v2080
        %2082 = vmatmul.bf16.gmra.mxu0 %v1990
        %v2083 = vpop.f32.mrf.mxu0
        %v2084 = vadd.f32 0.0, %v2083
        %v2085 = vpop.f32.mrf.mxu0
        %v2086 = vadd.f32 0.0, %v2085
        %2087 = vmatmul.bf16.gmra.mxu0 %v1991
        %v2088 = vpop.f32.mrf.mxu0
        %v2089 = vadd.f32 0.0, %v2088
        %v2090 = vpop.f32.mrf.mxu0
        %v2091 = vadd.f32 0.0, %v2090
        %2092 = vmatmul.bf16.gmra.mxu0 %v1992
        %v2093 = vpop.f32.mrf.mxu0
        %v2094 = vadd.f32 0.0, %v2093
        %v2095 = vpop.f32.mrf.mxu0
        %v2096 = vadd.f32 0.0, %v2095
        %2097 = vmatmul.bf16.gmra.mxu0 %v1993
        %v2098 = vpop.f32.mrf.mxu0
        %v2099 = vadd.f32 0.0, %v2098
        %v2100 = vpop.f32.mrf.mxu0
        %v2101 = vadd.f32 0.0, %v2100
        %2102 = vmatmul.bf16.gmra.mxu0 %v1994
        %v2103 = vpop.f32.mrf.mxu0
        %v2104 = vadd.f32 0.0, %v2103
        %v2105 = vpop.f32.mrf.mxu0
        %v2106 = vadd.f32 0.0, %v2105
        %2107 = vdwg.mxu0
        %v2108 = vrcp.pop %v1956
        %v2109 = vrcp.pop %v1958
        %v2110 = vrcp.pop %v1960
        %v2111 = vrcp.pop %v1962
        %v2112 = vrcp.pop %v1964
        %v2113 = vrcp.pop %v1966
        %v2114 = vrcp.pop %v1968
        %v2115 = vrcp.pop %v1970
        %v2116 = vrcp.pop %v1972
        %v2117 = vrcp.pop %v1974
        %v2118 = vrcp.pop %v1976
        %v2119 = vrcp.pop %v1978
        %v2120 = vrcp.pop %v1980
        %v2121 = vrcp.pop %v1982
        %v2122 = vrcp.pop %v1984
        %v2123 = vrcp.pop %v1986
        %v2124 = vmul.f32 %v2069, %v2108
        %v2125 = vmul.f32 %v2071, %v2109
        %v2126 = vmul.f32 %v2074, %v2110
        %v2127 = vmul.f32 %v2076, %v2111
        %v2128 = vmul.f32 %v2079, %v2112
        %v2129 = vmul.f32 %v2081, %v2113
        %v2130 = vmul.f32 %v2084, %v2114
        %v2131 = vmul.f32 %v2086, %v2115
        %v2132 = vmul.f32 %v2089, %v2116
        %v2133 = vmul.f32 %v2091, %v2117
        %v2134 = vmul.f32 %v2094, %v2118
        %v2135 = vmul.f32 %v2096, %v2119
        %v2136 = vmul.f32 %v2099, %v2120
        %v2137 = vmul.f32 %v2101, %v2121
        %v2138 = vmul.f32 %v2104, %v2122
        %v2139 = vmul.f32 %v2106, %v2123
        %v2140 = vpack.c.bf16 %v2124, %v2124
        %v2141 = vpack.c.bf16 %v2125, %v2125
        %v2142 = vpack.c.bf16 %v2126, %v2126
        %v2143 = vpack.c.bf16 %v2127, %v2127
        %v2144 = vpack.c.bf16 %v2128, %v2128
        %v2145 = vpack.c.bf16 %v2129, %v2129
        %v2146 = vpack.c.bf16 %v2130, %v2130
        %v2147 = vpack.c.bf16 %v2131, %v2131
        %v2148 = vpack.c.bf16 %v2132, %v2132
        %v2149 = vpack.c.bf16 %v2133, %v2133
        %v2150 = vpack.c.bf16 %v2134, %v2134
        %v2151 = vpack.c.bf16 %v2135, %v2135
        %v2152 = vpack.c.bf16 %v2136, %v2136
        %v2153 = vpack.c.bf16 %v2137, %v2137
        %v2154 = vpack.c.bf16 %v2138, %v2138
        %v2155 = vpack.c.bf16 %v2139, %v2139
        %2172 = vrot.lane.b32.xlu0 %v2140, 32
        %v2173 = vpop.permute.xlu0 %2172
        %2174 = vrot.lane.b32.xlu0 %v2141, 32
        %v2175 = vpop.permute.xlu0 %2174
        %2176 = vrot.lane.b32.xlu0 %v2142, 32
        %v2177 = vpop.permute.xlu0 %2176
        %2178 = vrot.lane.b32.xlu0 %v2143, 32
        %v2179 = vpop.permute.xlu0 %2178
        %2180 = vrot.lane.b32.xlu0 %v2144, 32
        %v2181 = vpop.permute.xlu0 %2180
        %2182 = vrot.lane.b32.xlu0 %v2145, 32
        %v2183 = vpop.permute.xlu0 %2182
        %2184 = vrot.lane.b32.xlu0 %v2146, 32
        %v2185 = vpop.permute.xlu0 %2184
        %2186 = vrot.lane.b32.xlu0 %v2147, 32
        %v2187 = vpop.permute.xlu0 %2186
        %2188 = vrot.lane.b32.xlu0 %v2148, 32
        %v2189 = vpop.permute.xlu0 %2188
        %2190 = vrot.lane.b32.xlu0 %v2149, 32
        %v2191 = vpop.permute.xlu0 %2190
        %2192 = vrot.lane.b32.xlu0 %v2150, 32
        %v2193 = vpop.permute.xlu0 %2192
        %2194 = vrot.lane.b32.xlu0 %v2151, 32
        %v2195 = vpop.permute.xlu0 %2194
        %2196 = vrot.lane.b32.xlu0 %v2152, 32
        %v2197 = vpop.permute.xlu0 %2196
        %2198 = vrot.lane.b32.xlu0 %v2153, 32
        %v2199 = vpop.permute.xlu0 %2198
        %2200 = vrot.lane.b32.xlu0 %v2154, 32
        %v2201 = vpop.permute.xlu0 %2200
        %2202 = vrot.lane.b32.xlu0 %v2155, 32
        %v2203 = vpop.permute.xlu0 %2202
        %vm2220 = vcmask 388352
        %2221 = vst.msk [vmem:[#allocation3] sm:$0xf] %vm2220, %v2173
        %2222 = vst.msk [vmem:[#allocation3 + $0x4] sm:$0xf] %vm2220, %v2175
        %2223 = vst.msk [vmem:[#allocation3 + $0x8] sm:$0xf] %vm2220, %v2177
        %2224 = vst.msk [vmem:[#allocation3 + $0xc] sm:$0xf] %vm2220, %v2179
        %2225 = vst.msk [vmem:[#allocation3 + $0x10] sm:$0xf] %vm2220, %v2181
        %2226 = vst.msk [vmem:[#allocation3 + $0x14] sm:$0xf] %vm2220, %v2183
        %2227 = vst.msk [vmem:[#allocation3 + $0x18] sm:$0xf] %vm2220, %v2185
        %2228 = vst.msk [vmem:[#allocation3 + $0x1c] sm:$0xf] %vm2220, %v2187
        %2229 = vst.msk [vmem:[#allocation3 + $0x20] sm:$0xf] %vm2220, %v2189
        %2230 = vst.msk [vmem:[#allocation3 + $0x24] sm:$0xf] %vm2220, %v2191
        %2231 = vst.msk [vmem:[#allocation3 + $0x28] sm:$0xf] %vm2220, %v2193
        %2232 = vst.msk [vmem:[#allocation3 + $0x2c] sm:$0xf] %vm2220, %v2195
        %2233 = vst.msk [vmem:[#allocation3 + $0x30] sm:$0xf] %vm2220, %v2197
        %2234 = vst.msk [vmem:[#allocation3 + $0x34] sm:$0xf] %vm2220, %v2199
        %2235 = vst.msk [vmem:[#allocation3 + $0x38] sm:$0xf] %vm2220, %v2201
        %2236 = vst.msk [vmem:[#allocation3 + $0x3c] sm:$0xf] %vm2220, %v2203
        %v2237 = vld [vmem:[#allocation2] sm:$0xf]
        %v2238 = vld [vmem:[#allocation2 + $0xc] sm:$0xf]
        %v2239 = vld [vmem:[#allocation2 + $0x18] sm:$0xf]
        %v2240 = vld [vmem:[#allocation2 + $0x24] sm:$0xf]
        %v2241 = vld [vmem:[#allocation2 + $0x30] sm:$0xf]
        %v2242 = vld [vmem:[#allocation2 + $0x3c] sm:$0xf]
        %v2243 = vld [vmem:[#allocation2 + $0x48] sm:$0xf]
        %v2244 = vld [vmem:[#allocation2 + $0x54] sm:$0xf]
        %v2245 = vld [vmem:[#allocation2 + $0x60] sm:$0xf]
        %v2246 = vld [vmem:[#allocation2 + $0x6c] sm:$0xf]
        %v2247 = vld [vmem:[#allocation2 + $0x78] sm:$0xf]
        %v2248 = vld [vmem:[#allocation2 + $0x84] sm:$0xf]
        %v2249 = vld [vmem:[#allocation2 + $0x90] sm:$0xf]
        %v2250 = vld [vmem:[#allocation2 + $0x9c] sm:$0xf]
        %v2251 = vld [vmem:[#allocation2 + $0xa8] sm:$0xf]
        %v2252 = vld [vmem:[#allocation2 + $0xb4] sm:$0xf]
        %v2253 = vld [vmem:[#allocation2 + $0x8] sm:$0xf]
        %v2254 = vld [vmem:[#allocation2 + $0x14] sm:$0xf]
        %v2255 = vld [vmem:[#allocation2 + $0x20] sm:$0xf]
        %v2256 = vld [vmem:[#allocation2 + $0x2c] sm:$0xf]
        %v2257 = vld [vmem:[#allocation2 + $0x38] sm:$0xf]
        %v2258 = vld [vmem:[#allocation2 + $0x44] sm:$0xf]
        %v2259 = vld [vmem:[#allocation2 + $0x50] sm:$0xf]
        %v2260 = vld [vmem:[#allocation2 + $0x5c] sm:$0xf]
        %v2261 = vld [vmem:[#allocation2 + $0x68] sm:$0xf]
        %v2262 = vld [vmem:[#allocation2 + $0x74] sm:$0xf]
        %v2263 = vld [vmem:[#allocation2 + $0x80] sm:$0xf]
        %v2264 = vld [vmem:[#allocation2 + $0x8c] sm:$0xf]
        %v2265 = vld [vmem:[#allocation2 + $0x98] sm:$0xf]
        %v2266 = vld [vmem:[#allocation2 + $0xa4] sm:$0xf]
        %v2267 = vld [vmem:[#allocation2 + $0xb0] sm:$0xf]
        %v2268 = vld [vmem:[#allocation2 + $0xbc] sm:$0xf]
        %v2285 = vunpack.c.l.b16 %v2237
        %v2286 = vunpack.c.l.b16 %v2238
        %v2287 = vunpack.c.l.b16 %v2239
        %v2288 = vunpack.c.l.b16 %v2240
        %v2289 = vunpack.c.l.b16 %v2241
        %v2290 = vunpack.c.l.b16 %v2242
        %v2291 = vunpack.c.l.b16 %v2243
        %v2292 = vunpack.c.l.b16 %v2244
        %v2293 = vunpack.c.l.b16 %v2245
        %v2294 = vunpack.c.l.b16 %v2246
        %v2295 = vunpack.c.l.b16 %v2247
        %v2296 = vunpack.c.l.b16 %v2248
        %v2297 = vunpack.c.l.b16 %v2249
        %v2298 = vunpack.c.l.b16 %v2250
        %v2299 = vunpack.c.l.b16 %v2251
        %v2300 = vunpack.c.l.b16 %v2252
        %v2301 = vpack.c.b16 %v2286, %v2285
        %v2302 = vpack.c.b16 %v2288, %v2287
        %v2303 = vpack.c.b16 %v2290, %v2289
        %v2304 = vpack.c.b16 %v2292, %v2291
        %v2305 = vpack.c.b16 %v2294, %v2293
        %v2306 = vpack.c.b16 %v2296, %v2295
        %v2307 = vpack.c.b16 %v2298, %v2297
        %v2308 = vpack.c.b16 %v2300, %v2299
        %2309 = vrot.lane.b32.xlu0 %v2301, 80
        %v2310 = vpop.permute.xlu0 %2309
        %2311 = vrot.lane.b32.xlu0 %v2302, 80
        %v2312 = vpop.permute.xlu0 %2311
        %2313 = vrot.lane.b32.xlu0 %v2303, 80
        %v2314 = vpop.permute.xlu0 %2313
        %2315 = vrot.lane.b32.xlu0 %v2304, 80
        %v2316 = vpop.permute.xlu0 %2315
        %2317 = vrot.lane.b32.xlu0 %v2305, 80
        %v2318 = vpop.permute.xlu0 %2317
        %2319 = vrot.lane.b32.xlu0 %v2306, 80
        %v2320 = vpop.permute.xlu0 %2319
        %2321 = vrot.lane.b32.xlu0 %v2307, 80
        %v2322 = vpop.permute.xlu0 %2321
        %2323 = vrot.lane.b32.xlu0 %v2308, 80
        %v2324 = vpop.permute.xlu0 %2323
        %v2327 = vunpack.c.l.b16 %v671
        %v2328 = vunpack.c.l.b16 %v672
        %v2329 = vpack.c.b16 %v2328, %v2327
        %v2332 = vsel %vm823, %v2310, 0
        %v2335 = vsel %vm823, %v2312, 0
        %v2338 = vsel %vm823, %v2314, 0
        %v2341 = vsel %vm823, %v2316, 0
        %v2344 = vsel %vm823, %v2318, 0
        %v2347 = vsel %vm823, %v2320, 0
        %v2350 = vsel %vm823, %v2322, 0
        %v2353 = vsel %vm823, %v2324, 0
        %2355 = vmatpush.bf16.msra.mxu0 0
        %2356 = vmatpush.bf16.msra.mxu0 0
        %2357 = vmatpush.bf16.msra.mxu0 0
        %2358 = vmatpush.bf16.msra.mxu0 0
        %2359 = vmatpush.bf16.msra.mxu0 0
        %2360 = vmatpush.bf16.msra.mxu0 0
        %2361 = vmatpush.bf16.msra.mxu0 0
        %2362 = vmatpush.bf16.msra.mxu0 %v2329
        %2363 = vmatmul.bf16.gmra.mxu0 %v2332
        %v2364 = vpop.f32.mrf.mxu0
        %v2365 = vadd.f32 0.0, %v2364
        %v2366 = vpop.f32.mrf.mxu0
        %v2367 = vadd.f32 0.0, %v2366
        %2368 = vmatmul.bf16.gmra.mxu0 %v2335
        %v2369 = vpop.f32.mrf.mxu0
        %v2370 = vadd.f32 0.0, %v2369
        %v2371 = vpop.f32.mrf.mxu0
        %v2372 = vadd.f32 0.0, %v2371
        %2373 = vmatmul.bf16.gmra.mxu0 %v2338
        %v2374 = vpop.f32.mrf.mxu0
        %v2375 = vadd.f32 0.0, %v2374
        %v2376 = vpop.f32.mrf.mxu0
        %v2377 = vadd.f32 0.0, %v2376
        %2378 = vmatmul.bf16.gmra.mxu0 %v2341
        %v2379 = vpop.f32.mrf.mxu0
        %v2380 = vadd.f32 0.0, %v2379
        %v2381 = vpop.f32.mrf.mxu0
        %v2382 = vadd.f32 0.0, %v2381
        %2383 = vmatmul.bf16.gmra.mxu0 %v2344
        %v2384 = vpop.f32.mrf.mxu0
        %v2385 = vadd.f32 0.0, %v2384
        %v2386 = vpop.f32.mrf.mxu0
        %v2387 = vadd.f32 0.0, %v2386
        %2388 = vmatmul.bf16.gmra.mxu0 %v2347
        %v2389 = vpop.f32.mrf.mxu0
        %v2390 = vadd.f32 0.0, %v2389
        %v2391 = vpop.f32.mrf.mxu0
        %v2392 = vadd.f32 0.0, %v2391
        %2393 = vmatmul.bf16.gmra.mxu0 %v2350
        %v2394 = vpop.f32.mrf.mxu0
        %v2395 = vadd.f32 0.0, %v2394
        %v2396 = vpop.f32.mrf.mxu0
        %v2397 = vadd.f32 0.0, %v2396
        %2398 = vmatmul.bf16.gmra.mxu0 %v2353
        %v2399 = vpop.f32.mrf.mxu0
        %v2400 = vadd.f32 0.0, %v2399
        %v2401 = vpop.f32.mrf.mxu0
        %v2402 = vadd.f32 0.0, %v2401
        %2403 = vdwg.mxu0
        %2404 = vmax.xlane.f32.xlu0 %v2365
        %v2405 = vpop.xlane.xlu0 %2404
        %2406 = vmax.xlane.f32.xlu0 %v2367
        %v2407 = vpop.xlane.xlu0 %2406
        %2408 = vmax.xlane.f32.xlu0 %v2370
        %v2409 = vpop.xlane.xlu0 %2408
        %2410 = vmax.xlane.f32.xlu0 %v2372
        %v2411 = vpop.xlane.xlu0 %2410
        %2412 = vmax.xlane.f32.xlu0 %v2375
        %v2413 = vpop.xlane.xlu0 %2412
        %2414 = vmax.xlane.f32.xlu0 %v2377
        %v2415 = vpop.xlane.xlu0 %2414
        %2416 = vmax.xlane.f32.xlu0 %v2380
        %v2417 = vpop.xlane.xlu0 %2416
        %2418 = vmax.xlane.f32.xlu0 %v2382
        %v2419 = vpop.xlane.xlu0 %2418
        %2420 = vmax.xlane.f32.xlu0 %v2385
        %v2421 = vpop.xlane.xlu0 %2420
        %2422 = vmax.xlane.f32.xlu0 %v2387
        %v2423 = vpop.xlane.xlu0 %2422
        %2424 = vmax.xlane.f32.xlu0 %v2390
        %v2425 = vpop.xlane.xlu0 %2424
        %2426 = vmax.xlane.f32.xlu0 %v2392
        %v2427 = vpop.xlane.xlu0 %2426
        %2428 = vmax.xlane.f32.xlu0 %v2395
        %v2429 = vpop.xlane.xlu0 %2428
        %2430 = vmax.xlane.f32.xlu0 %v2397
        %v2431 = vpop.xlane.xlu0 %2430
        %2432 = vmax.xlane.f32.xlu0 %v2400
        %v2433 = vpop.xlane.xlu0 %2432
        %2434 = vmax.xlane.f32.xlu0 %v2402
        %v2435 = vpop.xlane.xlu0 %2434
        %v2436 = vsub.f32 %v2365, %v2405
        %v2437 = vsub.f32 %v2367, %v2407
        %v2438 = vsub.f32 %v2370, %v2409
        %v2439 = vsub.f32 %v2372, %v2411
        %v2440 = vsub.f32 %v2375, %v2413
        %v2441 = vsub.f32 %v2377, %v2415
        %v2442 = vsub.f32 %v2380, %v2417
        %v2443 = vsub.f32 %v2382, %v2419
        %v2444 = vsub.f32 %v2385, %v2421
        %v2445 = vsub.f32 %v2387, %v2423
        %v2446 = vsub.f32 %v2390, %v2425
        %v2447 = vsub.f32 %v2392, %v2427
        %v2448 = vsub.f32 %v2395, %v2429
        %v2449 = vsub.f32 %v2397, %v2431
        %v2450 = vsub.f32 %v2400, %v2433
        %v2451 = vsub.f32 %v2402, %v2435
        %v2452 = vmul.f32 %v2436, 1.442695
        %v2453 = vpow.pop %v2452
        %v2454 = vmul.f32 %v2437, 1.442695
        %v2455 = vpow.pop %v2454
        %v2456 = vmul.f32 %v2438, 1.442695
        %v2457 = vpow.pop %v2456
        %v2458 = vmul.f32 %v2439, 1.442695
        %v2459 = vpow.pop %v2458
        %v2460 = vmul.f32 %v2440, 1.442695
        %v2461 = vpow.pop %v2460
        %v2462 = vmul.f32 %v2441, 1.442695
        %v2463 = vpow.pop %v2462
        %v2464 = vmul.f32 %v2442, 1.442695
        %v2465 = vpow.pop %v2464
        %v2466 = vmul.f32 %v2443, 1.442695
        %v2467 = vpow.pop %v2466
        %v2468 = vmul.f32 %v2444, 1.442695
        %v2469 = vpow.pop %v2468
        %v2470 = vmul.f32 %v2445, 1.442695
        %v2471 = vpow.pop %v2470
        %v2472 = vmul.f32 %v2446, 1.442695
        %v2473 = vpow.pop %v2472
        %v2474 = vmul.f32 %v2447, 1.442695
        %v2475 = vpow.pop %v2474
        %v2476 = vmul.f32 %v2448, 1.442695
        %v2477 = vpow.pop %v2476
        %v2478 = vmul.f32 %v2449, 1.442695
        %v2479 = vpow.pop %v2478
        %v2480 = vmul.f32 %v2450, 1.442695
        %v2481 = vpow.pop %v2480
        %v2482 = vmul.f32 %v2451, 1.442695
        %v2483 = vpow.pop %v2482
        %2484 = vadd.xlane.f32.xlu0 %v2453
        %v2485 = vpop.xlane.xlu0 %2484
        %2486 = vadd.xlane.f32.xlu0 %v2455
        %v2487 = vpop.xlane.xlu0 %2486
        %2488 = vadd.xlane.f32.xlu0 %v2457
        %v2489 = vpop.xlane.xlu0 %2488
        %2490 = vadd.xlane.f32.xlu0 %v2459
        %v2491 = vpop.xlane.xlu0 %2490
        %2492 = vadd.xlane.f32.xlu0 %v2461
        %v2493 = vpop.xlane.xlu0 %2492
        %2494 = vadd.xlane.f32.xlu0 %v2463
        %v2495 = vpop.xlane.xlu0 %2494
        %2496 = vadd.xlane.f32.xlu0 %v2465
        %v2497 = vpop.xlane.xlu0 %2496
        %2498 = vadd.xlane.f32.xlu0 %v2467
        %v2499 = vpop.xlane.xlu0 %2498
        %2500 = vadd.xlane.f32.xlu0 %v2469
        %v2501 = vpop.xlane.xlu0 %2500
        %2502 = vadd.xlane.f32.xlu0 %v2471
        %v2503 = vpop.xlane.xlu0 %2502
        %2504 = vadd.xlane.f32.xlu0 %v2473
        %v2505 = vpop.xlane.xlu0 %2504
        %2506 = vadd.xlane.f32.xlu0 %v2475
        %v2507 = vpop.xlane.xlu0 %2506
        %2508 = vadd.xlane.f32.xlu0 %v2477
        %v2509 = vpop.xlane.xlu0 %2508
        %2510 = vadd.xlane.f32.xlu0 %v2479
        %v2511 = vpop.xlane.xlu0 %2510
        %2512 = vadd.xlane.f32.xlu0 %v2481
        %v2513 = vpop.xlane.xlu0 %2512
        %2514 = vadd.xlane.f32.xlu0 %v2483
        %v2515 = vpop.xlane.xlu0 %2514
        %v2516 = vpack.c.bf16 %v2455, %v2453
        %v2517 = vpack.c.bf16 %v2459, %v2457
        %v2518 = vpack.c.bf16 %v2463, %v2461
        %v2519 = vpack.c.bf16 %v2467, %v2465
        %v2520 = vpack.c.bf16 %v2471, %v2469
        %v2521 = vpack.c.bf16 %v2475, %v2473
        %v2522 = vpack.c.bf16 %v2479, %v2477
        %v2523 = vpack.c.bf16 %v2483, %v2481
        %v2540 = vunpack.c.l.b16 %v2253
        %v2541 = vunpack.c.l.b16 %v2254
        %v2542 = vunpack.c.l.b16 %v2255
        %v2543 = vunpack.c.l.b16 %v2256
        %v2544 = vunpack.c.l.b16 %v2257
        %v2545 = vunpack.c.l.b16 %v2258
        %v2546 = vunpack.c.l.b16 %v2259
        %v2547 = vunpack.c.l.b16 %v2260
        %v2548 = vunpack.c.l.b16 %v2261
        %v2549 = vunpack.c.l.b16 %v2262
        %v2550 = vunpack.c.l.b16 %v2263
        %v2551 = vunpack.c.l.b16 %v2264
        %v2552 = vunpack.c.l.b16 %v2265
        %v2553 = vunpack.c.l.b16 %v2266
        %v2554 = vunpack.c.l.b16 %v2267
        %v2555 = vunpack.c.l.b16 %v2268
        %v2556 = vpack.c.b16 %v2541, %v2540
        %v2557 = vpack.c.b16 %v2543, %v2542
        %v2558 = vpack.c.b16 %v2545, %v2544
        %v2559 = vpack.c.b16 %v2547, %v2546
        %v2560 = vpack.c.b16 %v2549, %v2548
        %v2561 = vpack.c.b16 %v2551, %v2550
        %v2562 = vpack.c.b16 %v2553, %v2552
        %v2563 = vpack.c.b16 %v2555, %v2554
        %2564 = vrot.lane.b32.xlu0 %v2556, 80
        %v2565 = vpop.permute.xlu0 %2564
        %2566 = vrot.lane.b32.xlu0 %v2557, 80
        %v2567 = vpop.permute.xlu0 %2566
        %2568 = vrot.lane.b32.xlu0 %v2558, 80
        %v2569 = vpop.permute.xlu0 %2568
        %2570 = vrot.lane.b32.xlu0 %v2559, 80
        %v2571 = vpop.permute.xlu0 %2570
        %2572 = vrot.lane.b32.xlu0 %v2560, 80
        %v2573 = vpop.permute.xlu0 %2572
        %2574 = vrot.lane.b32.xlu0 %v2561, 80
        %v2575 = vpop.permute.xlu0 %2574
        %2576 = vrot.lane.b32.xlu0 %v2562, 80
        %v2577 = vpop.permute.xlu0 %2576
        %2578 = vrot.lane.b32.xlu0 %v2563, 80
        %v2579 = vpop.permute.xlu0 %2578
        %2588 = vmatpush.bf16.msra.mxu0 %v2579
        %2589 = vmatpush.bf16.msra.mxu0 %v2577
        %2590 = vmatpush.bf16.msra.mxu0 %v2575
        %2591 = vmatpush.bf16.msra.mxu0 %v2573
        %2592 = vmatpush.bf16.msra.mxu0 %v2571
        %2593 = vmatpush.bf16.msra.mxu0 %v2569
        %2594 = vmatpush.bf16.msra.mxu0 %v2567
        %2595 = vmatpush.bf16.msra.mxu0 %v2565
        %2596 = vmatmul.bf16.gmra.mxu0 %v2516
        %v2597 = vpop.f32.mrf.mxu0
        %v2598 = vadd.f32 0.0, %v2597
        %v2599 = vpop.f32.mrf.mxu0
        %v2600 = vadd.f32 0.0, %v2599
        %2601 = vmatmul.bf16.gmra.mxu0 %v2517
        %v2602 = vpop.f32.mrf.mxu0
        %v2603 = vadd.f32 0.0, %v2602
        %v2604 = vpop.f32.mrf.mxu0
        %v2605 = vadd.f32 0.0, %v2604
        %2606 = vmatmul.bf16.gmra.mxu0 %v2518
        %v2607 = vpop.f32.mrf.mxu0
        %v2608 = vadd.f32 0.0, %v2607
        %v2609 = vpop.f32.mrf.mxu0
        %v2610 = vadd.f32 0.0, %v2609
        %2611 = vmatmul.bf16.gmra.mxu0 %v2519
        %v2612 = vpop.f32.mrf.mxu0
        %v2613 = vadd.f32 0.0, %v2612
        %v2614 = vpop.f32.mrf.mxu0
        %v2615 = vadd.f32 0.0, %v2614
        %2616 = vmatmul.bf16.gmra.mxu0 %v2520
        %v2617 = vpop.f32.mrf.mxu0
        %v2618 = vadd.f32 0.0, %v2617
        %v2619 = vpop.f32.mrf.mxu0
        %v2620 = vadd.f32 0.0, %v2619
        %2621 = vmatmul.bf16.gmra.mxu0 %v2521
        %v2622 = vpop.f32.mrf.mxu0
        %v2623 = vadd.f32 0.0, %v2622
        %v2624 = vpop.f32.mrf.mxu0
        %v2625 = vadd.f32 0.0, %v2624
        %2626 = vmatmul.bf16.gmra.mxu0 %v2522
        %v2627 = vpop.f32.mrf.mxu0
        %v2628 = vadd.f32 0.0, %v2627
        %v2629 = vpop.f32.mrf.mxu0
        %v2630 = vadd.f32 0.0, %v2629
        %2631 = vmatmul.bf16.gmra.mxu0 %v2523
        %v2632 = vpop.f32.mrf.mxu0
        %v2633 = vadd.f32 0.0, %v2632
        %v2634 = vpop.f32.mrf.mxu0
        %v2635 = vadd.f32 0.0, %v2634
        %2636 = vdwg.mxu0
        %v2637 = vrcp.pop %v2485
        %v2638 = vrcp.pop %v2487
        %v2639 = vrcp.pop %v2489
        %v2640 = vrcp.pop %v2491
        %v2641 = vrcp.pop %v2493
        %v2642 = vrcp.pop %v2495
        %v2643 = vrcp.pop %v2497
        %v2644 = vrcp.pop %v2499
        %v2645 = vrcp.pop %v2501
        %v2646 = vrcp.pop %v2503
        %v2647 = vrcp.pop %v2505
        %v2648 = vrcp.pop %v2507
        %v2649 = vrcp.pop %v2509
        %v2650 = vrcp.pop %v2511
        %v2651 = vrcp.pop %v2513
        %v2652 = vrcp.pop %v2515
        %v2653 = vmul.f32 %v2598, %v2637
        %v2654 = vmul.f32 %v2600, %v2638
        %v2655 = vmul.f32 %v2603, %v2639
        %v2656 = vmul.f32 %v2605, %v2640
        %v2657 = vmul.f32 %v2608, %v2641
        %v2658 = vmul.f32 %v2610, %v2642
        %v2659 = vmul.f32 %v2613, %v2643
        %v2660 = vmul.f32 %v2615, %v2644
        %v2661 = vmul.f32 %v2618, %v2645
        %v2662 = vmul.f32 %v2620, %v2646
        %v2663 = vmul.f32 %v2623, %v2647
        %v2664 = vmul.f32 %v2625, %v2648
        %v2665 = vmul.f32 %v2628, %v2649
        %v2666 = vmul.f32 %v2630, %v2650
        %v2667 = vmul.f32 %v2633, %v2651
        %v2668 = vmul.f32 %v2635, %v2652
        %v2669 = vpack.c.bf16 %v2653, %v2653
        %v2670 = vpack.c.bf16 %v2654, %v2654
        %v2671 = vpack.c.bf16 %v2655, %v2655
        %v2672 = vpack.c.bf16 %v2656, %v2656
        %v2673 = vpack.c.bf16 %v2657, %v2657
        %v2674 = vpack.c.bf16 %v2658, %v2658
        %v2675 = vpack.c.bf16 %v2659, %v2659
        %v2676 = vpack.c.bf16 %v2660, %v2660
        %v2677 = vpack.c.bf16 %v2661, %v2661
        %v2678 = vpack.c.bf16 %v2662, %v2662
        %v2679 = vpack.c.bf16 %v2663, %v2663
        %v2680 = vpack.c.bf16 %v2664, %v2664
        %v2681 = vpack.c.bf16 %v2665, %v2665
        %v2682 = vpack.c.bf16 %v2666, %v2666
        %v2683 = vpack.c.bf16 %v2667, %v2667
        %v2684 = vpack.c.bf16 %v2668, %v2668
        %2701 = vrot.lane.b32.xlu0 %v2669, 48
        %v2702 = vpop.permute.xlu0 %2701
        %2703 = vrot.lane.b32.xlu0 %v2670, 48
        %v2704 = vpop.permute.xlu0 %2703
        %2705 = vrot.lane.b32.xlu0 %v2671, 48
        %v2706 = vpop.permute.xlu0 %2705
        %2707 = vrot.lane.b32.xlu0 %v2672, 48
        %v2708 = vpop.permute.xlu0 %2707
        %2709 = vrot.lane.b32.xlu0 %v2673, 48
        %v2710 = vpop.permute.xlu0 %2709
        %2711 = vrot.lane.b32.xlu0 %v2674, 48
        %v2712 = vpop.permute.xlu0 %2711
        %2713 = vrot.lane.b32.xlu0 %v2675, 48
        %v2714 = vpop.permute.xlu0 %2713
        %2715 = vrot.lane.b32.xlu0 %v2676, 48
        %v2716 = vpop.permute.xlu0 %2715
        %2717 = vrot.lane.b32.xlu0 %v2677, 48
        %v2718 = vpop.permute.xlu0 %2717
        %2719 = vrot.lane.b32.xlu0 %v2678, 48
        %v2720 = vpop.permute.xlu0 %2719
        %2721 = vrot.lane.b32.xlu0 %v2679, 48
        %v2722 = vpop.permute.xlu0 %2721
        %2723 = vrot.lane.b32.xlu0 %v2680, 48
        %v2724 = vpop.permute.xlu0 %2723
        %2725 = vrot.lane.b32.xlu0 %v2681, 48
        %v2726 = vpop.permute.xlu0 %2725
        %2727 = vrot.lane.b32.xlu0 %v2682, 48
        %v2728 = vpop.permute.xlu0 %2727
        %2729 = vrot.lane.b32.xlu0 %v2683, 48
        %v2730 = vpop.permute.xlu0 %2729
        %2731 = vrot.lane.b32.xlu0 %v2684, 48
        %v2732 = vpop.permute.xlu0 %2731
        %vm2749 = vcmask 519552
        %2750 = vst.msk [vmem:[#allocation3] sm:$0xf] %vm2749, %v2702
        %2751 = vst.msk [vmem:[#allocation3 + $0x4] sm:$0xf] %vm2749, %v2704
        %2752 = vst.msk [vmem:[#allocation3 + $0x8] sm:$0xf] %vm2749, %v2706
        %2753 = vst.msk [vmem:[#allocation3 + $0xc] sm:$0xf] %vm2749, %v2708
        %2754 = vst.msk [vmem:[#allocation3 + $0x10] sm:$0xf] %vm2749, %v2710
        %2755 = vst.msk [vmem:[#allocation3 + $0x14] sm:$0xf] %vm2749, %v2712
        %2756 = vst.msk [vmem:[#allocation3 + $0x18] sm:$0xf] %vm2749, %v2714
        %2757 = vst.msk [vmem:[#allocation3 + $0x1c] sm:$0xf] %vm2749, %v2716
        %2758 = vst.msk [vmem:[#allocation3 + $0x20] sm:$0xf] %vm2749, %v2718
        %2759 = vst.msk [vmem:[#allocation3 + $0x24] sm:$0xf] %vm2749, %v2720
        %2760 = vst.msk [vmem:[#allocation3 + $0x28] sm:$0xf] %vm2749, %v2722
        %2761 = vst.msk [vmem:[#allocation3 + $0x2c] sm:$0xf] %vm2749, %v2724
        %2762 = vst.msk [vmem:[#allocation3 + $0x30] sm:$0xf] %vm2749, %v2726
        %2763 = vst.msk [vmem:[#allocation3 + $0x34] sm:$0xf] %vm2749, %v2728
        %2764 = vst.msk [vmem:[#allocation3 + $0x38] sm:$0xf] %vm2749, %v2730
        %2765 = vst.msk [vmem:[#allocation3 + $0x3c] sm:$0xf] %vm2749, %v2732
        %v2766 = vld [vmem:[#allocation2] sm:$0xf]
        %v2767 = vld [vmem:[#allocation2 + $0xc] sm:$0xf]
        %v2768 = vld [vmem:[#allocation2 + $0x18] sm:$0xf]
        %v2769 = vld [vmem:[#allocation2 + $0x24] sm:$0xf]
        %v2770 = vld [vmem:[#allocation2 + $0x30] sm:$0xf]
        %v2771 = vld [vmem:[#allocation2 + $0x3c] sm:$0xf]
        %v2772 = vld [vmem:[#allocation2 + $0x48] sm:$0xf]
        %v2773 = vld [vmem:[#allocation2 + $0x54] sm:$0xf]
        %v2774 = vld [vmem:[#allocation2 + $0x60] sm:$0xf]
        %v2775 = vld [vmem:[#allocation2 + $0x6c] sm:$0xf]
        %v2776 = vld [vmem:[#allocation2 + $0x78] sm:$0xf]
        %v2777 = vld [vmem:[#allocation2 + $0x84] sm:$0xf]
        %v2778 = vld [vmem:[#allocation2 + $0x90] sm:$0xf]
        %v2779 = vld [vmem:[#allocation2 + $0x9c] sm:$0xf]
        %v2780 = vld [vmem:[#allocation2 + $0xa8] sm:$0xf]
        %v2781 = vld [vmem:[#allocation2 + $0xb4] sm:$0xf]
        %v2782 = vld [vmem:[#allocation2 + $0x8] sm:$0xf]
        %v2783 = vld [vmem:[#allocation2 + $0x14] sm:$0xf]
        %v2784 = vld [vmem:[#allocation2 + $0x20] sm:$0xf]
        %v2785 = vld [vmem:[#allocation2 + $0x2c] sm:$0xf]
        %v2786 = vld [vmem:[#allocation2 + $0x38] sm:$0xf]
        %v2787 = vld [vmem:[#allocation2 + $0x44] sm:$0xf]
        %v2788 = vld [vmem:[#allocation2 + $0x50] sm:$0xf]
        %v2789 = vld [vmem:[#allocation2 + $0x5c] sm:$0xf]
        %v2790 = vld [vmem:[#allocation2 + $0x68] sm:$0xf]
        %v2791 = vld [vmem:[#allocation2 + $0x74] sm:$0xf]
        %v2792 = vld [vmem:[#allocation2 + $0x80] sm:$0xf]
        %v2793 = vld [vmem:[#allocation2 + $0x8c] sm:$0xf]
        %v2794 = vld [vmem:[#allocation2 + $0x98] sm:$0xf]
        %v2795 = vld [vmem:[#allocation2 + $0xa4] sm:$0xf]
        %v2796 = vld [vmem:[#allocation2 + $0xb0] sm:$0xf]
        %v2797 = vld [vmem:[#allocation2 + $0xbc] sm:$0xf]
        %v2814 = vunpack.c.l.b16 %v2766
        %v2815 = vunpack.c.l.b16 %v2767
        %v2816 = vunpack.c.l.b16 %v2768
        %v2817 = vunpack.c.l.b16 %v2769
        %v2818 = vunpack.c.l.b16 %v2770
        %v2819 = vunpack.c.l.b16 %v2771
        %v2820 = vunpack.c.l.b16 %v2772
        %v2821 = vunpack.c.l.b16 %v2773
        %v2822 = vunpack.c.l.b16 %v2774
        %v2823 = vunpack.c.l.b16 %v2775
        %v2824 = vunpack.c.l.b16 %v2776
        %v2825 = vunpack.c.l.b16 %v2777
        %v2826 = vunpack.c.l.b16 %v2778
        %v2827 = vunpack.c.l.b16 %v2779
        %v2828 = vunpack.c.l.b16 %v2780
        %v2829 = vunpack.c.l.b16 %v2781
        %v2830 = vpack.c.b16 %v2815, %v2814
        %v2831 = vpack.c.b16 %v2817, %v2816
        %v2832 = vpack.c.b16 %v2819, %v2818
        %v2833 = vpack.c.b16 %v2821, %v2820
        %v2834 = vpack.c.b16 %v2823, %v2822
        %v2835 = vpack.c.b16 %v2825, %v2824
        %v2836 = vpack.c.b16 %v2827, %v2826
        %v2837 = vpack.c.b16 %v2829, %v2828
        %2838 = vrot.lane.b32.xlu0 %v2830, 64
        %v2839 = vpop.permute.xlu0 %2838
        %2840 = vrot.lane.b32.xlu0 %v2831, 64
        %v2841 = vpop.permute.xlu0 %2840
        %2842 = vrot.lane.b32.xlu0 %v2832, 64
        %v2843 = vpop.permute.xlu0 %2842
        %2844 = vrot.lane.b32.xlu0 %v2833, 64
        %v2845 = vpop.permute.xlu0 %2844
        %2846 = vrot.lane.b32.xlu0 %v2834, 64
        %v2847 = vpop.permute.xlu0 %2846
        %2848 = vrot.lane.b32.xlu0 %v2835, 64
        %v2849 = vpop.permute.xlu0 %2848
        %2850 = vrot.lane.b32.xlu0 %v2836, 64
        %v2851 = vpop.permute.xlu0 %2850
        %2852 = vrot.lane.b32.xlu0 %v2837, 64
        %v2853 = vpop.permute.xlu0 %2852
        %v2856 = vunpack.c.l.b16 %v673
        %v2857 = vunpack.c.l.b16 %v674
        %v2858 = vpack.c.b16 %v2857, %v2856
        %v2861 = vsel %vm823, %v2839, 0
        %v2864 = vsel %vm823, %v2841, 0
        %v2867 = vsel %vm823, %v2843, 0
        %v2870 = vsel %vm823, %v2845, 0
        %v2873 = vsel %vm823, %v2847, 0
        %v2876 = vsel %vm823, %v2849, 0
        %v2879 = vsel %vm823, %v2851, 0
        %v2882 = vsel %vm823, %v2853, 0
        %2884 = vmatpush.bf16.msra.mxu0 0
        %2885 = vmatpush.bf16.msra.mxu0 0
        %2886 = vmatpush.bf16.msra.mxu0 0
        %2887 = vmatpush.bf16.msra.mxu0 0
        %2888 = vmatpush.bf16.msra.mxu0 0
        %2889 = vmatpush.bf16.msra.mxu0 0
        %2890 = vmatpush.bf16.msra.mxu0 0
        %2891 = vmatpush.bf16.msra.mxu0 %v2858
        %2892 = vmatmul.bf16.gmra.mxu0 %v2861
        %v2893 = vpop.f32.mrf.mxu0
        %v2894 = vadd.f32 0.0, %v2893
        %v2895 = vpop.f32.mrf.mxu0
        %v2896 = vadd.f32 0.0, %v2895
        %2897 = vmatmul.bf16.gmra.mxu0 %v2864
        %v2898 = vpop.f32.mrf.mxu0
        %v2899 = vadd.f32 0.0, %v2898
        %v2900 = vpop.f32.mrf.mxu0
        %v2901 = vadd.f32 0.0, %v2900
        %2902 = vmatmul.bf16.gmra.mxu0 %v2867
        %v2903 = vpop.f32.mrf.mxu0
        %v2904 = vadd.f32 0.0, %v2903
        %v2905 = vpop.f32.mrf.mxu0
        %v2906 = vadd.f32 0.0, %v2905
        %2907 = vmatmul.bf16.gmra.mxu0 %v2870
        %v2908 = vpop.f32.mrf.mxu0
        %v2909 = vadd.f32 0.0, %v2908
        %v2910 = vpop.f32.mrf.mxu0
        %v2911 = vadd.f32 0.0, %v2910
        %2912 = vmatmul.bf16.gmra.mxu0 %v2873
        %v2913 = vpop.f32.mrf.mxu0
        %v2914 = vadd.f32 0.0, %v2913
        %v2915 = vpop.f32.mrf.mxu0
        %v2916 = vadd.f32 0.0, %v2915
        %2917 = vmatmul.bf16.gmra.mxu0 %v2876
        %v2918 = vpop.f32.mrf.mxu0
        %v2919 = vadd.f32 0.0, %v2918
        %v2920 = vpop.f32.mrf.mxu0
        %v2921 = vadd.f32 0.0, %v2920
        %2922 = vmatmul.bf16.gmra.mxu0 %v2879
        %v2923 = vpop.f32.mrf.mxu0
        %v2924 = vadd.f32 0.0, %v2923
        %v2925 = vpop.f32.mrf.mxu0
        %v2926 = vadd.f32 0.0, %v2925
        %2927 = vmatmul.bf16.gmra.mxu0 %v2882
        %v2928 = vpop.f32.mrf.mxu0
        %v2929 = vadd.f32 0.0, %v2928
        %v2930 = vpop.f32.mrf.mxu0
        %v2931 = vadd.f32 0.0, %v2930
        %2932 = vdwg.mxu0
        %2933 = vmax.xlane.f32.xlu0 %v2894
        %v2934 = vpop.xlane.xlu0 %2933
        %2935 = vmax.xlane.f32.xlu0 %v2896
        %v2936 = vpop.xlane.xlu0 %2935
        %2937 = vmax.xlane.f32.xlu0 %v2899
        %v2938 = vpop.xlane.xlu0 %2937
        %2939 = vmax.xlane.f32.xlu0 %v2901
        %v2940 = vpop.xlane.xlu0 %2939
        %2941 = vmax.xlane.f32.xlu0 %v2904
        %v2942 = vpop.xlane.xlu0 %2941
        %2943 = vmax.xlane.f32.xlu0 %v2906
        %v2944 = vpop.xlane.xlu0 %2943
        %2945 = vmax.xlane.f32.xlu0 %v2909
        %v2946 = vpop.xlane.xlu0 %2945
        %2947 = vmax.xlane.f32.xlu0 %v2911
        %v2948 = vpop.xlane.xlu0 %2947
        %2949 = vmax.xlane.f32.xlu0 %v2914
        %v2950 = vpop.xlane.xlu0 %2949
        %2951 = vmax.xlane.f32.xlu0 %v2916
        %v2952 = vpop.xlane.xlu0 %2951
        %2953 = vmax.xlane.f32.xlu0 %v2919
        %v2954 = vpop.xlane.xlu0 %2953
        %2955 = vmax.xlane.f32.xlu0 %v2921
        %v2956 = vpop.xlane.xlu0 %2955
        %2957 = vmax.xlane.f32.xlu0 %v2924
        %v2958 = vpop.xlane.xlu0 %2957
        %2959 = vmax.xlane.f32.xlu0 %v2926
        %v2960 = vpop.xlane.xlu0 %2959
        %2961 = vmax.xlane.f32.xlu0 %v2929
        %v2962 = vpop.xlane.xlu0 %2961
        %2963 = vmax.xlane.f32.xlu0 %v2931
        %v2964 = vpop.xlane.xlu0 %2963
        %v2965 = vsub.f32 %v2894, %v2934
        %v2966 = vsub.f32 %v2896, %v2936
        %v2967 = vsub.f32 %v2899, %v2938
        %v2968 = vsub.f32 %v2901, %v2940
        %v2969 = vsub.f32 %v2904, %v2942
        %v2970 = vsub.f32 %v2906, %v2944
        %v2971 = vsub.f32 %v2909, %v2946
        %v2972 = vsub.f32 %v2911, %v2948
        %v2973 = vsub.f32 %v2914, %v2950
        %v2974 = vsub.f32 %v2916, %v2952
        %v2975 = vsub.f32 %v2919, %v2954
        %v2976 = vsub.f32 %v2921, %v2956
        %v2977 = vsub.f32 %v2924, %v2958
        %v2978 = vsub.f32 %v2926, %v2960
        %v2979 = vsub.f32 %v2929, %v2962
        %v2980 = vsub.f32 %v2931, %v2964
        %v2981 = vmul.f32 %v2965, 1.442695
        %v2982 = vpow.pop %v2981
        %v2983 = vmul.f32 %v2966, 1.442695
        %v2984 = vpow.pop %v2983
        %v2985 = vmul.f32 %v2967, 1.442695
        %v2986 = vpow.pop %v2985
        %v2987 = vmul.f32 %v2968, 1.442695
        %v2988 = vpow.pop %v2987
        %v2989 = vmul.f32 %v2969, 1.442695
        %v2990 = vpow.pop %v2989
        %v2991 = vmul.f32 %v2970, 1.442695
        %v2992 = vpow.pop %v2991
        %v2993 = vmul.f32 %v2971, 1.442695
        %v2994 = vpow.pop %v2993
        %v2995 = vmul.f32 %v2972, 1.442695
        %v2996 = vpow.pop %v2995
        %v2997 = vmul.f32 %v2973, 1.442695
        %v2998 = vpow.pop %v2997
        %v2999 = vmul.f32 %v2974, 1.442695
        %v3000 = vpow.pop %v2999
        %v3001 = vmul.f32 %v2975, 1.442695
        %v3002 = vpow.pop %v3001
        %v3003 = vmul.f32 %v2976, 1.442695
        %v3004 = vpow.pop %v3003
        %v3005 = vmul.f32 %v2977, 1.442695
        %v3006 = vpow.pop %v3005
        %v3007 = vmul.f32 %v2978, 1.442695
        %v3008 = vpow.pop %v3007
        %v3009 = vmul.f32 %v2979, 1.442695
        %v3010 = vpow.pop %v3009
        %v3011 = vmul.f32 %v2980, 1.442695
        %v3012 = vpow.pop %v3011
        %3013 = vadd.xlane.f32.xlu0 %v2982
        %v3014 = vpop.xlane.xlu0 %3013
        %3015 = vadd.xlane.f32.xlu0 %v2984
        %v3016 = vpop.xlane.xlu0 %3015
        %3017 = vadd.xlane.f32.xlu0 %v2986
        %v3018 = vpop.xlane.xlu0 %3017
        %3019 = vadd.xlane.f32.xlu0 %v2988
        %v3020 = vpop.xlane.xlu0 %3019
        %3021 = vadd.xlane.f32.xlu0 %v2990
        %v3022 = vpop.xlane.xlu0 %3021
        %3023 = vadd.xlane.f32.xlu0 %v2992
        %v3024 = vpop.xlane.xlu0 %3023
        %3025 = vadd.xlane.f32.xlu0 %v2994
        %v3026 = vpop.xlane.xlu0 %3025
        %3027 = vadd.xlane.f32.xlu0 %v2996
        %v3028 = vpop.xlane.xlu0 %3027
        %3029 = vadd.xlane.f32.xlu0 %v2998
        %v3030 = vpop.xlane.xlu0 %3029
        %3031 = vadd.xlane.f32.xlu0 %v3000
        %v3032 = vpop.xlane.xlu0 %3031
        %3033 = vadd.xlane.f32.xlu0 %v3002
        %v3034 = vpop.xlane.xlu0 %3033
        %3035 = vadd.xlane.f32.xlu0 %v3004
        %v3036 = vpop.xlane.xlu0 %3035
        %3037 = vadd.xlane.f32.xlu0 %v3006
        %v3038 = vpop.xlane.xlu0 %3037
        %3039 = vadd.xlane.f32.xlu0 %v3008
        %v3040 = vpop.xlane.xlu0 %3039
        %3041 = vadd.xlane.f32.xlu0 %v3010
        %v3042 = vpop.xlane.xlu0 %3041
        %3043 = vadd.xlane.f32.xlu0 %v3012
        %v3044 = vpop.xlane.xlu0 %3043
        %v3045 = vpack.c.bf16 %v2984, %v2982
        %v3046 = vpack.c.bf16 %v2988, %v2986
        %v3047 = vpack.c.bf16 %v2992, %v2990
        %v3048 = vpack.c.bf16 %v2996, %v2994
        %v3049 = vpack.c.bf16 %v3000, %v2998
        %v3050 = vpack.c.bf16 %v3004, %v3002
        %v3051 = vpack.c.bf16 %v3008, %v3006
        %v3052 = vpack.c.bf16 %v3012, %v3010
        %v3069 = vunpack.c.l.b16 %v2782
        %v3070 = vunpack.c.l.b16 %v2783
        %v3071 = vunpack.c.l.b16 %v2784
        %v3072 = vunpack.c.l.b16 %v2785
        %v3073 = vunpack.c.l.b16 %v2786
        %v3074 = vunpack.c.l.b16 %v2787
        %v3075 = vunpack.c.l.b16 %v2788
        %v3076 = vunpack.c.l.b16 %v2789
        %v3077 = vunpack.c.l.b16 %v2790
        %v3078 = vunpack.c.l.b16 %v2791
        %v3079 = vunpack.c.l.b16 %v2792
        %v3080 = vunpack.c.l.b16 %v2793
        %v3081 = vunpack.c.l.b16 %v2794
        %v3082 = vunpack.c.l.b16 %v2795
        %v3083 = vunpack.c.l.b16 %v2796
        %v3084 = vunpack.c.l.b16 %v2797
        %v3085 = vpack.c.b16 %v3070, %v3069
        %v3086 = vpack.c.b16 %v3072, %v3071
        %v3087 = vpack.c.b16 %v3074, %v3073
        %v3088 = vpack.c.b16 %v3076, %v3075
        %v3089 = vpack.c.b16 %v3078, %v3077
        %v3090 = vpack.c.b16 %v3080, %v3079
        %v3091 = vpack.c.b16 %v3082, %v3081
        %v3092 = vpack.c.b16 %v3084, %v3083
        %3093 = vrot.lane.b32.xlu0 %v3085, 64
        %v3094 = vpop.permute.xlu0 %3093
        %3095 = vrot.lane.b32.xlu0 %v3086, 64
        %v3096 = vpop.permute.xlu0 %3095
        %3097 = vrot.lane.b32.xlu0 %v3087, 64
        %v3098 = vpop.permute.xlu0 %3097
        %3099 = vrot.lane.b32.xlu0 %v3088, 64
        %v3100 = vpop.permute.xlu0 %3099
        %3101 = vrot.lane.b32.xlu0 %v3089, 64
        %v3102 = vpop.permute.xlu0 %3101
        %3103 = vrot.lane.b32.xlu0 %v3090, 64
        %v3104 = vpop.permute.xlu0 %3103
        %3105 = vrot.lane.b32.xlu0 %v3091, 64
        %v3106 = vpop.permute.xlu0 %3105
        %3107 = vrot.lane.b32.xlu0 %v3092, 64
        %v3108 = vpop.permute.xlu0 %3107
        %3117 = vmatpush.bf16.msra.mxu0 %v3108
        %3118 = vmatpush.bf16.msra.mxu0 %v3106
        %3119 = vmatpush.bf16.msra.mxu0 %v3104
        %3120 = vmatpush.bf16.msra.mxu0 %v3102
        %3121 = vmatpush.bf16.msra.mxu0 %v3100
        %3122 = vmatpush.bf16.msra.mxu0 %v3098
        %3123 = vmatpush.bf16.msra.mxu0 %v3096
        %3124 = vmatpush.bf16.msra.mxu0 %v3094
        %3125 = vmatmul.bf16.gmra.mxu0 %v3045
        %v3126 = vpop.f32.mrf.mxu0
        %v3127 = vadd.f32 0.0, %v3126
        %v3128 = vpop.f32.mrf.mxu0
        %v3129 = vadd.f32 0.0, %v3128
        %3130 = vmatmul.bf16.gmra.mxu0 %v3046
        %v3131 = vpop.f32.mrf.mxu0
        %v3132 = vadd.f32 0.0, %v3131
        %v3133 = vpop.f32.mrf.mxu0
        %v3134 = vadd.f32 0.0, %v3133
        %3135 = vmatmul.bf16.gmra.mxu0 %v3047
        %v3136 = vpop.f32.mrf.mxu0
        %v3137 = vadd.f32 0.0, %v3136
        %v3138 = vpop.f32.mrf.mxu0
        %v3139 = vadd.f32 0.0, %v3138
        %3140 = vmatmul.bf16.gmra.mxu0 %v3048
        %v3141 = vpop.f32.mrf.mxu0
        %v3142 = vadd.f32 0.0, %v3141
        %v3143 = vpop.f32.mrf.mxu0
        %v3144 = vadd.f32 0.0, %v3143
        %3145 = vmatmul.bf16.gmra.mxu0 %v3049
        %v3146 = vpop.f32.mrf.mxu0
        %v3147 = vadd.f32 0.0, %v3146
        %v3148 = vpop.f32.mrf.mxu0
        %v3149 = vadd.f32 0.0, %v3148
        %3150 = vmatmul.bf16.gmra.mxu0 %v3050
        %v3151 = vpop.f32.mrf.mxu0
        %v3152 = vadd.f32 0.0, %v3151
        %v3153 = vpop.f32.mrf.mxu0
        %v3154 = vadd.f32 0.0, %v3153
        %3155 = vmatmul.bf16.gmra.mxu0 %v3051
        %v3156 = vpop.f32.mrf.mxu0
        %v3157 = vadd.f32 0.0, %v3156
        %v3158 = vpop.f32.mrf.mxu0
        %v3159 = vadd.f32 0.0, %v3158
        %3160 = vmatmul.bf16.gmra.mxu0 %v3052
        %v3161 = vpop.f32.mrf.mxu0
        %v3162 = vadd.f32 0.0, %v3161
        %v3163 = vpop.f32.mrf.mxu0
        %v3164 = vadd.f32 0.0, %v3163
        %3165 = vdwg.mxu0
        %v3166 = vrcp.pop %v3014
        %v3167 = vrcp.pop %v3016
        %v3168 = vrcp.pop %v3018
        %v3169 = vrcp.pop %v3020
        %v3170 = vrcp.pop %v3022
        %v3171 = vrcp.pop %v3024
        %v3172 = vrcp.pop %v3026
        %v3173 = vrcp.pop %v3028
        %v3174 = vrcp.pop %v3030
        %v3175 = vrcp.pop %v3032
        %v3176 = vrcp.pop %v3034
        %v3177 = vrcp.pop %v3036
        %v3178 = vrcp.pop %v3038
        %v3179 = vrcp.pop %v3040
        %v3180 = vrcp.pop %v3042
        %v3181 = vrcp.pop %v3044
        %v3182 = vmul.f32 %v3127, %v3166
        %v3183 = vmul.f32 %v3129, %v3167
        %v3184 = vmul.f32 %v3132, %v3168
        %v3185 = vmul.f32 %v3134, %v3169
        %v3186 = vmul.f32 %v3137, %v3170
        %v3187 = vmul.f32 %v3139, %v3171
        %v3188 = vmul.f32 %v3142, %v3172
        %v3189 = vmul.f32 %v3144, %v3173
        %v3190 = vmul.f32 %v3147, %v3174
        %v3191 = vmul.f32 %v3149, %v3175
        %v3192 = vmul.f32 %v3152, %v3176
        %v3193 = vmul.f32 %v3154, %v3177
        %v3194 = vmul.f32 %v3157, %v3178
        %v3195 = vmul.f32 %v3159, %v3179
        %v3196 = vmul.f32 %v3162, %v3180
        %v3197 = vmul.f32 %v3164, %v3181
        %v3198 = vpack.c.bf16 %v3182, %v3182
        %v3199 = vpack.c.bf16 %v3183, %v3183
        %v3200 = vpack.c.bf16 %v3184, %v3184
        %v3201 = vpack.c.bf16 %v3185, %v3185
        %v3202 = vpack.c.bf16 %v3186, %v3186
        %v3203 = vpack.c.bf16 %v3187, %v3187
        %v3204 = vpack.c.bf16 %v3188, %v3188
        %v3205 = vpack.c.bf16 %v3189, %v3189
        %v3206 = vpack.c.bf16 %v3190, %v3190
        %v3207 = vpack.c.bf16 %v3191, %v3191
        %v3208 = vpack.c.bf16 %v3192, %v3192
        %v3209 = vpack.c.bf16 %v3193, %v3193
        %v3210 = vpack.c.bf16 %v3194, %v3194
        %v3211 = vpack.c.bf16 %v3195, %v3195
        %v3212 = vpack.c.bf16 %v3196, %v3196
        %v3213 = vpack.c.bf16 %v3197, %v3197
        %3230 = vrot.lane.b32.xlu0 %v3198, 64
        %v3231 = vpop.permute.xlu0 %3230
        %3232 = vrot.lane.b32.xlu0 %v3199, 64
        %v3233 = vpop.permute.xlu0 %3232
        %3234 = vrot.lane.b32.xlu0 %v3200, 64
        %v3235 = vpop.permute.xlu0 %3234
        %3236 = vrot.lane.b32.xlu0 %v3201, 64
        %v3237 = vpop.permute.xlu0 %3236
        %3238 = vrot.lane.b32.xlu0 %v3202, 64
        %v3239 = vpop.permute.xlu0 %3238
        %3240 = vrot.lane.b32.xlu0 %v3203, 64
        %v3241 = vpop.permute.xlu0 %3240
        %3242 = vrot.lane.b32.xlu0 %v3204, 64
        %v3243 = vpop.permute.xlu0 %3242
        %3244 = vrot.lane.b32.xlu0 %v3205, 64
        %v3245 = vpop.permute.xlu0 %3244
        %3246 = vrot.lane.b32.xlu0 %v3206, 64
        %v3247 = vpop.permute.xlu0 %3246
        %3248 = vrot.lane.b32.xlu0 %v3207, 64
        %v3249 = vpop.permute.xlu0 %3248
        %3250 = vrot.lane.b32.xlu0 %v3208, 64
        %v3251 = vpop.permute.xlu0 %3250
        %3252 = vrot.lane.b32.xlu0 %v3209, 64
        %v3253 = vpop.permute.xlu0 %3252
        %3254 = vrot.lane.b32.xlu0 %v3210, 64
        %v3255 = vpop.permute.xlu0 %3254
        %3256 = vrot.lane.b32.xlu0 %v3211, 64
        %v3257 = vpop.permute.xlu0 %3256
        %3258 = vrot.lane.b32.xlu0 %v3212, 64
        %v3259 = vpop.permute.xlu0 %3258
        %3260 = vrot.lane.b32.xlu0 %v3213, 64
        %v3261 = vpop.permute.xlu0 %3260
        %vm3278 = vcmask 650752
        %3279 = vst.msk [vmem:[#allocation3] sm:$0xf] %vm3278, %v3231
        %3280 = vst.msk [vmem:[#allocation3 + $0x4] sm:$0xf] %vm3278, %v3233
        %3281 = vst.msk [vmem:[#allocation3 + $0x8] sm:$0xf] %vm3278, %v3235
        %3282 = vst.msk [vmem:[#allocation3 + $0xc] sm:$0xf] %vm3278, %v3237
        %3283 = vst.msk [vmem:[#allocation3 + $0x10] sm:$0xf] %vm3278, %v3239
        %3284 = vst.msk [vmem:[#allocation3 + $0x14] sm:$0xf] %vm3278, %v3241
        %3285 = vst.msk [vmem:[#allocation3 + $0x18] sm:$0xf] %vm3278, %v3243
        %3286 = vst.msk [vmem:[#allocation3 + $0x1c] sm:$0xf] %vm3278, %v3245
        %3287 = vst.msk [vmem:[#allocation3 + $0x20] sm:$0xf] %vm3278, %v3247
        %3288 = vst.msk [vmem:[#allocation3 + $0x24] sm:$0xf] %vm3278, %v3249
        %3289 = vst.msk [vmem:[#allocation3 + $0x28] sm:$0xf] %vm3278, %v3251
        %3290 = vst.msk [vmem:[#allocation3 + $0x2c] sm:$0xf] %vm3278, %v3253
        %3291 = vst.msk [vmem:[#allocation3 + $0x30] sm:$0xf] %vm3278, %v3255
        %3292 = vst.msk [vmem:[#allocation3 + $0x34] sm:$0xf] %vm3278, %v3257
        %3293 = vst.msk [vmem:[#allocation3 + $0x38] sm:$0xf] %vm3278, %v3259
        %3294 = vst.msk [vmem:[#allocation3 + $0x3c] sm:$0xf] %vm3278, %v3261
        %v3295 = vld [vmem:[#allocation2] sm:$0xf]
        %v3296 = vld [vmem:[#allocation2 + $0xc] sm:$0xf]
        %v3297 = vld [vmem:[#allocation2 + $0x18] sm:$0xf]
        %v3298 = vld [vmem:[#allocation2 + $0x24] sm:$0xf]
        %v3299 = vld [vmem:[#allocation2 + $0x30] sm:$0xf]
        %v3300 = vld [vmem:[#allocation2 + $0x3c] sm:$0xf]
        %v3301 = vld [vmem:[#allocation2 + $0x48] sm:$0xf]
        %v3302 = vld [vmem:[#allocation2 + $0x54] sm:$0xf]
        %v3303 = vld [vmem:[#allocation2 + $0x60] sm:$0xf]
        %v3304 = vld [vmem:[#allocation2 + $0x6c] sm:$0xf]
        %v3305 = vld [vmem:[#allocation2 + $0x78] sm:$0xf]
        %v3306 = vld [vmem:[#allocation2 + $0x84] sm:$0xf]
        %v3307 = vld [vmem:[#allocation2 + $0x90] sm:$0xf]
        %v3308 = vld [vmem:[#allocation2 + $0x9c] sm:$0xf]
        %v3309 = vld [vmem:[#allocation2 + $0xa8] sm:$0xf]
        %v3310 = vld [vmem:[#allocation2 + $0xb4] sm:$0xf]
        %v3311 = vld [vmem:[#allocation2 + $0x8] sm:$0xf]
        %v3312 = vld [vmem:[#allocation2 + $0x14] sm:$0xf]
        %v3313 = vld [vmem:[#allocation2 + $0x20] sm:$0xf]
        %v3314 = vld [vmem:[#allocation2 + $0x2c] sm:$0xf]
        %v3315 = vld [vmem:[#allocation2 + $0x38] sm:$0xf]
        %v3316 = vld [vmem:[#allocation2 + $0x44] sm:$0xf]
        %v3317 = vld [vmem:[#allocation2 + $0x50] sm:$0xf]
        %v3318 = vld [vmem:[#allocation2 + $0x5c] sm:$0xf]
        %v3319 = vld [vmem:[#allocation2 + $0x68] sm:$0xf]
        %v3320 = vld [vmem:[#allocation2 + $0x74] sm:$0xf]
        %v3321 = vld [vmem:[#allocation2 + $0x80] sm:$0xf]
        %v3322 = vld [vmem:[#allocation2 + $0x8c] sm:$0xf]
        %v3323 = vld [vmem:[#allocation2 + $0x98] sm:$0xf]
        %v3324 = vld [vmem:[#allocation2 + $0xa4] sm:$0xf]
        %v3325 = vld [vmem:[#allocation2 + $0xb0] sm:$0xf]
        %v3326 = vld [vmem:[#allocation2 + $0xbc] sm:$0xf]
        %v3343 = vunpack.c.l.b16 %v3295
        %v3344 = vunpack.c.l.b16 %v3296
        %v3345 = vunpack.c.l.b16 %v3297
        %v3346 = vunpack.c.l.b16 %v3298
        %v3347 = vunpack.c.l.b16 %v3299
        %v3348 = vunpack.c.l.b16 %v3300
        %v3349 = vunpack.c.l.b16 %v3301
        %v3350 = vunpack.c.l.b16 %v3302
        %v3351 = vunpack.c.l.b16 %v3303
        %v3352 = vunpack.c.l.b16 %v3304
        %v3353 = vunpack.c.l.b16 %v3305
        %v3354 = vunpack.c.l.b16 %v3306
        %v3355 = vunpack.c.l.b16 %v3307
        %v3356 = vunpack.c.l.b16 %v3308
        %v3357 = vunpack.c.l.b16 %v3309
        %v3358 = vunpack.c.l.b16 %v3310
        %v3359 = vpack.c.b16 %v3344, %v3343
        %v3360 = vpack.c.b16 %v3346, %v3345
        %v3361 = vpack.c.b16 %v3348, %v3347
        %v3362 = vpack.c.b16 %v3350, %v3349
        %v3363 = vpack.c.b16 %v3352, %v3351
        %v3364 = vpack.c.b16 %v3354, %v3353
        %v3365 = vpack.c.b16 %v3356, %v3355
        %v3366 = vpack.c.b16 %v3358, %v3357
        %3367 = vrot.lane.b32.xlu0 %v3359, 48
        %v3368 = vpop.permute.xlu0 %3367
        %3369 = vrot.lane.b32.xlu0 %v3360, 48
        %v3370 = vpop.permute.xlu0 %3369
        %3371 = vrot.lane.b32.xlu0 %v3361, 48
        %v3372 = vpop.permute.xlu0 %3371
        %3373 = vrot.lane.b32.xlu0 %v3362, 48
        %v3374 = vpop.permute.xlu0 %3373
        %3375 = vrot.lane.b32.xlu0 %v3363, 48
        %v3376 = vpop.permute.xlu0 %3375
        %3377 = vrot.lane.b32.xlu0 %v3364, 48
        %v3378 = vpop.permute.xlu0 %3377
        %3379 = vrot.lane.b32.xlu0 %v3365, 48
        %v3380 = vpop.permute.xlu0 %3379
        %3381 = vrot.lane.b32.xlu0 %v3366, 48
        %v3382 = vpop.permute.xlu0 %3381
        %v3385 = vunpack.c.l.b16 %v675
        %v3386 = vunpack.c.l.b16 %v676
        %v3387 = vpack.c.b16 %v3386, %v3385
        %v3390 = vsel %vm823, %v3368, 0
        %v3393 = vsel %vm823, %v3370, 0
        %v3396 = vsel %vm823, %v3372, 0
        %v3399 = vsel %vm823, %v3374, 0
        %v3402 = vsel %vm823, %v3376, 0
        %v3405 = vsel %vm823, %v3378, 0
        %v3408 = vsel %vm823, %v3380, 0
        %v3411 = vsel %vm823, %v3382, 0
        %3413 = vmatpush.bf16.msra.mxu0 0
        %3414 = vmatpush.bf16.msra.mxu0 0
        %3415 = vmatpush.bf16.msra.mxu0 0
        %3416 = vmatpush.bf16.msra.mxu0 0
        %3417 = vmatpush.bf16.msra.mxu0 0
        %3418 = vmatpush.bf16.msra.mxu0 0
        %3419 = vmatpush.bf16.msra.mxu0 0
        %3420 = vmatpush.bf16.msra.mxu0 %v3387
        %3421 = vmatmul.bf16.gmra.mxu0 %v3390
        %v3422 = vpop.f32.mrf.mxu0
        %v3423 = vadd.f32 0.0, %v3422
        %v3424 = vpop.f32.mrf.mxu0
        %v3425 = vadd.f32 0.0, %v3424
        %3426 = vmatmul.bf16.gmra.mxu0 %v3393
        %v3427 = vpop.f32.mrf.mxu0
        %v3428 = vadd.f32 0.0, %v3427
        %v3429 = vpop.f32.mrf.mxu0
        %v3430 = vadd.f32 0.0, %v3429
        %3431 = vmatmul.bf16.gmra.mxu0 %v3396
        %v3432 = vpop.f32.mrf.mxu0
        %v3433 = vadd.f32 0.0, %v3432
        %v3434 = vpop.f32.mrf.mxu0
        %v3435 = vadd.f32 0.0, %v3434
        %3436 = vmatmul.bf16.gmra.mxu0 %v3399
        %v3437 = vpop.f32.mrf.mxu0
        %v3438 = vadd.f32 0.0, %v3437
        %v3439 = vpop.f32.mrf.mxu0
        %v3440 = vadd.f32 0.0, %v3439
        %3441 = vmatmul.bf16.gmra.mxu0 %v3402
        %v3442 = vpop.f32.mrf.mxu0
        %v3443 = vadd.f32 0.0, %v3442
        %v3444 = vpop.f32.mrf.mxu0
        %v3445 = vadd.f32 0.0, %v3444
        %3446 = vmatmul.bf16.gmra.mxu0 %v3405
        %v3447 = vpop.f32.mrf.mxu0
        %v3448 = vadd.f32 0.0, %v3447
        %v3449 = vpop.f32.mrf.mxu0
        %v3450 = vadd.f32 0.0, %v3449
        %3451 = vmatmul.bf16.gmra.mxu0 %v3408
        %v3452 = vpop.f32.mrf.mxu0
        %v3453 = vadd.f32 0.0, %v3452
        %v3454 = vpop.f32.mrf.mxu0
        %v3455 = vadd.f32 0.0, %v3454
        %3456 = vmatmul.bf16.gmra.mxu0 %v3411
        %v3457 = vpop.f32.mrf.mxu0
        %v3458 = vadd.f32 0.0, %v3457
        %v3459 = vpop.f32.mrf.mxu0
        %v3460 = vadd.f32 0.0, %v3459
        %3461 = vdwg.mxu0
        %3462 = vmax.xlane.f32.xlu0 %v3423
        %v3463 = vpop.xlane.xlu0 %3462
        %3464 = vmax.xlane.f32.xlu0 %v3425
        %v3465 = vpop.xlane.xlu0 %3464
        %3466 = vmax.xlane.f32.xlu0 %v3428
        %v3467 = vpop.xlane.xlu0 %3466
        %3468 = vmax.xlane.f32.xlu0 %v3430
        %v3469 = vpop.xlane.xlu0 %3468
        %3470 = vmax.xlane.f32.xlu0 %v3433
        %v3471 = vpop.xlane.xlu0 %3470
        %3472 = vmax.xlane.f32.xlu0 %v3435
        %v3473 = vpop.xlane.xlu0 %3472
        %3474 = vmax.xlane.f32.xlu0 %v3438
        %v3475 = vpop.xlane.xlu0 %3474
        %3476 = vmax.xlane.f32.xlu0 %v3440
        %v3477 = vpop.xlane.xlu0 %3476
        %3478 = vmax.xlane.f32.xlu0 %v3443
        %v3479 = vpop.xlane.xlu0 %3478
        %3480 = vmax.xlane.f32.xlu0 %v3445
        %v3481 = vpop.xlane.xlu0 %3480
        %3482 = vmax.xlane.f32.xlu0 %v3448
        %v3483 = vpop.xlane.xlu0 %3482
        %3484 = vmax.xlane.f32.xlu0 %v3450
        %v3485 = vpop.xlane.xlu0 %3484
        %3486 = vmax.xlane.f32.xlu0 %v3453
        %v3487 = vpop.xlane.xlu0 %3486
        %3488 = vmax.xlane.f32.xlu0 %v3455
        %v3489 = vpop.xlane.xlu0 %3488
        %3490 = vmax.xlane.f32.xlu0 %v3458
        %v3491 = vpop.xlane.xlu0 %3490
        %3492 = vmax.xlane.f32.xlu0 %v3460
        %v3493 = vpop.xlane.xlu0 %3492
        %v3494 = vsub.f32 %v3423, %v3463
        %v3495 = vsub.f32 %v3425, %v3465
        %v3496 = vsub.f32 %v3428, %v3467
        %v3497 = vsub.f32 %v3430, %v3469
        %v3498 = vsub.f32 %v3433, %v3471
        %v3499 = vsub.f32 %v3435, %v3473
        %v3500 = vsub.f32 %v3438, %v3475
        %v3501 = vsub.f32 %v3440, %v3477
        %v3502 = vsub.f32 %v3443, %v3479
        %v3503 = vsub.f32 %v3445, %v3481
        %v3504 = vsub.f32 %v3448, %v3483
        %v3505 = vsub.f32 %v3450, %v3485
        %v3506 = vsub.f32 %v3453, %v3487
        %v3507 = vsub.f32 %v3455, %v3489
        %v3508 = vsub.f32 %v3458, %v3491
        %v3509 = vsub.f32 %v3460, %v3493
        %v3510 = vmul.f32 %v3494, 1.442695
        %v3511 = vpow.pop %v3510
        %v3512 = vmul.f32 %v3495, 1.442695
        %v3513 = vpow.pop %v3512
        %v3514 = vmul.f32 %v3496, 1.442695
        %v3515 = vpow.pop %v3514
        %v3516 = vmul.f32 %v3497, 1.442695
        %v3517 = vpow.pop %v3516
        %v3518 = vmul.f32 %v3498, 1.442695
        %v3519 = vpow.pop %v3518
        %v3520 = vmul.f32 %v3499, 1.442695
        %v3521 = vpow.pop %v3520
        %v3522 = vmul.f32 %v3500, 1.442695
        %v3523 = vpow.pop %v3522
        %v3524 = vmul.f32 %v3501, 1.442695
        %v3525 = vpow.pop %v3524
        %v3526 = vmul.f32 %v3502, 1.442695
        %v3527 = vpow.pop %v3526
        %v3528 = vmul.f32 %v3503, 1.442695
        %v3529 = vpow.pop %v3528
        %v3530 = vmul.f32 %v3504, 1.442695
        %v3531 = vpow.pop %v3530
        %v3532 = vmul.f32 %v3505, 1.442695
        %v3533 = vpow.pop %v3532
        %v3534 = vmul.f32 %v3506, 1.442695
        %v3535 = vpow.pop %v3534
        %v3536 = vmul.f32 %v3507, 1.442695
        %v3537 = vpow.pop %v3536
        %v3538 = vmul.f32 %v3508, 1.442695
        %v3539 = vpow.pop %v3538
        %v3540 = vmul.f32 %v3509, 1.442695
        %v3541 = vpow.pop %v3540
        %3542 = vadd.xlane.f32.xlu0 %v3511
        %v3543 = vpop.xlane.xlu0 %3542
        %3544 = vadd.xlane.f32.xlu0 %v3513
        %v3545 = vpop.xlane.xlu0 %3544
        %3546 = vadd.xlane.f32.xlu0 %v3515
        %v3547 = vpop.xlane.xlu0 %3546
        %3548 = vadd.xlane.f32.xlu0 %v3517
        %v3549 = vpop.xlane.xlu0 %3548
        %3550 = vadd.xlane.f32.xlu0 %v3519
        %v3551 = vpop.xlane.xlu0 %3550
        %3552 = vadd.xlane.f32.xlu0 %v3521
        %v3553 = vpop.xlane.xlu0 %3552
        %3554 = vadd.xlane.f32.xlu0 %v3523
        %v3555 = vpop.xlane.xlu0 %3554
        %3556 = vadd.xlane.f32.xlu0 %v3525
        %v3557 = vpop.xlane.xlu0 %3556
        %3558 = vadd.xlane.f32.xlu0 %v3527
        %v3559 = vpop.xlane.xlu0 %3558
        %3560 = vadd.xlane.f32.xlu0 %v3529
        %v3561 = vpop.xlane.xlu0 %3560
        %3562 = vadd.xlane.f32.xlu0 %v3531
        %v3563 = vpop.xlane.xlu0 %3562
        %3564 = vadd.xlane.f32.xlu0 %v3533
        %v3565 = vpop.xlane.xlu0 %3564
        %3566 = vadd.xlane.f32.xlu0 %v3535
        %v3567 = vpop.xlane.xlu0 %3566
        %3568 = vadd.xlane.f32.xlu0 %v3537
        %v3569 = vpop.xlane.xlu0 %3568
        %3570 = vadd.xlane.f32.xlu0 %v3539
        %v3571 = vpop.xlane.xlu0 %3570
        %3572 = vadd.xlane.f32.xlu0 %v3541
        %v3573 = vpop.xlane.xlu0 %3572
        %v3574 = vpack.c.bf16 %v3513, %v3511
        %v3575 = vpack.c.bf16 %v3517, %v3515
        %v3576 = vpack.c.bf16 %v3521, %v3519
        %v3577 = vpack.c.bf16 %v3525, %v3523
        %v3578 = vpack.c.bf16 %v3529, %v3527
        %v3579 = vpack.c.bf16 %v3533, %v3531
        %v3580 = vpack.c.bf16 %v3537, %v3535
        %v3581 = vpack.c.bf16 %v3541, %v3539
        %v3598 = vunpack.c.l.b16 %v3311
        %v3599 = vunpack.c.l.b16 %v3312
        %v3600 = vunpack.c.l.b16 %v3313
        %v3601 = vunpack.c.l.b16 %v3314
        %v3602 = vunpack.c.l.b16 %v3315
        %v3603 = vunpack.c.l.b16 %v3316
        %v3604 = vunpack.c.l.b16 %v3317
        %v3605 = vunpack.c.l.b16 %v3318
        %v3606 = vunpack.c.l.b16 %v3319
        %v3607 = vunpack.c.l.b16 %v3320
        %v3608 = vunpack.c.l.b16 %v3321
        %v3609 = vunpack.c.l.b16 %v3322
        %v3610 = vunpack.c.l.b16 %v3323
        %v3611 = vunpack.c.l.b16 %v3324
        %v3612 = vunpack.c.l.b16 %v3325
        %v3613 = vunpack.c.l.b16 %v3326
        %v3614 = vpack.c.b16 %v3599, %v3598
        %v3615 = vpack.c.b16 %v3601, %v3600
        %v3616 = vpack.c.b16 %v3603, %v3602
        %v3617 = vpack.c.b16 %v3605, %v3604
        %v3618 = vpack.c.b16 %v3607, %v3606
        %v3619 = vpack.c.b16 %v3609, %v3608
        %v3620 = vpack.c.b16 %v3611, %v3610
        %v3621 = vpack.c.b16 %v3613, %v3612
        %3622 = vrot.lane.b32.xlu0 %v3614, 48
        %v3623 = vpop.permute.xlu0 %3622
        %3624 = vrot.lane.b32.xlu0 %v3615, 48
        %v3625 = vpop.permute.xlu0 %3624
        %3626 = vrot.lane.b32.xlu0 %v3616, 48
        %v3627 = vpop.permute.xlu0 %3626
        %3628 = vrot.lane.b32.xlu0 %v3617, 48
        %v3629 = vpop.permute.xlu0 %3628
        %3630 = vrot.lane.b32.xlu0 %v3618, 48
        %v3631 = vpop.permute.xlu0 %3630
        %3632 = vrot.lane.b32.xlu0 %v3619, 48
        %v3633 = vpop.permute.xlu0 %3632
        %3634 = vrot.lane.b32.xlu0 %v3620, 48
        %v3635 = vpop.permute.xlu0 %3634
        %3636 = vrot.lane.b32.xlu0 %v3621, 48
        %v3637 = vpop.permute.xlu0 %3636
        %3646 = vmatpush.bf16.msra.mxu0 %v3637
        %3647 = vmatpush.bf16.msra.mxu0 %v3635
        %3648 = vmatpush.bf16.msra.mxu0 %v3633
        %3649 = vmatpush.bf16.msra.mxu0 %v3631
        %3650 = vmatpush.bf16.msra.mxu0 %v3629
        %3651 = vmatpush.bf16.msra.mxu0 %v3627
        %3652 = vmatpush.bf16.msra.mxu0 %v3625
        %3653 = vmatpush.bf16.msra.mxu0 %v3623
        %3654 = vmatmul.bf16.gmra.mxu0 %v3574
        %v3655 = vpop.f32.mrf.mxu0
        %v3656 = vadd.f32 0.0, %v3655
        %v3657 = vpop.f32.mrf.mxu0
        %v3658 = vadd.f32 0.0, %v3657
        %3659 = vmatmul.bf16.gmra.mxu0 %v3575
        %v3660 = vpop.f32.mrf.mxu0
        %v3661 = vadd.f32 0.0, %v3660
        %v3662 = vpop.f32.mrf.mxu0
        %v3663 = vadd.f32 0.0, %v3662
        %3664 = vmatmul.bf16.gmra.mxu0 %v3576
        %v3665 = vpop.f32.mrf.mxu0
        %v3666 = vadd.f32 0.0, %v3665
        %v3667 = vpop.f32.mrf.mxu0
        %v3668 = vadd.f32 0.0, %v3667
        %3669 = vmatmul.bf16.gmra.mxu0 %v3577
        %v3670 = vpop.f32.mrf.mxu0
        %v3671 = vadd.f32 0.0, %v3670
        %v3672 = vpop.f32.mrf.mxu0
        %v3673 = vadd.f32 0.0, %v3672
        %3674 = vmatmul.bf16.gmra.mxu0 %v3578
        %v3675 = vpop.f32.mrf.mxu0
        %v3676 = vadd.f32 0.0, %v3675
        %v3677 = vpop.f32.mrf.mxu0
        %v3678 = vadd.f32 0.0, %v3677
        %3679 = vmatmul.bf16.gmra.mxu0 %v3579
        %v3680 = vpop.f32.mrf.mxu0
        %v3681 = vadd.f32 0.0, %v3680
        %v3682 = vpop.f32.mrf.mxu0
        %v3683 = vadd.f32 0.0, %v3682
        %3684 = vmatmul.bf16.gmra.mxu0 %v3580
        %v3685 = vpop.f32.mrf.mxu0
        %v3686 = vadd.f32 0.0, %v3685
        %v3687 = vpop.f32.mrf.mxu0
        %v3688 = vadd.f32 0.0, %v3687
        %3689 = vmatmul.bf16.gmra.mxu0 %v3581
        %v3690 = vpop.f32.mrf.mxu0
        %v3691 = vadd.f32 0.0, %v3690
        %v3692 = vpop.f32.mrf.mxu0
        %v3693 = vadd.f32 0.0, %v3692
        %3694 = vdwg.mxu0
        %v3695 = vrcp.pop %v3543
        %v3696 = vrcp.pop %v3545
        %v3697 = vrcp.pop %v3547
        %v3698 = vrcp.pop %v3549
        %v3699 = vrcp.pop %v3551
        %v3700 = vrcp.pop %v3553
        %v3701 = vrcp.pop %v3555
        %v3702 = vrcp.pop %v3557
        %v3703 = vrcp.pop %v3559
        %v3704 = vrcp.pop %v3561
        %v3705 = vrcp.pop %v3563
        %v3706 = vrcp.pop %v3565
        %v3707 = vrcp.pop %v3567
        %v3708 = vrcp.pop %v3569
        %v3709 = vrcp.pop %v3571
        %v3710 = vrcp.pop %v3573
        %v3711 = vmul.f32 %v3656, %v3695
        %v3712 = vmul.f32 %v3658, %v3696
        %v3713 = vmul.f32 %v3661, %v3697
        %v3714 = vmul.f32 %v3663, %v3698
        %v3715 = vmul.f32 %v3666, %v3699
        %v3716 = vmul.f32 %v3668, %v3700
        %v3717 = vmul.f32 %v3671, %v3701
        %v3718 = vmul.f32 %v3673, %v3702
        %v3719 = vmul.f32 %v3676, %v3703
        %v3720 = vmul.f32 %v3678, %v3704
        %v3721 = vmul.f32 %v3681, %v3705
        %v3722 = vmul.f32 %v3683, %v3706
        %v3723 = vmul.f32 %v3686, %v3707
        %v3724 = vmul.f32 %v3688, %v3708
        %v3725 = vmul.f32 %v3691, %v3709
        %v3726 = vmul.f32 %v3693, %v3710
        %v3727 = vpack.c.bf16 %v3711, %v3711
        %v3728 = vpack.c.bf16 %v3712, %v3712
        %v3729 = vpack.c.bf16 %v3713, %v3713
        %v3730 = vpack.c.bf16 %v3714, %v3714
        %v3731 = vpack.c.bf16 %v3715, %v3715
        %v3732 = vpack.c.bf16 %v3716, %v3716
        %v3733 = vpack.c.bf16 %v3717, %v3717
        %v3734 = vpack.c.bf16 %v3718, %v3718
        %v3735 = vpack.c.bf16 %v3719, %v3719
        %v3736 = vpack.c.bf16 %v3720, %v3720
        %v3737 = vpack.c.bf16 %v3721, %v3721
        %v3738 = vpack.c.bf16 %v3722, %v3722
        %v3739 = vpack.c.bf16 %v3723, %v3723
        %v3740 = vpack.c.bf16 %v3724, %v3724
        %v3741 = vpack.c.bf16 %v3725, %v3725
        %v3742 = vpack.c.bf16 %v3726, %v3726
        %3759 = vrot.lane.b32.xlu0 %v3727, 80
        %v3760 = vpop.permute.xlu0 %3759
        %3761 = vrot.lane.b32.xlu0 %v3728, 80
        %v3762 = vpop.permute.xlu0 %3761
        %3763 = vrot.lane.b32.xlu0 %v3729, 80
        %v3764 = vpop.permute.xlu0 %3763
        %3765 = vrot.lane.b32.xlu0 %v3730, 80
        %v3766 = vpop.permute.xlu0 %3765
        %3767 = vrot.lane.b32.xlu0 %v3731, 80
        %v3768 = vpop.permute.xlu0 %3767
        %3769 = vrot.lane.b32.xlu0 %v3732, 80
        %v3770 = vpop.permute.xlu0 %3769
        %3771 = vrot.lane.b32.xlu0 %v3733, 80
        %v3772 = vpop.permute.xlu0 %3771
        %3773 = vrot.lane.b32.xlu0 %v3734, 80
        %v3774 = vpop.permute.xlu0 %3773
        %3775 = vrot.lane.b32.xlu0 %v3735, 80
        %v3776 = vpop.permute.xlu0 %3775
        %3777 = vrot.lane.b32.xlu0 %v3736, 80
        %v3778 = vpop.permute.xlu0 %3777
        %3779 = vrot.lane.b32.xlu0 %v3737, 80
        %v3780 = vpop.permute.xlu0 %3779
        %3781 = vrot.lane.b32.xlu0 %v3738, 80
        %v3782 = vpop.permute.xlu0 %3781
        %3783 = vrot.lane.b32.xlu0 %v3739, 80
        %v3784 = vpop.permute.xlu0 %3783
        %3785 = vrot.lane.b32.xlu0 %v3740, 80
        %v3786 = vpop.permute.xlu0 %3785
        %3787 = vrot.lane.b32.xlu0 %v3741, 80
        %v3788 = vpop.permute.xlu0 %3787
        %3789 = vrot.lane.b32.xlu0 %v3742, 80
        %v3790 = vpop.permute.xlu0 %3789
        %vm3807 = vcmask 781952
        %3808 = vst.msk [vmem:[#allocation3] sm:$0xf] %vm3807, %v3760
        %3809 = vst.msk [vmem:[#allocation3 + $0x4] sm:$0xf] %vm3807, %v3762
        %3810 = vst.msk [vmem:[#allocation3 + $0x8] sm:$0xf] %vm3807, %v3764
        %3811 = vst.msk [vmem:[#allocation3 + $0xc] sm:$0xf] %vm3807, %v3766
        %3812 = vst.msk [vmem:[#allocation3 + $0x10] sm:$0xf] %vm3807, %v3768
        %3813 = vst.msk [vmem:[#allocation3 + $0x14] sm:$0xf] %vm3807, %v3770
        %3814 = vst.msk [vmem:[#allocation3 + $0x18] sm:$0xf] %vm3807, %v3772
        %3815 = vst.msk [vmem:[#allocation3 + $0x1c] sm:$0xf] %vm3807, %v3774
        %3816 = vst.msk [vmem:[#allocation3 + $0x20] sm:$0xf] %vm3807, %v3776
        %3817 = vst.msk [vmem:[#allocation3 + $0x24] sm:$0xf] %vm3807, %v3778
        %3818 = vst.msk [vmem:[#allocation3 + $0x28] sm:$0xf] %vm3807, %v3780
        %3819 = vst.msk [vmem:[#allocation3 + $0x2c] sm:$0xf] %vm3807, %v3782
        %3820 = vst.msk [vmem:[#allocation3 + $0x30] sm:$0xf] %vm3807, %v3784
        %3821 = vst.msk [vmem:[#allocation3 + $0x34] sm:$0xf] %vm3807, %v3786
        %3822 = vst.msk [vmem:[#allocation3 + $0x38] sm:$0xf] %vm3807, %v3788
        %3823 = vst.msk [vmem:[#allocation3 + $0x3c] sm:$0xf] %vm3807, %v3790
        %v3824 = vld [vmem:[#allocation2] sm:$0xf]
        %v3825 = vld [vmem:[#allocation2 + $0xc] sm:$0xf]
        %v3826 = vld [vmem:[#allocation2 + $0x18] sm:$0xf]
        %v3827 = vld [vmem:[#allocation2 + $0x24] sm:$0xf]
        %v3828 = vld [vmem:[#allocation2 + $0x30] sm:$0xf]
        %v3829 = vld [vmem:[#allocation2 + $0x3c] sm:$0xf]
        %v3830 = vld [vmem:[#allocation2 + $0x48] sm:$0xf]
        %v3831 = vld [vmem:[#allocation2 + $0x54] sm:$0xf]
        %v3832 = vld [vmem:[#allocation2 + $0x60] sm:$0xf]
        %v3833 = vld [vmem:[#allocation2 + $0x6c] sm:$0xf]
        %v3834 = vld [vmem:[#allocation2 + $0x78] sm:$0xf]
        %v3835 = vld [vmem:[#allocation2 + $0x84] sm:$0xf]
        %v3836 = vld [vmem:[#allocation2 + $0x90] sm:$0xf]
        %v3837 = vld [vmem:[#allocation2 + $0x9c] sm:$0xf]
        %v3838 = vld [vmem:[#allocation2 + $0xa8] sm:$0xf]
        %v3839 = vld [vmem:[#allocation2 + $0xb4] sm:$0xf]
        %v3840 = vld [vmem:[#allocation2 + $0x8] sm:$0xf]
        %v3841 = vld [vmem:[#allocation2 + $0x14] sm:$0xf]
        %v3842 = vld [vmem:[#allocation2 + $0x20] sm:$0xf]
        %v3843 = vld [vmem:[#allocation2 + $0x2c] sm:$0xf]
        %v3844 = vld [vmem:[#allocation2 + $0x38] sm:$0xf]
        %v3845 = vld [vmem:[#allocation2 + $0x44] sm:$0xf]
        %v3846 = vld [vmem:[#allocation2 + $0x50] sm:$0xf]
        %v3847 = vld [vmem:[#allocation2 + $0x5c] sm:$0xf]
        %v3848 = vld [vmem:[#allocation2 + $0x68] sm:$0xf]
        %v3849 = vld [vmem:[#allocation2 + $0x74] sm:$0xf]
        %v3850 = vld [vmem:[#allocation2 + $0x80] sm:$0xf]
        %v3851 = vld [vmem:[#allocation2 + $0x8c] sm:$0xf]
        %v3852 = vld [vmem:[#allocation2 + $0x98] sm:$0xf]
        %v3853 = vld [vmem:[#allocation2 + $0xa4] sm:$0xf]
        %v3854 = vld [vmem:[#allocation2 + $0xb0] sm:$0xf]
        %v3855 = vld [vmem:[#allocation2 + $0xbc] sm:$0xf]
        %v3872 = vunpack.c.l.b16 %v3824
        %v3873 = vunpack.c.l.b16 %v3825
        %v3874 = vunpack.c.l.b16 %v3826
        %v3875 = vunpack.c.l.b16 %v3827
        %v3876 = vunpack.c.l.b16 %v3828
        %v3877 = vunpack.c.l.b16 %v3829
        %v3878 = vunpack.c.l.b16 %v3830
        %v3879 = vunpack.c.l.b16 %v3831
        %v3880 = vunpack.c.l.b16 %v3832
        %v3881 = vunpack.c.l.b16 %v3833
        %v3882 = vunpack.c.l.b16 %v3834
        %v3883 = vunpack.c.l.b16 %v3835
        %v3884 = vunpack.c.l.b16 %v3836
        %v3885 = vunpack.c.l.b16 %v3837
        %v3886 = vunpack.c.l.b16 %v3838
        %v3887 = vunpack.c.l.b16 %v3839
        %v3888 = vpack.c.b16 %v3873, %v3872
        %v3889 = vpack.c.b16 %v3875, %v3874
        %v3890 = vpack.c.b16 %v3877, %v3876
        %v3891 = vpack.c.b16 %v3879, %v3878
        %v3892 = vpack.c.b16 %v3881, %v3880
        %v3893 = vpack.c.b16 %v3883, %v3882
        %v3894 = vpack.c.b16 %v3885, %v3884
        %v3895 = vpack.c.b16 %v3887, %v3886
        %3896 = vrot.lane.b32.xlu0 %v3888, 32
        %v3897 = vpop.permute.xlu0 %3896
        %3898 = vrot.lane.b32.xlu0 %v3889, 32
        %v3899 = vpop.permute.xlu0 %3898
        %3900 = vrot.lane.b32.xlu0 %v3890, 32
        %v3901 = vpop.permute.xlu0 %3900
        %3902 = vrot.lane.b32.xlu0 %v3891, 32
        %v3903 = vpop.permute.xlu0 %3902
        %3904 = vrot.lane.b32.xlu0 %v3892, 32
        %v3905 = vpop.permute.xlu0 %3904
        %3906 = vrot.lane.b32.xlu0 %v3893, 32
        %v3907 = vpop.permute.xlu0 %3906
        %3908 = vrot.lane.b32.xlu0 %v3894, 32
        %v3909 = vpop.permute.xlu0 %3908
        %3910 = vrot.lane.b32.xlu0 %v3895, 32
        %v3911 = vpop.permute.xlu0 %3910
        %v3914 = vunpack.c.l.b16 %v677
        %v3915 = vunpack.c.l.b16 %v678
        %v3916 = vpack.c.b16 %v3915, %v3914
        %v3919 = vsel %vm823, %v3897, 0
        %v3922 = vsel %vm823, %v3899, 0
        %v3925 = vsel %vm823, %v3901, 0
        %v3928 = vsel %vm823, %v3903, 0
        %v3931 = vsel %vm823, %v3905, 0
        %v3934 = vsel %vm823, %v3907, 0
        %v3937 = vsel %vm823, %v3909, 0
        %v3940 = vsel %vm823, %v3911, 0
        %3942 = vmatpush.bf16.msra.mxu0 0
        %3943 = vmatpush.bf16.msra.mxu0 0
        %3944 = vmatpush.bf16.msra.mxu0 0
        %3945 = vmatpush.bf16.msra.mxu0 0
        %3946 = vmatpush.bf16.msra.mxu0 0
        %3947 = vmatpush.bf16.msra.mxu0 0
        %3948 = vmatpush.bf16.msra.mxu0 0
        %3949 = vmatpush.bf16.msra.mxu0 %v3916
        %3950 = vmatmul.bf16.gmra.mxu0 %v3919
        %v3951 = vpop.f32.mrf.mxu0
        %v3952 = vadd.f32 0.0, %v3951
        %v3953 = vpop.f32.mrf.mxu0
        %v3954 = vadd.f32 0.0, %v3953
        %3955 = vmatmul.bf16.gmra.mxu0 %v3922
        %v3956 = vpop.f32.mrf.mxu0
        %v3957 = vadd.f32 0.0, %v3956
        %v3958 = vpop.f32.mrf.mxu0
        %v3959 = vadd.f32 0.0, %v3958
        %3960 = vmatmul.bf16.gmra.mxu0 %v3925
        %v3961 = vpop.f32.mrf.mxu0
        %v3962 = vadd.f32 0.0, %v3961
        %v3963 = vpop.f32.mrf.mxu0
        %v3964 = vadd.f32 0.0, %v3963
        %3965 = vmatmul.bf16.gmra.mxu0 %v3928
        %v3966 = vpop.f32.mrf.mxu0
        %v3967 = vadd.f32 0.0, %v3966
        %v3968 = vpop.f32.mrf.mxu0
        %v3969 = vadd.f32 0.0, %v3968
        %3970 = vmatmul.bf16.gmra.mxu0 %v3931
        %v3971 = vpop.f32.mrf.mxu0
        %v3972 = vadd.f32 0.0, %v3971
        %v3973 = vpop.f32.mrf.mxu0
        %v3974 = vadd.f32 0.0, %v3973
        %3975 = vmatmul.bf16.gmra.mxu0 %v3934
        %v3976 = vpop.f32.mrf.mxu0
        %v3977 = vadd.f32 0.0, %v3976
        %v3978 = vpop.f32.mrf.mxu0
        %v3979 = vadd.f32 0.0, %v3978
        %3980 = vmatmul.bf16.gmra.mxu0 %v3937
        %v3981 = vpop.f32.mrf.mxu0
        %v3982 = vadd.f32 0.0, %v3981
        %v3983 = vpop.f32.mrf.mxu0
        %v3984 = vadd.f32 0.0, %v3983
        %3985 = vmatmul.bf16.gmra.mxu0 %v3940
        %v3986 = vpop.f32.mrf.mxu0
        %v3987 = vadd.f32 0.0, %v3986
        %v3988 = vpop.f32.mrf.mxu0
        %v3989 = vadd.f32 0.0, %v3988
        %3990 = vdwg.mxu0
        %3991 = vmax.xlane.f32.xlu0 %v3952
        %v3992 = vpop.xlane.xlu0 %3991
        %3993 = vmax.xlane.f32.xlu0 %v3954
        %v3994 = vpop.xlane.xlu0 %3993
        %3995 = vmax.xlane.f32.xlu0 %v3957
        %v3996 = vpop.xlane.xlu0 %3995
        %3997 = vmax.xlane.f32.xlu0 %v3959
        %v3998 = vpop.xlane.xlu0 %3997
        %3999 = vmax.xlane.f32.xlu0 %v3962
        %v4000 = vpop.xlane.xlu0 %3999
        %4001 = vmax.xlane.f32.xlu0 %v3964
        %v4002 = vpop.xlane.xlu0 %4001
        %4003 = vmax.xlane.f32.xlu0 %v3967
        %v4004 = vpop.xlane.xlu0 %4003
        %4005 = vmax.xlane.f32.xlu0 %v3969
        %v4006 = vpop.xlane.xlu0 %4005
        %4007 = vmax.xlane.f32.xlu0 %v3972
        %v4008 = vpop.xlane.xlu0 %4007
        %4009 = vmax.xlane.f32.xlu0 %v3974
        %v4010 = vpop.xlane.xlu0 %4009
        %4011 = vmax.xlane.f32.xlu0 %v3977
        %v4012 = vpop.xlane.xlu0 %4011
        %4013 = vmax.xlane.f32.xlu0 %v3979
        %v4014 = vpop.xlane.xlu0 %4013
        %4015 = vmax.xlane.f32.xlu0 %v3982
        %v4016 = vpop.xlane.xlu0 %4015
        %4017 = vmax.xlane.f32.xlu0 %v3984
        %v4018 = vpop.xlane.xlu0 %4017
        %4019 = vmax.xlane.f32.xlu0 %v3987
        %v4020 = vpop.xlane.xlu0 %4019
        %4021 = vmax.xlane.f32.xlu0 %v3989
        %v4022 = vpop.xlane.xlu0 %4021
        %v4023 = vsub.f32 %v3952, %v3992
        %v4024 = vsub.f32 %v3954, %v3994
        %v4025 = vsub.f32 %v3957, %v3996
        %v4026 = vsub.f32 %v3959, %v3998
        %v4027 = vsub.f32 %v3962, %v4000
        %v4028 = vsub.f32 %v3964, %v4002
        %v4029 = vsub.f32 %v3967, %v4004
        %v4030 = vsub.f32 %v3969, %v4006
        %v4031 = vsub.f32 %v3972, %v4008
        %v4032 = vsub.f32 %v3974, %v4010
        %v4033 = vsub.f32 %v3977, %v4012
        %v4034 = vsub.f32 %v3979, %v4014
        %v4035 = vsub.f32 %v3982, %v4016
        %v4036 = vsub.f32 %v3984, %v4018
        %v4037 = vsub.f32 %v3987, %v4020
        %v4038 = vsub.f32 %v3989, %v4022
        %v4039 = vmul.f32 %v4023, 1.442695
        %v4040 = vpow.pop %v4039
        %v4041 = vmul.f32 %v4024, 1.442695
        %v4042 = vpow.pop %v4041
        %v4043 = vmul.f32 %v4025, 1.442695
        %v4044 = vpow.pop %v4043
        %v4045 = vmul.f32 %v4026, 1.442695
        %v4046 = vpow.pop %v4045
        %v4047 = vmul.f32 %v4027, 1.442695
        %v4048 = vpow.pop %v4047
        %v4049 = vmul.f32 %v4028, 1.442695
        %v4050 = vpow.pop %v4049
        %v4051 = vmul.f32 %v4029, 1.442695
        %v4052 = vpow.pop %v4051
        %v4053 = vmul.f32 %v4030, 1.442695
        %v4054 = vpow.pop %v4053
        %v4055 = vmul.f32 %v4031, 1.442695
        %v4056 = vpow.pop %v4055
        %v4057 = vmul.f32 %v4032, 1.442695
        %v4058 = vpow.pop %v4057
        %v4059 = vmul.f32 %v4033, 1.442695
        %v4060 = vpow.pop %v4059
        %v4061 = vmul.f32 %v4034, 1.442695
        %v4062 = vpow.pop %v4061
        %v4063 = vmul.f32 %v4035, 1.442695
        %v4064 = vpow.pop %v4063
        %v4065 = vmul.f32 %v4036, 1.442695
        %v4066 = vpow.pop %v4065
        %v4067 = vmul.f32 %v4037, 1.442695
        %v4068 = vpow.pop %v4067
        %v4069 = vmul.f32 %v4038, 1.442695
        %v4070 = vpow.pop %v4069
        %4071 = vadd.xlane.f32.xlu0 %v4040
        %v4072 = vpop.xlane.xlu0 %4071
        %4073 = vadd.xlane.f32.xlu0 %v4042
        %v4074 = vpop.xlane.xlu0 %4073
        %4075 = vadd.xlane.f32.xlu0 %v4044
        %v4076 = vpop.xlane.xlu0 %4075
        %4077 = vadd.xlane.f32.xlu0 %v4046
        %v4078 = vpop.xlane.xlu0 %4077
        %4079 = vadd.xlane.f32.xlu0 %v4048
        %v4080 = vpop.xlane.xlu0 %4079
        %4081 = vadd.xlane.f32.xlu0 %v4050
        %v4082 = vpop.xlane.xlu0 %4081
        %4083 = vadd.xlane.f32.xlu0 %v4052
        %v4084 = vpop.xlane.xlu0 %4083
        %4085 = vadd.xlane.f32.xlu0 %v4054
        %v4086 = vpop.xlane.xlu0 %4085
        %4087 = vadd.xlane.f32.xlu0 %v4056
        %v4088 = vpop.xlane.xlu0 %4087
        %4089 = vadd.xlane.f32.xlu0 %v4058
        %v4090 = vpop.xlane.xlu0 %4089
        %4091 = vadd.xlane.f32.xlu0 %v4060
        %v4092 = vpop.xlane.xlu0 %4091
        %4093 = vadd.xlane.f32.xlu0 %v4062
        %v4094 = vpop.xlane.xlu0 %4093
        %4095 = vadd.xlane.f32.xlu0 %v4064
        %v4096 = vpop.xlane.xlu0 %4095
        %4097 = vadd.xlane.f32.xlu0 %v4066
        %v4098 = vpop.xlane.xlu0 %4097
        %4099 = vadd.xlane.f32.xlu0 %v4068
        %v4100 = vpop.xlane.xlu0 %4099
        %4101 = vadd.xlane.f32.xlu0 %v4070
        %v4102 = vpop.xlane.xlu0 %4101
        %v4103 = vpack.c.bf16 %v4042, %v4040
        %v4104 = vpack.c.bf16 %v4046, %v4044
        %v4105 = vpack.c.bf16 %v4050, %v4048
        %v4106 = vpack.c.bf16 %v4054, %v4052
        %v4107 = vpack.c.bf16 %v4058, %v4056
        %v4108 = vpack.c.bf16 %v4062, %v4060
        %v4109 = vpack.c.bf16 %v4066, %v4064
        %v4110 = vpack.c.bf16 %v4070, %v4068
        %v4127 = vunpack.c.l.b16 %v3840
        %v4128 = vunpack.c.l.b16 %v3841
        %v4129 = vunpack.c.l.b16 %v3842
        %v4130 = vunpack.c.l.b16 %v3843
        %v4131 = vunpack.c.l.b16 %v3844
        %v4132 = vunpack.c.l.b16 %v3845
        %v4133 = vunpack.c.l.b16 %v3846
        %v4134 = vunpack.c.l.b16 %v3847
        %v4135 = vunpack.c.l.b16 %v3848
        %v4136 = vunpack.c.l.b16 %v3849
        %v4137 = vunpack.c.l.b16 %v3850
        %v4138 = vunpack.c.l.b16 %v3851
        %v4139 = vunpack.c.l.b16 %v3852
        %v4140 = vunpack.c.l.b16 %v3853
        %v4141 = vunpack.c.l.b16 %v3854
        %v4142 = vunpack.c.l.b16 %v3855
        %v4143 = vpack.c.b16 %v4128, %v4127
        %v4144 = vpack.c.b16 %v4130, %v4129
        %v4145 = vpack.c.b16 %v4132, %v4131
        %v4146 = vpack.c.b16 %v4134, %v4133
        %v4147 = vpack.c.b16 %v4136, %v4135
        %v4148 = vpack.c.b16 %v4138, %v4137
        %v4149 = vpack.c.b16 %v4140, %v4139
        %v4150 = vpack.c.b16 %v4142, %v4141
        %4151 = vrot.lane.b32.xlu0 %v4143, 32
        %v4152 = vpop.permute.xlu0 %4151
        %4153 = vrot.lane.b32.xlu0 %v4144, 32
        %v4154 = vpop.permute.xlu0 %4153
        %4155 = vrot.lane.b32.xlu0 %v4145, 32
        %v4156 = vpop.permute.xlu0 %4155
        %4157 = vrot.lane.b32.xlu0 %v4146, 32
        %v4158 = vpop.permute.xlu0 %4157
        %4159 = vrot.lane.b32.xlu0 %v4147, 32
        %v4160 = vpop.permute.xlu0 %4159
        %4161 = vrot.lane.b32.xlu0 %v4148, 32
        %v4162 = vpop.permute.xlu0 %4161
        %4163 = vrot.lane.b32.xlu0 %v4149, 32
        %v4164 = vpop.permute.xlu0 %4163
        %4165 = vrot.lane.b32.xlu0 %v4150, 32
        %v4166 = vpop.permute.xlu0 %4165
        %4175 = vmatpush.bf16.msra.mxu0 %v4166
        %4176 = vmatpush.bf16.msra.mxu0 %v4164
        %4177 = vmatpush.bf16.msra.mxu0 %v4162
        %4178 = vmatpush.bf16.msra.mxu0 %v4160
        %4179 = vmatpush.bf16.msra.mxu0 %v4158
        %4180 = vmatpush.bf16.msra.mxu0 %v4156
        %4181 = vmatpush.bf16.msra.mxu0 %v4154
        %4182 = vmatpush.bf16.msra.mxu0 %v4152
        %4183 = vmatmul.bf16.gmra.mxu0 %v4103
        %v4184 = vpop.f32.mrf.mxu0
        %v4185 = vadd.f32 0.0, %v4184
        %v4186 = vpop.f32.mrf.mxu0
        %v4187 = vadd.f32 0.0, %v4186
        %4188 = vmatmul.bf16.gmra.mxu0 %v4104
        %v4189 = vpop.f32.mrf.mxu0
        %v4190 = vadd.f32 0.0, %v4189
        %v4191 = vpop.f32.mrf.mxu0
        %v4192 = vadd.f32 0.0, %v4191
        %4193 = vmatmul.bf16.gmra.mxu0 %v4105
        %v4194 = vpop.f32.mrf.mxu0
        %v4195 = vadd.f32 0.0, %v4194
        %v4196 = vpop.f32.mrf.mxu0
        %v4197 = vadd.f32 0.0, %v4196
        %4198 = vmatmul.bf16.gmra.mxu0 %v4106
        %v4199 = vpop.f32.mrf.mxu0
        %v4200 = vadd.f32 0.0, %v4199
        %v4201 = vpop.f32.mrf.mxu0
        %v4202 = vadd.f32 0.0, %v4201
        %4203 = vmatmul.bf16.gmra.mxu0 %v4107
        %v4204 = vpop.f32.mrf.mxu0
        %v4205 = vadd.f32 0.0, %v4204
        %v4206 = vpop.f32.mrf.mxu0
        %v4207 = vadd.f32 0.0, %v4206
        %4208 = vmatmul.bf16.gmra.mxu0 %v4108
        %v4209 = vpop.f32.mrf.mxu0
        %v4210 = vadd.f32 0.0, %v4209
        %v4211 = vpop.f32.mrf.mxu0
        %v4212 = vadd.f32 0.0, %v4211
        %4213 = vmatmul.bf16.gmra.mxu0 %v4109
        %v4214 = vpop.f32.mrf.mxu0
        %v4215 = vadd.f32 0.0, %v4214
        %v4216 = vpop.f32.mrf.mxu0
        %v4217 = vadd.f32 0.0, %v4216
        %4218 = vmatmul.bf16.gmra.mxu0 %v4110
        %v4219 = vpop.f32.mrf.mxu0
        %v4220 = vadd.f32 0.0, %v4219
        %v4221 = vpop.f32.mrf.mxu0
        %v4222 = vadd.f32 0.0, %v4221
        %4223 = vdwg.mxu0
        %v4224 = vrcp.pop %v4072
        %v4225 = vrcp.pop %v4074
        %v4226 = vrcp.pop %v4076
        %v4227 = vrcp.pop %v4078
        %v4228 = vrcp.pop %v4080
        %v4229 = vrcp.pop %v4082
        %v4230 = vrcp.pop %v4084
        %v4231 = vrcp.pop %v4086
        %v4232 = vrcp.pop %v4088
        %v4233 = vrcp.pop %v4090
        %v4234 = vrcp.pop %v4092
        %v4235 = vrcp.pop %v4094
        %v4236 = vrcp.pop %v4096
        %v4237 = vrcp.pop %v4098
        %v4238 = vrcp.pop %v4100
        %v4239 = vrcp.pop %v4102
        %v4240 = vmul.f32 %v4185, %v4224
        %v4241 = vmul.f32 %v4187, %v4225
        %v4242 = vmul.f32 %v4190, %v4226
        %v4243 = vmul.f32 %v4192, %v4227
        %v4244 = vmul.f32 %v4195, %v4228
        %v4245 = vmul.f32 %v4197, %v4229
        %v4246 = vmul.f32 %v4200, %v4230
        %v4247 = vmul.f32 %v4202, %v4231
        %v4248 = vmul.f32 %v4205, %v4232
        %v4249 = vmul.f32 %v4207, %v4233
        %v4250 = vmul.f32 %v4210, %v4234
        %v4251 = vmul.f32 %v4212, %v4235
        %v4252 = vmul.f32 %v4215, %v4236
        %v4253 = vmul.f32 %v4217, %v4237
        %v4254 = vmul.f32 %v4220, %v4238
        %v4255 = vmul.f32 %v4222, %v4239
        %v4256 = vpack.c.bf16 %v4240, %v4240
        %v4257 = vpack.c.bf16 %v4241, %v4241
        %v4258 = vpack.c.bf16 %v4242, %v4242
        %v4259 = vpack.c.bf16 %v4243, %v4243
        %v4260 = vpack.c.bf16 %v4244, %v4244
        %v4261 = vpack.c.bf16 %v4245, %v4245
        %v4262 = vpack.c.bf16 %v4246, %v4246
        %v4263 = vpack.c.bf16 %v4247, %v4247
        %v4264 = vpack.c.bf16 %v4248, %v4248
        %v4265 = vpack.c.bf16 %v4249, %v4249
        %v4266 = vpack.c.bf16 %v4250, %v4250
        %v4267 = vpack.c.bf16 %v4251, %v4251
        %v4268 = vpack.c.bf16 %v4252, %v4252
        %v4269 = vpack.c.bf16 %v4253, %v4253
        %v4270 = vpack.c.bf16 %v4254, %v4254
        %v4271 = vpack.c.bf16 %v4255, %v4255
        %4288 = vrot.lane.b32.xlu0 %v4256, 96
        %v4289 = vpop.permute.xlu0 %4288
        %4290 = vrot.lane.b32.xlu0 %v4257, 96
        %v4291 = vpop.permute.xlu0 %4290
        %4292 = vrot.lane.b32.xlu0 %v4258, 96
        %v4293 = vpop.permute.xlu0 %4292
        %4294 = vrot.lane.b32.xlu0 %v4259, 96
        %v4295 = vpop.permute.xlu0 %4294
        %4296 = vrot.lane.b32.xlu0 %v4260, 96
        %v4297 = vpop.permute.xlu0 %4296
        %4298 = vrot.lane.b32.xlu0 %v4261, 96
        %v4299 = vpop.permute.xlu0 %4298
        %4300 = vrot.lane.b32.xlu0 %v4262, 96
        %v4301 = vpop.permute.xlu0 %4300
        %4302 = vrot.lane.b32.xlu0 %v4263, 96
        %v4303 = vpop.permute.xlu0 %4302
        %4304 = vrot.lane.b32.xlu0 %v4264, 96
        %v4305 = vpop.permute.xlu0 %4304
        %4306 = vrot.lane.b32.xlu0 %v4265, 96
        %v4307 = vpop.permute.xlu0 %4306
        %4308 = vrot.lane.b32.xlu0 %v4266, 96
        %v4309 = vpop.permute.xlu0 %4308
        %4310 = vrot.lane.b32.xlu0 %v4267, 96
        %v4311 = vpop.permute.xlu0 %4310
        %4312 = vrot.lane.b32.xlu0 %v4268, 96
        %v4313 = vpop.permute.xlu0 %4312
        %4314 = vrot.lane.b32.xlu0 %v4269, 96
        %v4315 = vpop.permute.xlu0 %4314
        %4316 = vrot.lane.b32.xlu0 %v4270, 96
        %v4317 = vpop.permute.xlu0 %4316
        %4318 = vrot.lane.b32.xlu0 %v4271, 96
        %v4319 = vpop.permute.xlu0 %4318
        %vm4336 = vcmask 913152
        %4337 = vst.msk [vmem:[#allocation3] sm:$0xf] %vm4336, %v4289
        %4338 = vst.msk [vmem:[#allocation3 + $0x4] sm:$0xf] %vm4336, %v4291
        %4339 = vst.msk [vmem:[#allocation3 + $0x8] sm:$0xf] %vm4336, %v4293
        %4340 = vst.msk [vmem:[#allocation3 + $0xc] sm:$0xf] %vm4336, %v4295
        %4341 = vst.msk [vmem:[#allocation3 + $0x10] sm:$0xf] %vm4336, %v4297
        %4342 = vst.msk [vmem:[#allocation3 + $0x14] sm:$0xf] %vm4336, %v4299
        %4343 = vst.msk [vmem:[#allocation3 + $0x18] sm:$0xf] %vm4336, %v4301
        %4344 = vst.msk [vmem:[#allocation3 + $0x1c] sm:$0xf] %vm4336, %v4303
        %4345 = vst.msk [vmem:[#allocation3 + $0x20] sm:$0xf] %vm4336, %v4305
        %4346 = vst.msk [vmem:[#allocation3 + $0x24] sm:$0xf] %vm4336, %v4307
        %4347 = vst.msk [vmem:[#allocation3 + $0x28] sm:$0xf] %vm4336, %v4309
        %4348 = vst.msk [vmem:[#allocation3 + $0x2c] sm:$0xf] %vm4336, %v4311
        %4349 = vst.msk [vmem:[#allocation3 + $0x30] sm:$0xf] %vm4336, %v4313
        %4350 = vst.msk [vmem:[#allocation3 + $0x34] sm:$0xf] %vm4336, %v4315
        %4351 = vst.msk [vmem:[#allocation3 + $0x38] sm:$0xf] %vm4336, %v4317
        %4352 = vst.msk [vmem:[#allocation3 + $0x3c] sm:$0xf] %vm4336, %v4319
        %v4353 = vld [vmem:[#allocation2] sm:$0xf]
        %v4354 = vld [vmem:[#allocation2 + $0xc] sm:$0xf]
        %v4355 = vld [vmem:[#allocation2 + $0x18] sm:$0xf]
        %v4356 = vld [vmem:[#allocation2 + $0x24] sm:$0xf]
        %v4357 = vld [vmem:[#allocation2 + $0x30] sm:$0xf]
        %v4358 = vld [vmem:[#allocation2 + $0x3c] sm:$0xf]
        %v4359 = vld [vmem:[#allocation2 + $0x48] sm:$0xf]
        %v4360 = vld [vmem:[#allocation2 + $0x54] sm:$0xf]
        %v4361 = vld [vmem:[#allocation2 + $0x60] sm:$0xf]
        %v4362 = vld [vmem:[#allocation2 + $0x6c] sm:$0xf]
        %v4363 = vld [vmem:[#allocation2 + $0x78] sm:$0xf]
        %v4364 = vld [vmem:[#allocation2 + $0x84] sm:$0xf]
        %v4365 = vld [vmem:[#allocation2 + $0x90] sm:$0xf]
        %v4366 = vld [vmem:[#allocation2 + $0x9c] sm:$0xf]
        %v4367 = vld [vmem:[#allocation2 + $0xa8] sm:$0xf]
        %v4368 = vld [vmem:[#allocation2 + $0xb4] sm:$0xf]
        %v4369 = vld [vmem:[#allocation2 + $0x8] sm:$0xf]
        %v4370 = vld [vmem:[#allocation2 + $0x14] sm:$0xf]
        %v4371 = vld [vmem:[#allocation2 + $0x20] sm:$0xf]
        %v4372 = vld [vmem:[#allocation2 + $0x2c] sm:$0xf]
        %v4373 = vld [vmem:[#allocation2 + $0x38] sm:$0xf]
        %v4374 = vld [vmem:[#allocation2 + $0x44] sm:$0xf]
        %v4375 = vld [vmem:[#allocation2 + $0x50] sm:$0xf]
        %v4376 = vld [vmem:[#allocation2 + $0x5c] sm:$0xf]
        %v4377 = vld [vmem:[#allocation2 + $0x68] sm:$0xf]
        %v4378 = vld [vmem:[#allocation2 + $0x74] sm:$0xf]
        %v4379 = vld [vmem:[#allocation2 + $0x80] sm:$0xf]
        %v4380 = vld [vmem:[#allocation2 + $0x8c] sm:$0xf]
        %v4381 = vld [vmem:[#allocation2 + $0x98] sm:$0xf]
        %v4382 = vld [vmem:[#allocation2 + $0xa4] sm:$0xf]
        %v4383 = vld [vmem:[#allocation2 + $0xb0] sm:$0xf]
        %v4384 = vld [vmem:[#allocation2 + $0xbc] sm:$0xf]
        %v4401 = vunpack.c.l.b16 %v4353
        %v4402 = vunpack.c.l.b16 %v4354
        %v4403 = vunpack.c.l.b16 %v4355
        %v4404 = vunpack.c.l.b16 %v4356
        %v4405 = vunpack.c.l.b16 %v4357
        %v4406 = vunpack.c.l.b16 %v4358
        %v4407 = vunpack.c.l.b16 %v4359
        %v4408 = vunpack.c.l.b16 %v4360
        %v4409 = vunpack.c.l.b16 %v4361
        %v4410 = vunpack.c.l.b16 %v4362
        %v4411 = vunpack.c.l.b16 %v4363
        %v4412 = vunpack.c.l.b16 %v4364
        %v4413 = vunpack.c.l.b16 %v4365
        %v4414 = vunpack.c.l.b16 %v4366
        %v4415 = vunpack.c.l.b16 %v4367
        %v4416 = vunpack.c.l.b16 %v4368
        %v4417 = vpack.c.b16 %v4402, %v4401
        %v4418 = vpack.c.b16 %v4404, %v4403
        %v4419 = vpack.c.b16 %v4406, %v4405
        %v4420 = vpack.c.b16 %v4408, %v4407
        %v4421 = vpack.c.b16 %v4410, %v4409
        %v4422 = vpack.c.b16 %v4412, %v4411
        %v4423 = vpack.c.b16 %v4414, %v4413
        %v4424 = vpack.c.b16 %v4416, %v4415
        %4425 = vrot.lane.b32.xlu0 %v4417, 16
        %v4426 = vpop.permute.xlu0 %4425
        %4427 = vrot.lane.b32.xlu0 %v4418, 16
        %v4428 = vpop.permute.xlu0 %4427
        %4429 = vrot.lane.b32.xlu0 %v4419, 16
        %v4430 = vpop.permute.xlu0 %4429
        %4431 = vrot.lane.b32.xlu0 %v4420, 16
        %v4432 = vpop.permute.xlu0 %4431
        %4433 = vrot.lane.b32.xlu0 %v4421, 16
        %v4434 = vpop.permute.xlu0 %4433
        %4435 = vrot.lane.b32.xlu0 %v4422, 16
        %v4436 = vpop.permute.xlu0 %4435
        %4437 = vrot.lane.b32.xlu0 %v4423, 16
        %v4438 = vpop.permute.xlu0 %4437
        %4439 = vrot.lane.b32.xlu0 %v4424, 16
        %v4440 = vpop.permute.xlu0 %4439
        %v4443 = vunpack.c.l.b16 %v679
        %v4444 = vunpack.c.l.b16 %v680
        %v4445 = vpack.c.b16 %v4444, %v4443
        %v4448 = vsel %vm823, %v4426, 0
        %v4451 = vsel %vm823, %v4428, 0
        %v4454 = vsel %vm823, %v4430, 0
        %v4457 = vsel %vm823, %v4432, 0
        %v4460 = vsel %vm823, %v4434, 0
        %v4463 = vsel %vm823, %v4436, 0
        %v4466 = vsel %vm823, %v4438, 0
        %v4469 = vsel %vm823, %v4440, 0
        %4471 = vmatpush.bf16.msra.mxu0 0
        %4472 = vmatpush.bf16.msra.mxu0 0
        %4473 = vmatpush.bf16.msra.mxu0 0
        %4474 = vmatpush.bf16.msra.mxu0 0
        %4475 = vmatpush.bf16.msra.mxu0 0
        %4476 = vmatpush.bf16.msra.mxu0 0
        %4477 = vmatpush.bf16.msra.mxu0 0
        %4478 = vmatpush.bf16.msra.mxu0 %v4445
        %4479 = vmatmul.bf16.gmra.mxu0 %v4448
        %v4480 = vpop.f32.mrf.mxu0
        %v4481 = vadd.f32 0.0, %v4480
        %v4482 = vpop.f32.mrf.mxu0
        %v4483 = vadd.f32 0.0, %v4482
        %4484 = vmatmul.bf16.gmra.mxu0 %v4451
        %v4485 = vpop.f32.mrf.mxu0
        %v4486 = vadd.f32 0.0, %v4485
        %v4487 = vpop.f32.mrf.mxu0
        %v4488 = vadd.f32 0.0, %v4487
        %4489 = vmatmul.bf16.gmra.mxu0 %v4454
        %v4490 = vpop.f32.mrf.mxu0
        %v4491 = vadd.f32 0.0, %v4490
        %v4492 = vpop.f32.mrf.mxu0
        %v4493 = vadd.f32 0.0, %v4492
        %4494 = vmatmul.bf16.gmra.mxu0 %v4457
        %v4495 = vpop.f32.mrf.mxu0
        %v4496 = vadd.f32 0.0, %v4495
        %v4497 = vpop.f32.mrf.mxu0
        %v4498 = vadd.f32 0.0, %v4497
        %4499 = vmatmul.bf16.gmra.mxu0 %v4460
        %v4500 = vpop.f32.mrf.mxu0
        %v4501 = vadd.f32 0.0, %v4500
        %v4502 = vpop.f32.mrf.mxu0
        %v4503 = vadd.f32 0.0, %v4502
        %4504 = vmatmul.bf16.gmra.mxu0 %v4463
        %v4505 = vpop.f32.mrf.mxu0
        %v4506 = vadd.f32 0.0, %v4505
        %v4507 = vpop.f32.mrf.mxu0
        %v4508 = vadd.f32 0.0, %v4507
        %4509 = vmatmul.bf16.gmra.mxu0 %v4466
        %v4510 = vpop.f32.mrf.mxu0
        %v4511 = vadd.f32 0.0, %v4510
        %v4512 = vpop.f32.mrf.mxu0
        %v4513 = vadd.f32 0.0, %v4512
        %4514 = vmatmul.bf16.gmra.mxu0 %v4469
        %v4515 = vpop.f32.mrf.mxu0
        %v4516 = vadd.f32 0.0, %v4515
        %v4517 = vpop.f32.mrf.mxu0
        %v4518 = vadd.f32 0.0, %v4517
        %4519 = vdwg.mxu0
        %4520 = vmax.xlane.f32.xlu0 %v4481
        %v4521 = vpop.xlane.xlu0 %4520
        %4522 = vmax.xlane.f32.xlu0 %v4483
        %v4523 = vpop.xlane.xlu0 %4522
        %4524 = vmax.xlane.f32.xlu0 %v4486
        %v4525 = vpop.xlane.xlu0 %4524
        %4526 = vmax.xlane.f32.xlu0 %v4488
        %v4527 = vpop.xlane.xlu0 %4526
        %4528 = vmax.xlane.f32.xlu0 %v4491
        %v4529 = vpop.xlane.xlu0 %4528
        %4530 = vmax.xlane.f32.xlu0 %v4493
        %v4531 = vpop.xlane.xlu0 %4530
        %4532 = vmax.xlane.f32.xlu0 %v4496
        %v4533 = vpop.xlane.xlu0 %4532
        %4534 = vmax.xlane.f32.xlu0 %v4498
        %v4535 = vpop.xlane.xlu0 %4534
        %4536 = vmax.xlane.f32.xlu0 %v4501
        %v4537 = vpop.xlane.xlu0 %4536
        %4538 = vmax.xlane.f32.xlu0 %v4503
        %v4539 = vpop.xlane.xlu0 %4538
        %4540 = vmax.xlane.f32.xlu0 %v4506
        %v4541 = vpop.xlane.xlu0 %4540
        %4542 = vmax.xlane.f32.xlu0 %v4508
        %v4543 = vpop.xlane.xlu0 %4542
        %4544 = vmax.xlane.f32.xlu0 %v4511
        %v4545 = vpop.xlane.xlu0 %4544
        %4546 = vmax.xlane.f32.xlu0 %v4513
        %v4547 = vpop.xlane.xlu0 %4546
        %4548 = vmax.xlane.f32.xlu0 %v4516
        %v4549 = vpop.xlane.xlu0 %4548
        %4550 = vmax.xlane.f32.xlu0 %v4518
        %v4551 = vpop.xlane.xlu0 %4550
        %v4552 = vsub.f32 %v4481, %v4521
        %v4553 = vsub.f32 %v4483, %v4523
        %v4554 = vsub.f32 %v4486, %v4525
        %v4555 = vsub.f32 %v4488, %v4527
        %v4556 = vsub.f32 %v4491, %v4529
        %v4557 = vsub.f32 %v4493, %v4531
        %v4558 = vsub.f32 %v4496, %v4533
        %v4559 = vsub.f32 %v4498, %v4535
        %v4560 = vsub.f32 %v4501, %v4537
        %v4561 = vsub.f32 %v4503, %v4539
        %v4562 = vsub.f32 %v4506, %v4541
        %v4563 = vsub.f32 %v4508, %v4543
        %v4564 = vsub.f32 %v4511, %v4545
        %v4565 = vsub.f32 %v4513, %v4547
        %v4566 = vsub.f32 %v4516, %v4549
        %v4567 = vsub.f32 %v4518, %v4551
        %v4568 = vmul.f32 %v4552, 1.442695
        %v4569 = vpow.pop %v4568
        %v4570 = vmul.f32 %v4553, 1.442695
        %v4571 = vpow.pop %v4570
        %v4572 = vmul.f32 %v4554, 1.442695
        %v4573 = vpow.pop %v4572
        %v4574 = vmul.f32 %v4555, 1.442695
        %v4575 = vpow.pop %v4574
        %v4576 = vmul.f32 %v4556, 1.442695
        %v4577 = vpow.pop %v4576
        %v4578 = vmul.f32 %v4557, 1.442695
        %v4579 = vpow.pop %v4578
        %v4580 = vmul.f32 %v4558, 1.442695
        %v4581 = vpow.pop %v4580
        %v4582 = vmul.f32 %v4559, 1.442695
        %v4583 = vpow.pop %v4582
        %v4584 = vmul.f32 %v4560, 1.442695
        %v4585 = vpow.pop %v4584
        %v4586 = vmul.f32 %v4561, 1.442695
        %v4587 = vpow.pop %v4586
        %v4588 = vmul.f32 %v4562, 1.442695
        %v4589 = vpow.pop %v4588
        %v4590 = vmul.f32 %v4563, 1.442695
        %v4591 = vpow.pop %v4590
        %v4592 = vmul.f32 %v4564, 1.442695
        %v4593 = vpow.pop %v4592
        %v4594 = vmul.f32 %v4565, 1.442695
        %v4595 = vpow.pop %v4594
        %v4596 = vmul.f32 %v4566, 1.442695
        %v4597 = vpow.pop %v4596
        %v4598 = vmul.f32 %v4567, 1.442695
        %v4599 = vpow.pop %v4598
        %4600 = vadd.xlane.f32.xlu0 %v4569
        %v4601 = vpop.xlane.xlu0 %4600
        %4602 = vadd.xlane.f32.xlu0 %v4571
        %v4603 = vpop.xlane.xlu0 %4602
        %4604 = vadd.xlane.f32.xlu0 %v4573
        %v4605 = vpop.xlane.xlu0 %4604
        %4606 = vadd.xlane.f32.xlu0 %v4575
        %v4607 = vpop.xlane.xlu0 %4606
        %4608 = vadd.xlane.f32.xlu0 %v4577
        %v4609 = vpop.xlane.xlu0 %4608
        %4610 = vadd.xlane.f32.xlu0 %v4579
        %v4611 = vpop.xlane.xlu0 %4610
        %4612 = vadd.xlane.f32.xlu0 %v4581
        %v4613 = vpop.xlane.xlu0 %4612
        %4614 = vadd.xlane.f32.xlu0 %v4583
        %v4615 = vpop.xlane.xlu0 %4614
        %4616 = vadd.xlane.f32.xlu0 %v4585
        %v4617 = vpop.xlane.xlu0 %4616
        %4618 = vadd.xlane.f32.xlu0 %v4587
        %v4619 = vpop.xlane.xlu0 %4618
        %4620 = vadd.xlane.f32.xlu0 %v4589
        %v4621 = vpop.xlane.xlu0 %4620
        %4622 = vadd.xlane.f32.xlu0 %v4591
        %v4623 = vpop.xlane.xlu0 %4622
        %4624 = vadd.xlane.f32.xlu0 %v4593
        %v4625 = vpop.xlane.xlu0 %4624
        %4626 = vadd.xlane.f32.xlu0 %v4595
        %v4627 = vpop.xlane.xlu0 %4626
        %4628 = vadd.xlane.f32.xlu0 %v4597
        %v4629 = vpop.xlane.xlu0 %4628
        %4630 = vadd.xlane.f32.xlu0 %v4599
        %v4631 = vpop.xlane.xlu0 %4630
        %v4632 = vpack.c.bf16 %v4571, %v4569
        %v4633 = vpack.c.bf16 %v4575, %v4573
        %v4634 = vpack.c.bf16 %v4579, %v4577
        %v4635 = vpack.c.bf16 %v4583, %v4581
        %v4636 = vpack.c.bf16 %v4587, %v4585
        %v4637 = vpack.c.bf16 %v4591, %v4589
        %v4638 = vpack.c.bf16 %v4595, %v4593
        %v4639 = vpack.c.bf16 %v4599, %v4597
        %v4656 = vunpack.c.l.b16 %v4369
        %v4657 = vunpack.c.l.b16 %v4370
        %v4658 = vunpack.c.l.b16 %v4371
        %v4659 = vunpack.c.l.b16 %v4372
        %v4660 = vunpack.c.l.b16 %v4373
        %v4661 = vunpack.c.l.b16 %v4374
        %v4662 = vunpack.c.l.b16 %v4375
        %v4663 = vunpack.c.l.b16 %v4376
        %v4664 = vunpack.c.l.b16 %v4377
        %v4665 = vunpack.c.l.b16 %v4378
        %v4666 = vunpack.c.l.b16 %v4379
        %v4667 = vunpack.c.l.b16 %v4380
        %v4668 = vunpack.c.l.b16 %v4381
        %v4669 = vunpack.c.l.b16 %v4382
        %v4670 = vunpack.c.l.b16 %v4383
        %v4671 = vunpack.c.l.b16 %v4384
        %v4672 = vpack.c.b16 %v4657, %v4656
        %v4673 = vpack.c.b16 %v4659, %v4658
        %v4674 = vpack.c.b16 %v4661, %v4660
        %v4675 = vpack.c.b16 %v4663, %v4662
        %v4676 = vpack.c.b16 %v4665, %v4664
        %v4677 = vpack.c.b16 %v4667, %v4666
        %v4678 = vpack.c.b16 %v4669, %v4668
        %v4679 = vpack.c.b16 %v4671, %v4670
        %4680 = vrot.lane.b32.xlu0 %v4672, 16
        %v4681 = vpop.permute.xlu0 %4680
        %4682 = vrot.lane.b32.xlu0 %v4673, 16
        %v4683 = vpop.permute.xlu0 %4682
        %4684 = vrot.lane.b32.xlu0 %v4674, 16
        %v4685 = vpop.permute.xlu0 %4684
        %4686 = vrot.lane.b32.xlu0 %v4675, 16
        %v4687 = vpop.permute.xlu0 %4686
        %4688 = vrot.lane.b32.xlu0 %v4676, 16
        %v4689 = vpop.permute.xlu0 %4688
        %4690 = vrot.lane.b32.xlu0 %v4677, 16
        %v4691 = vpop.permute.xlu0 %4690
        %4692 = vrot.lane.b32.xlu0 %v4678, 16
        %v4693 = vpop.permute.xlu0 %4692
        %4694 = vrot.lane.b32.xlu0 %v4679, 16
        %v4695 = vpop.permute.xlu0 %4694
        %4704 = vmatpush.bf16.msra.mxu0 %v4695
        %4705 = vmatpush.bf16.msra.mxu0 %v4693
        %4706 = vmatpush.bf16.msra.mxu0 %v4691
        %4707 = vmatpush.bf16.msra.mxu0 %v4689
        %4708 = vmatpush.bf16.msra.mxu0 %v4687
        %4709 = vmatpush.bf16.msra.mxu0 %v4685
        %4710 = vmatpush.bf16.msra.mxu0 %v4683
        %4711 = vmatpush.bf16.msra.mxu0 %v4681
        %4712 = vmatmul.bf16.gmra.mxu0 %v4632
        %v4713 = vpop.f32.mrf.mxu0
        %v4714 = vadd.f32 0.0, %v4713
        %v4715 = vpop.f32.mrf.mxu0
        %v4716 = vadd.f32 0.0, %v4715
        %4717 = vmatmul.bf16.gmra.mxu0 %v4633
        %v4718 = vpop.f32.mrf.mxu0
        %v4719 = vadd.f32 0.0, %v4718
        %v4720 = vpop.f32.mrf.mxu0
        %v4721 = vadd.f32 0.0, %v4720
        %4722 = vmatmul.bf16.gmra.mxu0 %v4634
        %v4723 = vpop.f32.mrf.mxu0
        %v4724 = vadd.f32 0.0, %v4723
        %v4725 = vpop.f32.mrf.mxu0
        %v4726 = vadd.f32 0.0, %v4725
        %4727 = vmatmul.bf16.gmra.mxu0 %v4635
        %v4728 = vpop.f32.mrf.mxu0
        %v4729 = vadd.f32 0.0, %v4728
        %v4730 = vpop.f32.mrf.mxu0
        %v4731 = vadd.f32 0.0, %v4730
        %4732 = vmatmul.bf16.gmra.mxu0 %v4636
        %v4733 = vpop.f32.mrf.mxu0
        %v4734 = vadd.f32 0.0, %v4733
        %v4735 = vpop.f32.mrf.mxu0
        %v4736 = vadd.f32 0.0, %v4735
        %4737 = vmatmul.bf16.gmra.mxu0 %v4637
        %v4738 = vpop.f32.mrf.mxu0
        %v4739 = vadd.f32 0.0, %v4738
        %v4740 = vpop.f32.mrf.mxu0
        %v4741 = vadd.f32 0.0, %v4740
        %4742 = vmatmul.bf16.gmra.mxu0 %v4638
        %v4743 = vpop.f32.mrf.mxu0
        %v4744 = vadd.f32 0.0, %v4743
        %v4745 = vpop.f32.mrf.mxu0
        %v4746 = vadd.f32 0.0, %v4745
        %4747 = vmatmul.bf16.gmra.mxu0 %v4639
        %v4748 = vpop.f32.mrf.mxu0
        %v4749 = vadd.f32 0.0, %v4748
        %v4750 = vpop.f32.mrf.mxu0
        %v4751 = vadd.f32 0.0, %v4750
        %4752 = vdwg.mxu0
        %v4753 = vrcp.pop %v4601
        %v4754 = vrcp.pop %v4603
        %v4755 = vrcp.pop %v4605
        %v4756 = vrcp.pop %v4607
        %v4757 = vrcp.pop %v4609
        %v4758 = vrcp.pop %v4611
        %v4759 = vrcp.pop %v4613
        %v4760 = vrcp.pop %v4615
        %v4761 = vrcp.pop %v4617
        %v4762 = vrcp.pop %v4619
        %v4763 = vrcp.pop %v4621
        %v4764 = vrcp.pop %v4623
        %v4765 = vrcp.pop %v4625
        %v4766 = vrcp.pop %v4627
        %v4767 = vrcp.pop %v4629
        %v4768 = vrcp.pop %v4631
        %v4769 = vmul.f32 %v4714, %v4753
        %v4770 = vmul.f32 %v4716, %v4754
        %v4771 = vmul.f32 %v4719, %v4755
        %v4772 = vmul.f32 %v4721, %v4756
        %v4773 = vmul.f32 %v4724, %v4757
        %v4774 = vmul.f32 %v4726, %v4758
        %v4775 = vmul.f32 %v4729, %v4759
        %v4776 = vmul.f32 %v4731, %v4760
        %v4777 = vmul.f32 %v4734, %v4761
        %v4778 = vmul.f32 %v4736, %v4762
        %v4779 = vmul.f32 %v4739, %v4763
        %v4780 = vmul.f32 %v4741, %v4764
        %v4781 = vmul.f32 %v4744, %v4765
        %v4782 = vmul.f32 %v4746, %v4766
        %v4783 = vmul.f32 %v4749, %v4767
        %v4784 = vmul.f32 %v4751, %v4768
        %v4785 = vpack.c.bf16 %v4769, %v4769
        %v4786 = vpack.c.bf16 %v4770, %v4770
        %v4787 = vpack.c.bf16 %v4771, %v4771
        %v4788 = vpack.c.bf16 %v4772, %v4772
        %v4789 = vpack.c.bf16 %v4773, %v4773
        %v4790 = vpack.c.bf16 %v4774, %v4774
        %v4791 = vpack.c.bf16 %v4775, %v4775
        %v4792 = vpack.c.bf16 %v4776, %v4776
        %v4793 = vpack.c.bf16 %v4777, %v4777
        %v4794 = vpack.c.bf16 %v4778, %v4778
        %v4795 = vpack.c.bf16 %v4779, %v4779
        %v4796 = vpack.c.bf16 %v4780, %v4780
        %v4797 = vpack.c.bf16 %v4781, %v4781
        %v4798 = vpack.c.bf16 %v4782, %v4782
        %v4799 = vpack.c.bf16 %v4783, %v4783
        %v4800 = vpack.c.bf16 %v4784, %v4784
        %4817 = vrot.lane.b32.xlu0 %v4785, 112
        %v4818 = vpop.permute.xlu0 %4817
        %4819 = vrot.lane.b32.xlu0 %v4786, 112
        %v4820 = vpop.permute.xlu0 %4819
        %4821 = vrot.lane.b32.xlu0 %v4787, 112
        %v4822 = vpop.permute.xlu0 %4821
        %4823 = vrot.lane.b32.xlu0 %v4788, 112
        %v4824 = vpop.permute.xlu0 %4823
        %4825 = vrot.lane.b32.xlu0 %v4789, 112
        %v4826 = vpop.permute.xlu0 %4825
        %4827 = vrot.lane.b32.xlu0 %v4790, 112
        %v4828 = vpop.permute.xlu0 %4827
        %4829 = vrot.lane.b32.xlu0 %v4791, 112
        %v4830 = vpop.permute.xlu0 %4829
        %4831 = vrot.lane.b32.xlu0 %v4792, 112
        %v4832 = vpop.permute.xlu0 %4831
        %4833 = vrot.lane.b32.xlu0 %v4793, 112
        %v4834 = vpop.permute.xlu0 %4833
        %4835 = vrot.lane.b32.xlu0 %v4794, 112
        %v4836 = vpop.permute.xlu0 %4835
        %4837 = vrot.lane.b32.xlu0 %v4795, 112
        %v4838 = vpop.permute.xlu0 %4837
        %4839 = vrot.lane.b32.xlu0 %v4796, 112
        %v4840 = vpop.permute.xlu0 %4839
        %4841 = vrot.lane.b32.xlu0 %v4797, 112
        %v4842 = vpop.permute.xlu0 %4841
        %4843 = vrot.lane.b32.xlu0 %v4798, 112
        %v4844 = vpop.permute.xlu0 %4843
        %4845 = vrot.lane.b32.xlu0 %v4799, 112
        %v4846 = vpop.permute.xlu0 %4845
        %4847 = vrot.lane.b32.xlu0 %v4800, 112
        %v4848 = vpop.permute.xlu0 %4847
        %vm4865 = vcmask 1044352
        %4866 = vst.msk [vmem:[#allocation3] sm:$0xf] %vm4865, %v4818
        %4867 = vst.msk [vmem:[#allocation3 + $0x4] sm:$0xf] %vm4865, %v4820
        %4868 = vst.msk [vmem:[#allocation3 + $0x8] sm:$0xf] %vm4865, %v4822
        %4869 = vst.msk [vmem:[#allocation3 + $0xc] sm:$0xf] %vm4865, %v4824
        %4870 = vst.msk [vmem:[#allocation3 + $0x10] sm:$0xf] %vm4865, %v4826
        %4871 = vst.msk [vmem:[#allocation3 + $0x14] sm:$0xf] %vm4865, %v4828
        %4872 = vst.msk [vmem:[#allocation3 + $0x18] sm:$0xf] %vm4865, %v4830
        %4873 = vst.msk [vmem:[#allocation3 + $0x1c] sm:$0xf] %vm4865, %v4832
        %4874 = vst.msk [vmem:[#allocation3 + $0x20] sm:$0xf] %vm4865, %v4834
        %4875 = vst.msk [vmem:[#allocation3 + $0x24] sm:$0xf] %vm4865, %v4836
        %4876 = vst.msk [vmem:[#allocation3 + $0x28] sm:$0xf] %vm4865, %v4838
        %4877 = vst.msk [vmem:[#allocation3 + $0x2c] sm:$0xf] %vm4865, %v4840
        %4878 = vst.msk [vmem:[#allocation3 + $0x30] sm:$0xf] %vm4865, %v4842
        %4879 = vst.msk [vmem:[#allocation3 + $0x34] sm:$0xf] %vm4865, %v4844
        %4880 = vst.msk [vmem:[#allocation3 + $0x38] sm:$0xf] %vm4865, %v4846
        %4881 = vst.msk [vmem:[#allocation3 + $0x3c] sm:$0xf] %vm4865, %v4848
        %v4882 = vld [vmem:[#allocation3] sm:$0xf]
        %v4883 = vld [vmem:[#allocation3 + $0x4] sm:$0xf]
        %v4884 = vld [vmem:[#allocation3 + $0x8] sm:$0xf]
        %v4885 = vld [vmem:[#allocation3 + $0xc] sm:$0xf]
        %v4886 = vld [vmem:[#allocation3 + $0x10] sm:$0xf]
        %v4887 = vld [vmem:[#allocation3 + $0x14] sm:$0xf]
        %v4888 = vld [vmem:[#allocation3 + $0x18] sm:$0xf]
        %v4889 = vld [vmem:[#allocation3 + $0x1c] sm:$0xf]
        %v4890 = vld [vmem:[#allocation3 + $0x20] sm:$0xf]
        %v4891 = vld [vmem:[#allocation3 + $0x24] sm:$0xf]
        %v4892 = vld [vmem:[#allocation3 + $0x28] sm:$0xf]
        %v4893 = vld [vmem:[#allocation3 + $0x2c] sm:$0xf]
        %v4894 = vld [vmem:[#allocation3 + $0x30] sm:$0xf]
        %v4895 = vld [vmem:[#allocation3 + $0x34] sm:$0xf]
        %v4896 = vld [vmem:[#allocation3 + $0x38] sm:$0xf]
        %v4897 = vld [vmem:[#allocation3 + $0x3c] sm:$0xf]
        %v4898 = vld [vmem:[#allocation10] sm:$0xf]
        %v4899 = vld [vmem:[#allocation10 + $0x4] sm:$0xf]
        %v4900 = vld [vmem:[#allocation10 + $0x8] sm:$0xf]
        %v4901 = vld [vmem:[#allocation10 + $0xc] sm:$0xf]
        %v4902 = vld [vmem:[#allocation10 + $0x10] sm:$0xf]
        %v4903 = vld [vmem:[#allocation10 + $0x14] sm:$0xf]
        %v4904 = vld [vmem:[#allocation10 + $0x18] sm:$0xf]
        %v4905 = vld [vmem:[#allocation10 + $0x1c] sm:$0xf]
        %v4906 = vld [vmem:[#allocation10 + $0x20] sm:$0xf]
        %v4907 = vld [vmem:[#allocation10 + $0x24] sm:$0xf]
        %v4908 = vld [vmem:[#allocation10 + $0x28] sm:$0xf]
        %v4909 = vld [vmem:[#allocation10 + $0x2c] sm:$0xf]
        %v4910 = vld [vmem:[#allocation10 + $0x30] sm:$0xf]
        %v4911 = vld [vmem:[#allocation10 + $0x34] sm:$0xf]
        %v4912 = vld [vmem:[#allocation10 + $0x38] sm:$0xf]
        %v4913 = vld [vmem:[#allocation10 + $0x3c] sm:$0xf]
        %v4914 = vld [vmem:[%s4] sm:$0x1]
        %v4916 = vperm.slane %v4914, 0
        %v4934 = vunpack.c.l.b16 %v4882
        %v4935 = vunpack.c.l.b16 %v4883
        %v4936 = vunpack.c.l.b16 %v4884
        %v4937 = vunpack.c.l.b16 %v4885
        %v4938 = vunpack.c.l.b16 %v4886
        %v4939 = vunpack.c.l.b16 %v4887
        %v4940 = vunpack.c.l.b16 %v4888
        %v4941 = vunpack.c.l.b16 %v4889
        %v4942 = vunpack.c.l.b16 %v4890
        %v4943 = vunpack.c.l.b16 %v4891
        %v4944 = vunpack.c.l.b16 %v4892
        %v4945 = vunpack.c.l.b16 %v4893
        %v4946 = vunpack.c.l.b16 %v4894
        %v4947 = vunpack.c.l.b16 %v4895
        %v4948 = vunpack.c.l.b16 %v4896
        %v4949 = vunpack.c.l.b16 %v4897
        %v4950 = vpack.c.b16 %v4935, %v4934
        %v4951 = vpack.c.b16 %v4937, %v4936
        %v4952 = vpack.c.b16 %v4939, %v4938
        %v4953 = vpack.c.b16 %v4941, %v4940
        %v4954 = vpack.c.b16 %v4943, %v4942
        %v4955 = vpack.c.b16 %v4945, %v4944
        %v4956 = vpack.c.b16 %v4947, %v4946
        %v4957 = vpack.c.b16 %v4949, %v4948
        %v4982 = vunpack.c.l.b16 %v4898
        %v4983 = vunpack.c.l.b16 %v4899
        %v4984 = vunpack.c.l.b16 %v4900
        %v4985 = vunpack.c.l.b16 %v4901
        %v4986 = vunpack.c.l.b16 %v4902
        %v4987 = vunpack.c.l.b16 %v4903
        %v4988 = vunpack.c.l.b16 %v4904
        %v4989 = vunpack.c.l.b16 %v4905
        %v4990 = vunpack.c.l.b16 %v4906
        %v4991 = vunpack.c.l.b16 %v4907
        %v4992 = vunpack.c.l.b16 %v4908
        %v4993 = vunpack.c.l.b16 %v4909
        %v4994 = vunpack.c.l.b16 %v4910
        %v4995 = vunpack.c.l.b16 %v4911
        %v4996 = vunpack.c.l.b16 %v4912
        %v4997 = vunpack.c.l.b16 %v4913
        %v4998 = vpack.c.b16 %v4983, %v4982
        %v4999 = vpack.c.b16 %v4985, %v4984
        %v5000 = vpack.c.b16 %v4987, %v4986
        %v5001 = vpack.c.b16 %v4989, %v4988
        %v5002 = vpack.c.b16 %v4991, %v4990
        %v5003 = vpack.c.b16 %v4993, %v4992
        %v5004 = vpack.c.b16 %v4995, %v4994
        %v5005 = vpack.c.b16 %v4997, %v4996
        %5014 = vmatpush.bf16.msra.mxu0 %v5005
        %5015 = vmatpush.bf16.msra.mxu0 %v5004
        %5016 = vmatpush.bf16.msra.mxu0 %v5003
        %5017 = vmatpush.bf16.msra.mxu0 %v5002
        %5018 = vmatpush.bf16.msra.mxu0 %v5001
        %5019 = vmatpush.bf16.msra.mxu0 %v5000
        %5020 = vmatpush.bf16.msra.mxu0 %v4999
        %5021 = vmatpush.bf16.msra.mxu0 %v4998
        %5022 = vmatmul.bf16.gmra.mxu0 %v4950
        %v5023 = vpop.f32.mrf.mxu0
        %v5024 = vadd.f32 %v4916, %v5023
        %v5025 = vpop.f32.mrf.mxu0
        %v5026 = vadd.f32 %v4916, %v5025
        %5027 = vmatmul.bf16.gmra.mxu0 %v4951
        %v5028 = vpop.f32.mrf.mxu0
        %v5029 = vadd.f32 %v4916, %v5028
        %v5030 = vpop.f32.mrf.mxu0
        %v5031 = vadd.f32 %v4916, %v5030
        %5032 = vmatmul.bf16.gmra.mxu0 %v4952
        %v5033 = vpop.f32.mrf.mxu0
        %v5034 = vadd.f32 %v4916, %v5033
        %v5035 = vpop.f32.mrf.mxu0
        %v5036 = vadd.f32 %v4916, %v5035
        %5037 = vmatmul.bf16.gmra.mxu0 %v4953
        %v5038 = vpop.f32.mrf.mxu0
        %v5039 = vadd.f32 %v4916, %v5038
        %v5040 = vpop.f32.mrf.mxu0
        %v5041 = vadd.f32 %v4916, %v5040
        %5042 = vmatmul.bf16.gmra.mxu0 %v4954
        %v5043 = vpop.f32.mrf.mxu0
        %v5044 = vadd.f32 %v4916, %v5043
        %v5045 = vpop.f32.mrf.mxu0
        %v5046 = vadd.f32 %v4916, %v5045
        %5047 = vmatmul.bf16.gmra.mxu0 %v4955
        %v5048 = vpop.f32.mrf.mxu0
        %v5049 = vadd.f32 %v4916, %v5048
        %v5050 = vpop.f32.mrf.mxu0
        %v5051 = vadd.f32 %v4916, %v5050
        %5052 = vmatmul.bf16.gmra.mxu0 %v4956
        %v5053 = vpop.f32.mrf.mxu0
        %v5054 = vadd.f32 %v4916, %v5053
        %v5055 = vpop.f32.mrf.mxu0
        %v5056 = vadd.f32 %v4916, %v5055
        %5057 = vmatmul.bf16.gmra.mxu0 %v4957
        %v5058 = vpop.f32.mrf.mxu0
        %v5059 = vadd.f32 %v4916, %v5058
        %v5060 = vpop.f32.mrf.mxu0
        %v5061 = vadd.f32 %v4916, %v5060
        %5062 = vdwg.mxu0
        %5063 = vst [vmem:[%s292] sm:$0xff] %v5024
        %5064 = vst [vmem:[%s292 + $0x8] sm:$0xff] %v5026
        %5065 = vst [vmem:[%s292 + $0x10] sm:$0xff] %v5029
        %5066 = vst [vmem:[%s292 + $0x18] sm:$0xff] %v5031
        %5067 = vst [vmem:[%s292 + $0x20] sm:$0xff] %v5034
        %5068 = vst [vmem:[%s292 + $0x28] sm:$0xff] %v5036
        %5069 = vst [vmem:[%s292 + $0x30] sm:$0xff] %v5039
        %5070 = vst [vmem:[%s292 + $0x38] sm:$0xff] %v5041
        %5071 = vst [vmem:[%s292 + $0x40] sm:$0xff] %v5044
        %5072 = vst [vmem:[%s292 + $0x48] sm:$0xff] %v5046
        %5073 = vst [vmem:[%s292 + $0x50] sm:$0xff] %v5049
        %5074 = vst [vmem:[%s292 + $0x58] sm:$0xff] %v5051
        %5075 = vst [vmem:[%s292 + $0x60] sm:$0xff] %v5054
        %5076 = vst [vmem:[%s292 + $0x68] sm:$0xff] %v5056
        %5077 = vst [vmem:[%s292 + $0x70] sm:$0xff] %v5059
        %5078 = vst [vmem:[%s292 + $0x78] sm:$0xff] %v5061
        %s5079 = sand.u32 %s142, 1
        %s5080 = scalar_lea.sflag [#allocation6], %s5079
        %s5081 = sand.u32 %s142, 1
        %s5082 = smul.addr %s5081, 128
        %s5083 = scalar_lea.vmem [#allocation12], %s5082
        // Predicated region
        $region57: #{tpu_custom_call.1} parent=39 // pred_check
          %p5084 = pneg %p152
        $region58: #{tpu_custom_call.1} parent=39 // pred_check_branch
          %5086 = sbr.rel (%p5084) target = $region60
        $region59: #{tpu_custom_call.1} parent=39 // pred_region
          %5088 = vsyncadd %s5080, 0
          %s5089 = smul.addr %s24, 16
          %s5090 = smul.addr %s5089, 8
          %s5091 = scalar_lea.hbm %s5, %s5090
          %s5092 = sshll.u32 %s5083, 4
          %s5093 = int_to_ptr.vmem [resolvable:$true] %s5092
          %s5094 = sshll.u32 %s5091, 4
          %s5095 = int_to_ptr.hbm [resolvable:$true] %s5094
          %5100 = dma.vmem_to_hbm [thread:$0]  %s5093, 2048, %s5095, %s5080, 128, 128, 8
        $region60: #{tpu_custom_call.1} parent=39 // pred_fallthru
          _
      $region40: #{tpu_custom_call.1} parent=5 // pred_fallthru
        _
      %p5101 = scmp.le.s32.totalorder 2, %s19
      // Predicated region
      $region61: #{tpu_custom_call.1} parent=5 // pred_check
        %p5102 = pneg %p5101
      $region62: #{tpu_custom_call.1} parent=5 // pred_check_branch
        %5104 = sbr.rel (%p5102) target = $region64
      $region63: #{tpu_custom_call.1} parent=5 // pred_region
        %s5105 = ssub.s32 %s19, 2
        // Predicated region
        $region65: #{tpu_custom_call.1} parent=63 // pred_check
          %p5106 = pneg %p158
        $region66: #{tpu_custom_call.1} parent=63 // pred_check_branch
          %5108 = sbr.rel (%p5106) target = $region68
        $region67: #{tpu_custom_call.1} parent=63 // pred_region
          %s5109 = sand.u32 %s143, 1
          %s5110 = scalar_lea.sflag [#allocation6], %s5109
          %s5111 = sand.u32 %s143, 1
          %s5112 = smul.addr %s5111, 128
          %s5113 = scalar_lea.vmem [#allocation12], %s5112
          %5115 = dma.done %s5110, 2048
        $region68: #{tpu_custom_call.1} parent=63 // pred_fallthru
          _
      $region64: #{tpu_custom_call.1} parent=5 // pred_fallthru
        _
    $region6: #{tpu_custom_call.1} parent=1 // loop_footer
      %s23 = sadd.s32 1, %s19
    $region7: #{tpu_custom_call.1} parent=1 // loop_footer_branch
      %18 = sbr.rel target = $region3
    $region8: #{tpu_custom_call.1} parent=1 // loop_exit
      _
    %5116 = vsyncpa [#allocation5], 1
    %s5117 = scalar_lea.sflag [#allocation5], 1
    %5118 = vsyncpa %s5117, 1
    %5119 = vsyncpa [#allocation8], 1
    %5120 = vsyncpa [#allocation11], 1
    %5121 = vsyncpa [#allocation6], 1
    %s5122 = scalar_lea.sflag [#allocation6], 1
    %5123 = vsyncpa %s5122, 1

</llo_original>
